<compile_context>
chip_gen: v6e
topology: v6e:2x2x1
jax: 0.10.0
libtpu: 0.0.40
codegen_flags: <defaults>
</compile_context>

<pallas_src>
from functools import partial

import jax
import jax.numpy as jnp
import numpy as np
from jax.experimental import pallas as pl
from jax.experimental.pallas import tpu as pltpu


def _ctg_kernel(x_ref, w_ref, o_ref, *, c_out):
    """One (n, t-tile) step.

    x_ref: (t_tile, C_in*V + 1)     flattened x block (+ ones column for the bias)
    w_ref: (C_out, C_in*V + 1, W)   fused conv-weight x A (+ bias row), grid-invariant
    o_ref: (C_out, t_tile, W)       NCTW output block (written directly, no transpose)
    """
    x_blk = x_ref[...]
    # One MXU dot per output channel: the contraction over C_in*V+1 happens in a single
    # matmul (no per-c_in accumulation / VALU adds); splitting the *output* on c_out
    # lets the result land directly in NCTW layout, so no in-kernel or XLA transpose.
    for co in range(c_out):                       # static unroll; C_out is small
        o_ref[co] = jnp.dot(
            x_blk, w_ref[co], preferred_element_type=jnp.float32
        ).astype(o_ref.dtype)


def fuse_ctg_params(A, weight, bias, *, kernel_size, out_channels,
                    param_dtype=jnp.float32):
    """Fuse 1x1-conv weight/bias with adjacency A.  Weight-only work: hoist it out of
    the per-step path (precompute once per weight update).

    A: (K, V, W), weight: (K*C_out, C_in), bias: (K*C_out,)
    Returns W_aug: (C_out, C_in*V + 1, W); row C_in*V holds the fused bias.
    """
    K, C_out = kernel_size, out_channels
    KCo, C_in = weight.shape
    assert KCo == K * C_out and A.shape[0] == K
    V, Wg = A.shape[1], A.shape[2]
    # NOTE: fusion inflates weight bytes/FLOPs by ~C_in*W / (K*(C_in+W)); it is a clear
    # win for small C_in (here 2) but not at production ST-GCN widths.
    # TODO(synk): two-stage kernel (x @ conv-weight^T on the MXU, then K batched
    # (T,V)@(V,W) matmuls) plus a C_out*W grid axis for large C_in / large C_out*W.
    w_k = weight.reshape(K, C_out, C_in)                   # conv channel kc = k*C_out + co
    w_eff = jnp.einsum('koc,kvw->ocvw', w_k, A)            # (C_out, C_in, V, W)
    w_eff = w_eff.reshape(C_out, C_in * V, Wg)
    b_eff = jnp.einsum('ko,kw->ow', bias.reshape(K, C_out), A.sum(axis=1))  # (C_out, W)
    w_aug = jnp.concatenate([w_eff, b_eff[:, None, :]], axis=1)  # (C_out, C_in*V+1, W)
    return w_aug.astype(param_dtype)


def _vmem_block_bytes(shape, dtype):
    """Conservative VMEM footprint of one block (last dim padded to 128 lanes,
    second-to-last to 8 sublanes)."""
    s = list(shape)
    s[-1] = -(-s[-1] // 128) * 128
    if len(s) >= 2:
        s[-2] = -(-s[-2] // 8) * 8
    n = 1
    for d in s:
        n *= int(d)
    return n * np.dtype(dtype).itemsize


def _invariant_weight_spec(shape):
    """BlockSpec for the grid-invariant fused weight; single-buffered to halve its
    resident VMEM (important on v7x's 64 MiB when C_in*V*C_out*W grows)."""
    try:
        return pl.BlockSpec(shape, lambda n, t: (0, 0, 0),
                            pipeline_mode=pl.Buffered(1))
    except (AttributeError, TypeError):
        # Older Pallas without pipeline_mode: fall back to default double-buffering.
        return pl.BlockSpec(shape, lambda n, t: (0, 0, 0))


def conv_temporal_graphical_fused(x, A, w_aug, *, t_tile=None, mxu_dtype=None,
                                  out_dtype=None):
    """Forward pass with pre-fused parameters (see fuse_ctg_params).

    x: (N, C_in, T, V);  A: (K, V, W);  w_aug: (C_out, C_in*V + 1, W)
    mxu_dtype:  optional narrower dtype (e.g. jnp.bfloat16) for the x operand.
                Recommended on v5e, v6e and v7x alike (all MXUs are natively bf16);
                the fused weight stays at its own (default f32) dtype for accuracy.
    out_dtype:  output dtype; defaults to mxu_dtype if set, else x.dtype.
    returns (out, A) with out: (N, C_out, T, W) — same semantics as the PyTorch module.
    """
    N, C_in, T, V = x.shape
    C_out, CVp, Wg = w_aug.shape
    assert CVp == C_in * V + 1
    assert A.shape[-1] == Wg

    x_dtype = x.dtype if mxu_dtype is None else mxu_dtype
    if out_dtype is None:
        out_dtype = x.dtype if mxu_dtype is None else mxu_dtype

    # ---- T tiling: aim for >= 2 T-tiles (keeps both v7x TensorCores busy even at
    #      N == 1), 8-row aligned, capped by a scoped-VMEM budget. ----
    if t_tile is None:
        t_tile = max(8, min(512, -(-((T + 1) // 2) // 8) * 8))

        def step_vmem(tt):
            return (2 * _vmem_block_bytes((tt, CVp), x_dtype)            # x, double-buffered
                    + 2 * _vmem_block_bytes((C_out, tt, Wg), out_dtype)  # out, double-buffered
                    + 1 * _vmem_block_bytes((C_out, CVp, Wg), w_aug.dtype))  # weight, 1 buffer

        while t_tile > 8 and step_vmem(t_tile) > (24 << 20):
            t_tile -= 8
    assert t_tile % 8 == 0 or t_tile == T

    n_t = pl.cdiv(T, t_tile)
    T_pad = n_t * t_tile

    # ---- one small wrapper-side layout op: (N, C_in, T, V) -> (N, T, C_in*V), append a
    #      ones column so the bias rides inside the matmul, pad T to a whole tile.
    #      (Output writes beyond the true T are clipped by Pallas.) ----
    x_flat = jnp.transpose(x, (0, 2, 1, 3)).reshape(N, T, C_in * V).astype(x_dtype)
    x_aug = jnp.concatenate([x_flat, jnp.ones((N, T, 1), x_dtype)], axis=-1)
    if T_pad != T:
        x_aug = jnp.pad(x_aug, ((0, 0), (0, T_pad - T), (0, 0)))

    out = pl.pallas_call(
        partial(_ctg_kernel, c_out=C_out),
        out_shape=jax.ShapeDtypeStruct((N, C_out, T, Wg), out_dtype),
        grid_spec=pltpu.PrefetchScalarGridSpec(
            num_scalar_prefetch=0,
            grid=(N, n_t),
            in_specs=[
                # x block in its flattened (T, C_in*V+1) layout.
                pl.BlockSpec((None, t_tile, CVp), lambda n, t: (n, t, 0)),
                # grid-invariant fused weight (single-buffered).
                _invariant_weight_spec((C_out, CVp, Wg)),
            ],
            # NCTW written directly: per-(n, c_out) chunks are contiguous in HBM.
            out_specs=pl.BlockSpec((None, C_out, t_tile, Wg),
                                   lambda n, t: (n, 0, t, 0)),
        ),
        compiler_params=pltpu.CompilerParams(
            dimension_semantics=("parallel", "parallel")),
    )(x_aug, w_aug)
    return out, A


def conv_temporal_graphical(x, A, weight, bias, *, kernel_size, out_channels,
                            param_dtype=jnp.float32, **kwargs):
    """Drop-in forward matching the PyTorch module.  Fuses the parameters on every call;
    prefer hoisting fuse_ctg_params (once per weight update) in a real training loop."""
    w_aug = fuse_ctg_params(A, weight, bias, kernel_size=kernel_size,
                            out_channels=out_channels, param_dtype=param_dtype)
    return conv_temporal_graphical_fused(x, A, w_aug, **kwargs)


def _reference(x, A, weight, bias, *, kernel_size, out_channels):
    """Pure-JAX reference mirroring the PyTorch forward."""
    N, C_in, T, V = x.shape
    K, C_out = kernel_size, out_channels
    y = jnp.einsum('nctv,oc->notv', x, weight) + bias[None, :, None, None]
    y = y.reshape(N, K, C_out, T, V)
    return jnp.einsum('nkctv,kvw->nctw', y, A)


if __name__ == "__main__":
    # Shapes matching the PyTorch spec: batch=2, channels=2, frames=300, joints=18.
    N, C_in, T, V = 2, 2, 300, 18
    C_out, K = 16, 3

    key = jax.random.PRNGKey(0)
    kx, ka, kw, kb = jax.random.split(key, 4)

    x = jax.random.normal(kx, (N, C_in, T, V), dtype=jnp.float32)
    A = jax.random.normal(ka, (K, V, V), dtype=jnp.float32)

    # Deterministic Conv2d(C_in, C_out*K, kernel_size=(1,1), bias=True) parameters.
    bound = 1.0 / np.sqrt(C_in)
    weight = jax.random.uniform(kw, (K * C_out, C_in), jnp.float32,
                                minval=-bound, maxval=bound)
    bias = jax.random.uniform(kb, (K * C_out,), jnp.float32,
                              minval=-bound, maxval=bound)

    ref = _reference(x, A, weight, bias, kernel_size=K, out_channels=C_out)

    # ---- f32 path: drop-in module semantics, tight tolerance vs pure-JAX reference ----
    out, A_out = conv_temporal_graphical(
        x, A, weight, bias, kernel_size=K, out_channels=C_out)
    out = jax.block_until_ready(out)
    assert out.shape == (N, C_out, T, V), out.shape
    np.testing.assert_allclose(np.asarray(out), np.asarray(ref),
                               rtol=1e-4, atol=1e-3)
    assert A_out.shape == A.shape

    # ---- hoisted fusion + bf16 MXU input + bf16 output (recommended on v5e/v6e/v7x);
    #      the fused weight stays f32 so A's dynamic range is not compounded. ----
    w_aug = fuse_ctg_params(A, weight, bias, kernel_size=K, out_channels=C_out)
    out_bf, _ = conv_temporal_graphical_fused(
        x, A, w_aug, mxu_dtype=jnp.bfloat16, out_dtype=jnp.bfloat16)
    out_bf = jax.block_until_ready(out_bf)
    assert out_bf.shape == out.shape and out_bf.dtype == jnp.bfloat16
    np.testing.assert_allclose(np.asarray(out_bf, dtype=np.float32),
                               np.asarray(ref), rtol=5e-2, atol=1e-1)

    print("KERNEL_OK")
</pallas_src>

<mosaic_0001>
module attributes {stable_mosaic.version = 11 : i64} {
  func.func @_ctg_kernel(%arg0: i32, %arg1: i32, %arg2: memref<1x152x37xf32, #tpu.memory_space<vmem>>, %arg3: memref<16x37x18xf32, #tpu.memory_space<vmem>>, %arg4: memref<1x16x152x18xf32, #tpu.memory_space<vmem>>) attributes {dimension_semantics = [#tpu.dimension_semantics<parallel>, #tpu.dimension_semantics<parallel>], iteration_bounds = array<i64: 2, 2>, scalar_prefetch = 0 : i64, scratch_operands = 0 : i64, tpu.core_type = #tpu.core_type<tc>, window_params = [{transform_indices = @transform_0, window_bounds = array<i64: 1, 152, 37>}, {pipeline_mode = #tpu.pipeline_mode<synchronous>, transform_indices = @transform_1, window_bounds = array<i64: 16, 37, 18>}, {transform_indices = @transform_2, window_bounds = array<i64: 1, 16, 152, 18>}]} {
    %c0 = arith.constant 0 : index
    %c0_0 = arith.constant 0 : index
    %c0_1 = arith.constant 0 : index
    %0 = vector.load %arg2[%c0, %c0_0, %c0_1] : memref<1x152x37xf32, #tpu.memory_space<vmem>>, vector<1x152x37xf32>
    %1 = vector.shape_cast %0 : vector<1x152x37xf32> to vector<152x37xf32>
    %c0_2 = arith.constant 0 : index
    %c0_3 = arith.constant 0 : index
    %c0_4 = arith.constant 0 : index
    %2 = vector.load %arg3[%c0_2, %c0_3, %c0_4] : memref<16x37x18xf32, #tpu.memory_space<vmem>>, vector<1x37x18xf32>
    %3 = vector.shape_cast %2 : vector<1x37x18xf32> to vector<37x18xf32>
    %cst = arith.constant dense<0.000000e+00> : vector<152x18xf32>
    %4 = tpu.matmul %1, %3, %cst {dimension_numbers = #tpu.dot_dimension_numbers<[1], [0], [0], [1], [0, 0, 1, 1], [], []>} : vector<152x37xf32>, vector<37x18xf32>, vector<152x18xf32> -> vector<152x18xf32>
    %c0_5 = arith.constant 0 : index
    %c0_6 = arith.constant 0 : index
    %c0_7 = arith.constant 0 : index
    %c0_8 = arith.constant 0 : index
    %5 = vector.load %arg4[%c0_5, %c0_6, %c0_7, %c0_8] : memref<1x16x152x18xf32, #tpu.memory_space<vmem>>, vector<1x1x152x18xf32>
    %6 = vector.shape_cast %5 : vector<1x1x152x18xf32> to vector<152x18xf32>
    %7 = vector.shape_cast %4 : vector<152x18xf32> to vector<1x1x152x18xf32>
    tpu.vector_store %arg4[%c0_5, %c0_6, %c0_7, %c0_8], %7 {strides = array<i32>} : memref<1x16x152x18xf32, #tpu.memory_space<vmem>>, vector<1x1x152x18xf32>,
    %c1 = arith.constant 1 : index
    %c0_9 = arith.constant 0 : index
    %c0_10 = arith.constant 0 : index
    %8 = vector.load %arg3[%c1, %c0_9, %c0_10] : memref<16x37x18xf32, #tpu.memory_space<vmem>>, vector<1x37x18xf32>
    %9 = vector.shape_cast %8 : vector<1x37x18xf32> to vector<37x18xf32>
    %cst_11 = arith.constant dense<0.000000e+00> : vector<152x18xf32>
    %10 = tpu.matmul %1, %9, %cst_11 {dimension_numbers = #tpu.dot_dimension_numbers<[1], [0], [0], [1], [0, 0, 1, 1], [], []>} : vector<152x37xf32>, vector<37x18xf32>, vector<152x18xf32> -> vector<152x18xf32>
    %c0_12 = arith.constant 0 : index
    %c1_13 = arith.constant 1 : index
    %c0_14 = arith.constant 0 : index
    %c0_15 = arith.constant 0 : index
    %11 = vector.load %arg4[%c0_12, %c1_13, %c0_14, %c0_15] : memref<1x16x152x18xf32, #tpu.memory_space<vmem>>, vector<1x1x152x18xf32>
    %12 = vector.shape_cast %11 : vector<1x1x152x18xf32> to vector<152x18xf32>
    %13 = vector.shape_cast %10 : vector<152x18xf32> to vector<1x1x152x18xf32>
    tpu.vector_store %arg4[%c0_12, %c1_13, %c0_14, %c0_15], %13 {strides = array<i32>} : memref<1x16x152x18xf32, #tpu.memory_space<vmem>>, vector<1x1x152x18xf32>,
    %c2 = arith.constant 2 : index
    %c0_16 = arith.constant 0 : index
    %c0_17 = arith.constant 0 : index
    %14 = vector.load %arg3[%c2, %c0_16, %c0_17] : memref<16x37x18xf32, #tpu.memory_space<vmem>>, vector<1x37x18xf32>
    %15 = vector.shape_cast %14 : vector<1x37x18xf32> to vector<37x18xf32>
    %cst_18 = arith.constant dense<0.000000e+00> : vector<152x18xf32>
    %16 = tpu.matmul %1, %15, %cst_18 {dimension_numbers = #tpu.dot_dimension_numbers<[1], [0], [0], [1], [0, 0, 1, 1], [], []>} : vector<152x37xf32>, vector<37x18xf32>, vector<152x18xf32> -> vector<152x18xf32>
    %c0_19 = arith.constant 0 : index
    %c2_20 = arith.constant 2 : index
    %c0_21 = arith.constant 0 : index
    %c0_22 = arith.constant 0 : index
    %17 = vector.load %arg4[%c0_19, %c2_20, %c0_21, %c0_22] : memref<1x16x152x18xf32, #tpu.memory_space<vmem>>, vector<1x1x152x18xf32>
    %18 = vector.shape_cast %17 : vector<1x1x152x18xf32> to vector<152x18xf32>
    %19 = vector.shape_cast %16 : vector<152x18xf32> to vector<1x1x152x18xf32>
    tpu.vector_store %arg4[%c0_19, %c2_20, %c0_21, %c0_22], %19 {strides = array<i32>} : memref<1x16x152x18xf32, #tpu.memory_space<vmem>>, vector<1x1x152x18xf32>,
    %c3 = arith.constant 3 : index
    %c0_23 = arith.constant 0 : index
    %c0_24 = arith.constant 0 : index
    %20 = vector.load %arg3[%c3, %c0_23, %c0_24] : memref<16x37x18xf32, #tpu.memory_space<vmem>>, vector<1x37x18xf32>
    %21 = vector.shape_cast %20 : vector<1x37x18xf32> to vector<37x18xf32>
    %cst_25 = arith.constant dense<0.000000e+00> : vector<152x18xf32>
    %22 = tpu.matmul %1, %21, %cst_25 {dimension_numbers = #tpu.dot_dimension_numbers<[1], [0], [0], [1], [0, 0, 1, 1], [], []>} : vector<152x37xf32>, vector<37x18xf32>, vector<152x18xf32> -> vector<152x18xf32>
    %c0_26 = arith.constant 0 : index
    %c3_27 = arith.constant 3 : index
    %c0_28 = arith.constant 0 : index
    %c0_29 = arith.constant 0 : index
    %23 = vector.load %arg4[%c0_26, %c3_27, %c0_28, %c0_29] : memref<1x16x152x18xf32, #tpu.memory_space<vmem>>, vector<1x1x152x18xf32>
    %24 = vector.shape_cast %23 : vector<1x1x152x18xf32> to vector<152x18xf32>
    %25 = vector.shape_cast %22 : vector<152x18xf32> to vector<1x1x152x18xf32>
    tpu.vector_store %arg4[%c0_26, %c3_27, %c0_28, %c0_29], %25 {strides = array<i32>} : memref<1x16x152x18xf32, #tpu.memory_space<vmem>>, vector<1x1x152x18xf32>,
    %c4 = arith.constant 4 : index
    %c0_30 = arith.constant 0 : index
    %c0_31 = arith.constant 0 : index
    %26 = vector.load %arg3[%c4, %c0_30, %c0_31] : memref<16x37x18xf32, #tpu.memory_space<vmem>>, vector<1x37x18xf32>
    %27 = vector.shape_cast %26 : vector<1x37x18xf32> to vector<37x18xf32>
    %cst_32 = arith.constant dense<0.000000e+00> : vector<152x18xf32>
    %28 = tpu.matmul %1, %27, %cst_32 {dimension_numbers = #tpu.dot_dimension_numbers<[1], [0], [0], [1], [0, 0, 1, 1], [], []>} : vector<152x37xf32>, vector<37x18xf32>, vector<152x18xf32> -> vector<152x18xf32>
    %c0_33 = arith.constant 0 : index
    %c4_34 = arith.constant 4 : index
    %c0_35 = arith.constant 0 : index
    %c0_36 = arith.constant 0 : index
    %29 = vector.load %arg4[%c0_33, %c4_34, %c0_35, %c0_36] : memref<1x16x152x18xf32, #tpu.memory_space<vmem>>, vector<1x1x152x18xf32>
    %30 = vector.shape_cast %29 : vector<1x1x152x18xf32> to vector<152x18xf32>
    %31 = vector.shape_cast %28 : vector<152x18xf32> to vector<1x1x152x18xf32>
    tpu.vector_store %arg4[%c0_33, %c4_34, %c0_35, %c0_36], %31 {strides = array<i32>} : memref<1x16x152x18xf32, #tpu.memory_space<vmem>>, vector<1x1x152x18xf32>,
    %c5 = arith.constant 5 : index
    %c0_37 = arith.constant 0 : index
    %c0_38 = arith.constant 0 : index
    %32 = vector.load %arg3[%c5, %c0_37, %c0_38] : memref<16x37x18xf32, #tpu.memory_space<vmem>>, vector<1x37x18xf32>
    %33 = vector.shape_cast %32 : vector<1x37x18xf32> to vector<37x18xf32>
    %cst_39 = arith.constant dense<0.000000e+00> : vector<152x18xf32>
    %34 = tpu.matmul %1, %33, %cst_39 {dimension_numbers = #tpu.dot_dimension_numbers<[1], [0], [0], [1], [0, 0, 1, 1], [], []>} : vector<152x37xf32>, vector<37x18xf32>, vector<152x18xf32> -> vector<152x18xf32>
    %c0_40 = arith.constant 0 : index
    %c5_41 = arith.constant 5 : index
    %c0_42 = arith.constant 0 : index
    %c0_43 = arith.constant 0 : index
    %35 = vector.load %arg4[%c0_40, %c5_41, %c0_42, %c0_43] : memref<1x16x152x18xf32, #tpu.memory_space<vmem>>, vector<1x1x152x18xf32>
    %36 = vector.shape_cast %35 : vector<1x1x152x18xf32> to vector<152x18xf32>
    %37 = vector.shape_cast %34 : vector<152x18xf32> to vector<1x1x152x18xf32>
    tpu.vector_store %arg4[%c0_40, %c5_41, %c0_42, %c0_43], %37 {strides = array<i32>} : memref<1x16x152x18xf32, #tpu.memory_space<vmem>>, vector<1x1x152x18xf32>,
    %c6 = arith.constant 6 : index
    %c0_44 = arith.constant 0 : index
    %c0_45 = arith.constant 0 : index
    %38 = vector.load %arg3[%c6, %c0_44, %c0_45] : memref<16x37x18xf32, #tpu.memory_space<vmem>>, vector<1x37x18xf32>
    %39 = vector.shape_cast %38 : vector<1x37x18xf32> to vector<37x18xf32>
    %cst_46 = arith.constant dense<0.000000e+00> : vector<152x18xf32>
    %40 = tpu.matmul %1, %39, %cst_46 {dimension_numbers = #tpu.dot_dimension_numbers<[1], [0], [0], [1], [0, 0, 1, 1], [], []>} : vector<152x37xf32>, vector<37x18xf32>, vector<152x18xf32> -> vector<152x18xf32>
    %c0_47 = arith.constant 0 : index
    %c6_48 = arith.constant 6 : index
    %c0_49 = arith.constant 0 : index
    %c0_50 = arith.constant 0 : index
    %41 = vector.load %arg4[%c0_47, %c6_48, %c0_49, %c0_50] : memref<1x16x152x18xf32, #tpu.memory_space<vmem>>, vector<1x1x152x18xf32>
    %42 = vector.shape_cast %41 : vector<1x1x152x18xf32> to vector<152x18xf32>
    %43 = vector.shape_cast %40 : vector<152x18xf32> to vector<1x1x152x18xf32>
    tpu.vector_store %arg4[%c0_47, %c6_48, %c0_49, %c0_50], %43 {strides = array<i32>} : memref<1x16x152x18xf32, #tpu.memory_space<vmem>>, vector<1x1x152x18xf32>,
    %c7 = arith.constant 7 : index
    %c0_51 = arith.constant 0 : index
    %c0_52 = arith.constant 0 : index
    %44 = vector.load %arg3[%c7, %c0_51, %c0_52] : memref<16x37x18xf32, #tpu.memory_space<vmem>>, vector<1x37x18xf32>
    %45 = vector.shape_cast %44 : vector<1x37x18xf32> to vector<37x18xf32>
    %cst_53 = arith.constant dense<0.000000e+00> : vector<152x18xf32>
    %46 = tpu.matmul %1, %45, %cst_53 {dimension_numbers = #tpu.dot_dimension_numbers<[1], [0], [0], [1], [0, 0, 1, 1], [], []>} : vector<152x37xf32>, vector<37x18xf32>, vector<152x18xf32> -> vector<152x18xf32>
    %c0_54 = arith.constant 0 : index
    %c7_55 = arith.constant 7 : index
    %c0_56 = arith.constant 0 : index
    %c0_57 = arith.constant 0 : index
    %47 = vector.load %arg4[%c0_54, %c7_55, %c0_56, %c0_57] : memref<1x16x152x18xf32, #tpu.memory_space<vmem>>, vector<1x1x152x18xf32>
    %48 = vector.shape_cast %47 : vector<1x1x152x18xf32> to vector<152x18xf32>
    %49 = vector.shape_cast %46 : vector<152x18xf32> to vector<1x1x152x18xf32>
    tpu.vector_store %arg4[%c0_54, %c7_55, %c0_56, %c0_57], %49 {strides = array<i32>} : memref<1x16x152x18xf32, #tpu.memory_space<vmem>>, vector<1x1x152x18xf32>,
    %c8 = arith.constant 8 : index
    %c0_58 = arith.constant 0 : index
    %c0_59 = arith.constant 0 : index
    %50 = vector.load %arg3[%c8, %c0_58, %c0_59] : memref<16x37x18xf32, #tpu.memory_space<vmem>>, vector<1x37x18xf32>
    %51 = vector.shape_cast %50 : vector<1x37x18xf32> to vector<37x18xf32>
    %cst_60 = arith.constant dense<0.000000e+00> : vector<152x18xf32>
    %52 = tpu.matmul %1, %51, %cst_60 {dimension_numbers = #tpu.dot_dimension_numbers<[1], [0], [0], [1], [0, 0, 1, 1], [], []>} : vector<152x37xf32>, vector<37x18xf32>, vector<152x18xf32> -> vector<152x18xf32>
    %c0_61 = arith.constant 0 : index
    %c8_62 = arith.constant 8 : index
    %c0_63 = arith.constant 0 : index
    %c0_64 = arith.constant 0 : index
    %53 = vector.load %arg4[%c0_61, %c8_62, %c0_63, %c0_64] : memref<1x16x152x18xf32, #tpu.memory_space<vmem>>, vector<1x1x152x18xf32>
    %54 = vector.shape_cast %53 : vector<1x1x152x18xf32> to vector<152x18xf32>
    %55 = vector.shape_cast %52 : vector<152x18xf32> to vector<1x1x152x18xf32>
    tpu.vector_store %arg4[%c0_61, %c8_62, %c0_63, %c0_64], %55 {strides = array<i32>} : memref<1x16x152x18xf32, #tpu.memory_space<vmem>>, vector<1x1x152x18xf32>,
    %c9 = arith.constant 9 : index
    %c0_65 = arith.constant 0 : index
    %c0_66 = arith.constant 0 : index
    %56 = vector.load %arg3[%c9, %c0_65, %c0_66] : memref<16x37x18xf32, #tpu.memory_space<vmem>>, vector<1x37x18xf32>
    %57 = vector.shape_cast %56 : vector<1x37x18xf32> to vector<37x18xf32>
    %cst_67 = arith.constant dense<0.000000e+00> : vector<152x18xf32>
    %58 = tpu.matmul %1, %57, %cst_67 {dimension_numbers = #tpu.dot_dimension_numbers<[1], [0], [0], [1], [0, 0, 1, 1], [], []>} : vector<152x37xf32>, vector<37x18xf32>, vector<152x18xf32> -> vector<152x18xf32>
    %c0_68 = arith.constant 0 : index
    %c9_69 = arith.constant 9 : index
    %c0_70 = arith.constant 0 : index
    %c0_71 = arith.constant 0 : index
    %59 = vector.load %arg4[%c0_68, %c9_69, %c0_70, %c0_71] : memref<1x16x152x18xf32, #tpu.memory_space<vmem>>, vector<1x1x152x18xf32>
    %60 = vector.shape_cast %59 : vector<1x1x152x18xf32> to vector<152x18xf32>
    %61 = vector.shape_cast %58 : vector<152x18xf32> to vector<1x1x152x18xf32>
    tpu.vector_store %arg4[%c0_68, %c9_69, %c0_70, %c0_71], %61 {strides = array<i32>} : memref<1x16x152x18xf32, #tpu.memory_space<vmem>>, vector<1x1x152x18xf32>,
    %c10 = arith.constant 10 : index
    %c0_72 = arith.constant 0 : index
    %c0_73 = arith.constant 0 : index
    %62 = vector.load %arg3[%c10, %c0_72, %c0_73] : memref<16x37x18xf32, #tpu.memory_space<vmem>>, vector<1x37x18xf32>
    %63 = vector.shape_cast %62 : vector<1x37x18xf32> to vector<37x18xf32>
    %cst_74 = arith.constant dense<0.000000e+00> : vector<152x18xf32>
    %64 = tpu.matmul %1, %63, %cst_74 {dimension_numbers = #tpu.dot_dimension_numbers<[1], [0], [0], [1], [0, 0, 1, 1], [], []>} : vector<152x37xf32>, vector<37x18xf32>, vector<152x18xf32> -> vector<152x18xf32>
    %c0_75 = arith.constant 0 : index
    %c10_76 = arith.constant 10 : index
    %c0_77 = arith.constant 0 : index
    %c0_78 = arith.constant 0 : index
    %65 = vector.load %arg4[%c0_75, %c10_76, %c0_77, %c0_78] : memref<1x16x152x18xf32, #tpu.memory_space<vmem>>, vector<1x1x152x18xf32>
    %66 = vector.shape_cast %65 : vector<1x1x152x18xf32> to vector<152x18xf32>
    %67 = vector.shape_cast %64 : vector<152x18xf32> to vector<1x1x152x18xf32>
    tpu.vector_store %arg4[%c0_75, %c10_76, %c0_77, %c0_78], %67 {strides = array<i32>} : memref<1x16x152x18xf32, #tpu.memory_space<vmem>>, vector<1x1x152x18xf32>,
    %c11 = arith.constant 11 : index
    %c0_79 = arith.constant 0 : index
    %c0_80 = arith.constant 0 : index
    %68 = vector.load %arg3[%c11, %c0_79, %c0_80] : memref<16x37x18xf32, #tpu.memory_space<vmem>>, vector<1x37x18xf32>
    %69 = vector.shape_cast %68 : vector<1x37x18xf32> to vector<37x18xf32>
    %cst_81 = arith.constant dense<0.000000e+00> : vector<152x18xf32>
    %70 = tpu.matmul %1, %69, %cst_81 {dimension_numbers = #tpu.dot_dimension_numbers<[1], [0], [0], [1], [0, 0, 1, 1], [], []>} : vector<152x37xf32>, vector<37x18xf32>, vector<152x18xf32> -> vector<152x18xf32>
    %c0_82 = arith.constant 0 : index
    %c11_83 = arith.constant 11 : index
    %c0_84 = arith.constant 0 : index
    %c0_85 = arith.constant 0 : index
    %71 = vector.load %arg4[%c0_82, %c11_83, %c0_84, %c0_85] : memref<1x16x152x18xf32, #tpu.memory_space<vmem>>, vector<1x1x152x18xf32>
    %72 = vector.shape_cast %71 : vector<1x1x152x18xf32> to vector<152x18xf32>
    %73 = vector.shape_cast %70 : vector<152x18xf32> to vector<1x1x152x18xf32>
    tpu.vector_store %arg4[%c0_82, %c11_83, %c0_84, %c0_85], %73 {strides = array<i32>} : memref<1x16x152x18xf32, #tpu.memory_space<vmem>>, vector<1x1x152x18xf32>,
    %c12 = arith.constant 12 : index
    %c0_86 = arith.constant 0 : index
    %c0_87 = arith.constant 0 : index
    %74 = vector.load %arg3[%c12, %c0_86, %c0_87] : memref<16x37x18xf32, #tpu.memory_space<vmem>>, vector<1x37x18xf32>
    %75 = vector.shape_cast %74 : vector<1x37x18xf32> to vector<37x18xf32>
    %cst_88 = arith.constant dense<0.000000e+00> : vector<152x18xf32>
    %76 = tpu.matmul %1, %75, %cst_88 {dimension_numbers = #tpu.dot_dimension_numbers<[1], [0], [0], [1], [0, 0, 1, 1], [], []>} : vector<152x37xf32>, vector<37x18xf32>, vector<152x18xf32> -> vector<152x18xf32>
    %c0_89 = arith.constant 0 : index
    %c12_90 = arith.constant 12 : index
    %c0_91 = arith.constant 0 : index
    %c0_92 = arith.constant 0 : index
    %77 = vector.load %arg4[%c0_89, %c12_90, %c0_91, %c0_92] : memref<1x16x152x18xf32, #tpu.memory_space<vmem>>, vector<1x1x152x18xf32>
    %78 = vector.shape_cast %77 : vector<1x1x152x18xf32> to vector<152x18xf32>
    %79 = vector.shape_cast %76 : vector<152x18xf32> to vector<1x1x152x18xf32>
    tpu.vector_store %arg4[%c0_89, %c12_90, %c0_91, %c0_92], %79 {strides = array<i32>} : memref<1x16x152x18xf32, #tpu.memory_space<vmem>>, vector<1x1x152x18xf32>,
    %c13 = arith.constant 13 : index
    %c0_93 = arith.constant 0 : index
    %c0_94 = arith.constant 0 : index
    %80 = vector.load %arg3[%c13, %c0_93, %c0_94] : memref<16x37x18xf32, #tpu.memory_space<vmem>>, vector<1x37x18xf32>
    %81 = vector.shape_cast %80 : vector<1x37x18xf32> to vector<37x18xf32>
    %cst_95 = arith.constant dense<0.000000e+00> : vector<152x18xf32>
    %82 = tpu.matmul %1, %81, %cst_95 {dimension_numbers = #tpu.dot_dimension_numbers<[1], [0], [0], [1], [0, 0, 1, 1], [], []>} : vector<152x37xf32>, vector<37x18xf32>, vector<152x18xf32> -> vector<152x18xf32>
    %c0_96 = arith.constant 0 : index
    %c13_97 = arith.constant 13 : index
    %c0_98 = arith.constant 0 : index
    %c0_99 = arith.constant 0 : index
    %83 = vector.load %arg4[%c0_96, %c13_97, %c0_98, %c0_99] : memref<1x16x152x18xf32, #tpu.memory_space<vmem>>, vector<1x1x152x18xf32>
    %84 = vector.shape_cast %83 : vector<1x1x152x18xf32> to vector<152x18xf32>
    %85 = vector.shape_cast %82 : vector<152x18xf32> to vector<1x1x152x18xf32>
    tpu.vector_store %arg4[%c0_96, %c13_97, %c0_98, %c0_99], %85 {strides = array<i32>} : memref<1x16x152x18xf32, #tpu.memory_space<vmem>>, vector<1x1x152x18xf32>,
    %c14 = arith.constant 14 : index
    %c0_100 = arith.constant 0 : index
    %c0_101 = arith.constant 0 : index
    %86 = vector.load %arg3[%c14, %c0_100, %c0_101] : memref<16x37x18xf32, #tpu.memory_space<vmem>>, vector<1x37x18xf32>
    %87 = vector.shape_cast %86 : vector<1x37x18xf32> to vector<37x18xf32>
    %cst_102 = arith.constant dense<0.000000e+00> : vector<152x18xf32>
    %88 = tpu.matmul %1, %87, %cst_102 {dimension_numbers = #tpu.dot_dimension_numbers<[1], [0], [0], [1], [0, 0, 1, 1], [], []>} : vector<152x37xf32>, vector<37x18xf32>, vector<152x18xf32> -> vector<152x18xf32>
    %c0_103 = arith.constant 0 : index
    %c14_104 = arith.constant 14 : index
    %c0_105 = arith.constant 0 : index
    %c0_106 = arith.constant 0 : index
    %89 = vector.load %arg4[%c0_103, %c14_104, %c0_105, %c0_106] : memref<1x16x152x18xf32, #tpu.memory_space<vmem>>, vector<1x1x152x18xf32>
    %90 = vector.shape_cast %89 : vector<1x1x152x18xf32> to vector<152x18xf32>
    %91 = vector.shape_cast %88 : vector<152x18xf32> to vector<1x1x152x18xf32>
    tpu.vector_store %arg4[%c0_103, %c14_104, %c0_105, %c0_106], %91 {strides = array<i32>} : memref<1x16x152x18xf32, #tpu.memory_space<vmem>>, vector<1x1x152x18xf32>,
    %c15 = arith.constant 15 : index
    %c0_107 = arith.constant 0 : index
    %c0_108 = arith.constant 0 : index
    %92 = vector.load %arg3[%c15, %c0_107, %c0_108] : memref<16x37x18xf32, #tpu.memory_space<vmem>>, vector<1x37x18xf32>
    %93 = vector.shape_cast %92 : vector<1x37x18xf32> to vector<37x18xf32>
    %cst_109 = arith.constant dense<0.000000e+00> : vector<152x18xf32>
    %94 = tpu.matmul %1, %93, %cst_109 {dimension_numbers = #tpu.dot_dimension_numbers<[1], [0], [0], [1], [0, 0, 1, 1], [], []>} : vector<152x37xf32>, vector<37x18xf32>, vector<152x18xf32> -> vector<152x18xf32>
    %c0_110 = arith.constant 0 : index
    %c15_111 = arith.constant 15 : index
    %c0_112 = arith.constant 0 : index
    %c0_113 = arith.constant 0 : index
    %95 = vector.load %arg4[%c0_110, %c15_111, %c0_112, %c0_113] : memref<1x16x152x18xf32, #tpu.memory_space<vmem>>, vector<1x1x152x18xf32>
    %96 = vector.shape_cast %95 : vector<1x1x152x18xf32> to vector<152x18xf32>
    %97 = vector.shape_cast %94 : vector<152x18xf32> to vector<1x1x152x18xf32>
    tpu.vector_store %arg4[%c0_110, %c15_111, %c0_112, %c0_113], %97 {strides = array<i32>} : memref<1x16x152x18xf32, #tpu.memory_space<vmem>>, vector<1x1x152x18xf32>,
    return
  }
  func.func @transform_0(%arg0: i32, %arg1: i32) -> (i32, i32, i32) {
    %c0_i32 = arith.constant 0 : i32
    %c0_i32_0 = arith.constant 0 : i32
    return %arg0, %arg1, %c0_i32 : i32, i32, i32
  }
  func.func @transform_1(%arg0: i32, %arg1: i32) -> (i32, i32, i32) {
    %c0_i32 = arith.constant 0 : i32
    %c0_i32_0 = arith.constant 0 : i32
    %c0_i32_1 = arith.constant 0 : i32
    %c0_i32_2 = arith.constant 0 : i32
    return %c0_i32, %c0_i32_0, %c0_i32_1 : i32, i32, i32
  }
  func.func @transform_2(%arg0: i32, %arg1: i32) -> (i32, i32, i32, i32) {
    %c0_i32 = arith.constant 0 : i32
    %c0_i32_0 = arith.constant 0 : i32
    %c0_i32_1 = arith.constant 0 : i32
    return %arg0, %c0_i32, %arg1, %c0_i32_0 : i32, i32, i32, i32
  }
}

</mosaic_0001>

<llo_original>
// kernel: tpu_custom_call.1
$region0: #{tpu_custom_call.1}
  #allocation0 [shape = 'u32[]', space=smem, size = 0x4, offset = 0x4, fixed_abs, tag = 'smem constant byte address 0x4 - core index']
  #allocation1 [shape = 'u32[144,128]{1,0:T(1,128)}', space=vmem, size = 0x12000, scoped, tag = 'internal scratch']
  %s0 = inlined_call_operand.vmem [shape: f32[2,304,37], index: 0, kind: input, shape index: {}]
  %s1 = inlined_call_operand.vmem [shape: f32[16,37,18], index: 1, kind: input, shape index: {}]
  %s2 = inlined_call_operand.vmem [shape: f32[2,16,300,18], index: 2, kind: output, shape index: {}]
  %s3 = sld [smem:[#allocation0]]
  $region75: #{tpu_custom_call.1} parent=0
    _
  %s5 = ssub.s32 1, %s3
  %s6 = scalar_select 0, %s5, %s3
  $region1: #{tpu_custom_call.1} parent=0
    #allocation2 [shape = 'u8[2490368]{0}', space=vmem, size = 0x260000, scoped, tag = 'output window, operand 0']
    loop: start=0, step=1, limit=6
    $region2: #{tpu_custom_call.1} parent=1 // loop_pre_header
      _
    $region3: #{tpu_custom_call.1} parent=1 // loop_header
      %s8 = sphi 0, %s12
      %p9 = scmp.ge.s32.totalorder %s8, 6
      %s15 = sphi 0, %s27
      %s16 = sphi 0, %s23
      %s17 = sphi 0, %s15
      %s18 = sphi 0, %s16
      %s19 = sphi 0, %s17
      %s20 = sphi 0, %s18
      %s32 = sphi 0, %s34
      %s35 = sphi 0, %s32
      %s36 = sphi 0, %s35
      %s52 = sphi 0, %s36
      %s56 = sphi 0, %s56
      %s58 = sphi 0, %s56
      %s59 = sphi 0, %s58
      %s73 = sphi 0, %s59
      %s81 = sphi 0, %s83
      %s84 = sphi 0, %s81
      %s85 = sphi 0, %s84
      %s101 = sphi 0, %s85
    $region4: #{tpu_custom_call.1} parent=1 // loop_header_branch
      %11 = sbr.rel (%p9) target = $region8
    $region5: #{tpu_custom_call.1} parent=1 // loop_body
      %s13 = ssub.s32 %s8, 1
      %s14 = ssub.s32 %s8, 2
      %s21 = sadd.s32 1, %s16
      %p22 = scmp.ge.s32.totalorder %s21, 2
      %s23 = scalar_select %p22, 0, %s21
      %s24 = sadd.s32 1, %s15
      %s25 = scalar_select %p22, %s24, %s15
      %p26 = scmp.ge.s32.totalorder %s25, 2
      %s27 = scalar_select %p26, 0, %s25
      %s28 = ssub.s32 %s15, %s27
      %s29 = ssub.s32 %s16, %s23
      %s30 = sor.u32 %s28, %s29
      %p31 = scmp.eq.s32.totalorder %s30, 0
      %s33 = sadd.s32 %s32, 1
      %s34 = scalar_select %p31, %s32, %s33
      %p37 = pneg %p31
      %p38 = scmp.eq.s32.totalorder %s8, 3
      %p39 = por %p37, %p38
      %p40 = scmp.ne.s32.totalorder %s32, %s35
      %p41 = scmp.eq.s32.totalorder %s8, 0
      %p42 = por %p40, %p41
      %p43 = scmp.ne.s32.totalorder %s32, %s35
      %p44 = scmp.eq.s32.totalorder %s13, 3
      %p45 = por %p43, %p44
      %p46 = scmp.ne.s32.totalorder %s35, %s36
      %p47 = scmp.eq.s32.totalorder %s13, 0
      %p48 = por %p46, %p47
      %p49 = scmp.ne.s32.totalorder %s35, %s36
      %p50 = scmp.eq.s32.totalorder %s14, 3
      %p51 = por %p49, %p50
      %p53 = scmp.ne.s32.totalorder %s36, %s52
      %p54 = scmp.eq.s32.totalorder %s14, 0
      %p55 = por %p53, %p54
      %s57 = sadd.s32 %s56, 1
      %p60 = scmp.eq.s32.totalorder %s8, 3
      %p61 = scmp.ne.s32.totalorder %s56, %s58
      %p62 = scmp.eq.s32.totalorder %s8, 0
      %p63 = por %p61, %p62
      %p64 = scmp.ne.s32.totalorder %s56, %s58
      %p65 = scmp.eq.s32.totalorder %s13, 3
      %p66 = por %p64, %p65
      %p67 = scmp.ne.s32.totalorder %s58, %s59
      %p68 = scmp.eq.s32.totalorder %s13, 0
      %p69 = por %p67, %p68
      %p70 = scmp.ne.s32.totalorder %s58, %s59
      %p71 = scmp.eq.s32.totalorder %s14, 3
      %p72 = por %p70, %p71
      %p74 = scmp.ne.s32.totalorder %s59, %s73
      %p75 = scmp.eq.s32.totalorder %s14, 0
      %p76 = por %p74, %p75
      %s77 = ssub.s32 %s15, %s27
      %s78 = ssub.s32 %s16, %s23
      %s79 = sor.u32 %s77, %s78
      %p80 = scmp.eq.s32.totalorder %s79, 0
      %s82 = sadd.s32 %s81, 1
      %s83 = scalar_select %p80, %s81, %s82
      %p86 = pneg %p80
      %p87 = scmp.eq.s32.totalorder %s8, 3
      %p88 = por %p86, %p87
      %p89 = scmp.ne.s32.totalorder %s81, %s84
      %p90 = scmp.eq.s32.totalorder %s8, 0
      %p91 = por %p89, %p90
      %p92 = scmp.ne.s32.totalorder %s81, %s84
      %p93 = scmp.eq.s32.totalorder %s13, 3
      %p94 = por %p92, %p93
      %p95 = scmp.ne.s32.totalorder %s84, %s85
      %p96 = scmp.eq.s32.totalorder %s13, 0
      %p97 = por %p95, %p96
      %p98 = scmp.ne.s32.totalorder %s84, %s85
      %p99 = scmp.eq.s32.totalorder %s14, 3
      %p100 = por %p98, %p99
      %p102 = scmp.ne.s32.totalorder %s85, %s101
      %p103 = scmp.eq.s32.totalorder %s14, 0
      %p104 = por %p102, %p103
      %p105 = scmp.le.s32.totalorder 1, %s8
      %p106 = scmp.lt.s32.totalorder %s8, 5
      %p107 = pnand %p105, %p106
      %p108 = pneg %p107
      // Predicated region
      $region9: #{tpu_custom_call.1} parent=5 // pred_check
        _
      $region10: #{tpu_custom_call.1} parent=5 // pred_check_branch
        %110 = sbr.rel (%p107) target = $region12
      $region11: #{tpu_custom_call.1} parent=5 // pred_region
        %s111 = ssub.s32 %s8, 1
        // Predicated region
        $region13: #{tpu_custom_call.1} parent=11 // pred_check
          %p112 = pneg %p69
        $region14: #{tpu_custom_call.1} parent=11 // pred_check_branch
          %114 = sbr.rel (%p112) target = $region16
        $region15: #{tpu_custom_call.1} parent=11 // pred_region
          _
        $region16: #{tpu_custom_call.1} parent=11 // pred_fallthru
          _
      $region12: #{tpu_custom_call.1} parent=5 // pred_fallthru
        _
      %p115 = scmp.lt.s32.totalorder %s8, 4
      // Predicated region
      $region17: #{tpu_custom_call.1} parent=5 // pred_check
        %p116 = pneg %p115
      $region18: #{tpu_custom_call.1} parent=5 // pred_check_branch
        %118 = sbr.rel (%p116) target = $region20
      $region19: #{tpu_custom_call.1} parent=5 // pred_region
        // Predicated region
        $region21: #{tpu_custom_call.1} parent=19 // pred_check
          %p119 = pneg %p42
        $region22: #{tpu_custom_call.1} parent=19 // pred_check_branch
          %121 = sbr.rel (%p119) target = $region24
        $region23: #{tpu_custom_call.1} parent=19 // pred_region
          %s122 = smul.u32 19, %s16
          %p123 = scmp.lt.s32.totalorder %s15, 1
          %s124 = scalar_select %p123, %s15, 1
          %p125 = scmp.lt.s32.totalorder %s122, 37
          %s126 = scalar_select %p125, %s122, 37
          %s127 = smul.addr %s124, 38
          %s128 = sadd.s32 %s126, %s127
          %s129 = smul.addr %s128, 8
          %s130 = scalar_lea.vmem %s0, %s129
          %s131 = smul.u32 19, %s16
        $region24: #{tpu_custom_call.1} parent=19 // pred_fallthru
          _
      $region20: #{tpu_custom_call.1} parent=5 // pred_fallthru
        _
      %p132 = scmp.le.s32.totalorder 1, %s8
      %p133 = scmp.lt.s32.totalorder %s8, 5
      %p134 = pnand %p132, %p133
      %p135 = pneg %p134
      // Predicated region
      $region25: #{tpu_custom_call.1} parent=5 // pred_check
        _
      $region26: #{tpu_custom_call.1} parent=5 // pred_check_branch
        %137 = sbr.rel (%p134) target = $region28
      $region27: #{tpu_custom_call.1} parent=5 // pred_region
        %s138 = ssub.s32 %s8, 1
        %s139 = smul.u32 19, %s18
        %p140 = scmp.lt.s32.totalorder %s17, 1
        %s141 = scalar_select %p140, %s17, 1
        %p142 = scmp.lt.s32.totalorder %s139, 37
        %s143 = scalar_select %p142, %s139, 37
        %s144 = smul.addr %s141, 38
        %s145 = sadd.s32 %s143, %s144
        %s146 = smul.addr %s145, 8
        %s147 = scalar_lea.vmem %s0, %s146
        %p148 = pneg %p48
        %p149 = pneg %p45
        %p150 = pneg %p69
        %p151 = pneg %p66
        %p152 = pneg %p97
        %p153 = pneg %p94
        %s154 = sand.u32 %s84, 1
        %s155 = sand.u32 %s84, 1
        %s156 = smul.addr %s155, 2432
        %s157 = scalar_lea.vmem [#allocation2], %s156
        %s158 = smul.u32 19, %s18
        %p159 = scmp.lt.s32.totalorder %s17, 1
        %s160 = scalar_select %p159, %s17, 1
        %p161 = scmp.lt.s32.totalorder %s158, 37
        %s162 = scalar_select %p161, %s158, 37
        %s163 = smul.addr %s160, 38
        %s164 = sadd.s32 %s162, %s163
        %s165 = smul.addr %s164, 8
        %s166 = scalar_lea.vmem %s0, %s165
        %s167 = smul.u32 19, %s18
        %s168 = smul.u32 19, %s18
        %v169 = vld [vmem:[%s166] sm:$0xff]
        %v170 = vld [vmem:[%s166 + $0x8] sm:$0xff]
        %v171 = vld [vmem:[%s166 + $0x10] sm:$0xff]
        %v172 = vld [vmem:[%s166 + $0x18] sm:$0xff]
        %v173 = vld [vmem:[%s166 + $0x20] sm:$0xff]
        %v174 = vld [vmem:[%s166 + $0x28] sm:$0xff]
        %v175 = vld [vmem:[%s166 + $0x30] sm:$0xff]
        %v176 = vld [vmem:[%s166 + $0x38] sm:$0xff]
        %v177 = vld [vmem:[%s166 + $0x40] sm:$0xff]
        %v178 = vld [vmem:[%s166 + $0x48] sm:$0xff]
        %v179 = vld [vmem:[%s166 + $0x50] sm:$0xff]
        %v180 = vld [vmem:[%s166 + $0x58] sm:$0xff]
        %v181 = vld [vmem:[%s166 + $0x60] sm:$0xff]
        %v182 = vld [vmem:[%s166 + $0x68] sm:$0xff]
        %v183 = vld [vmem:[%s166 + $0x70] sm:$0xff]
        %v184 = vld [vmem:[%s166 + $0x78] sm:$0xff]
        %v185 = vld [vmem:[%s166 + $0x80] sm:$0xff]
        %v186 = vld [vmem:[%s166 + $0x88] sm:$0xff]
        %v187 = vld [vmem:[%s166 + $0x90] sm:$0xff]
        %v188 = vld [vmem:[%s1] sm:$0xff]
        %v189 = vld [vmem:[%s1 + $0x8] sm:$0xff]
        %v190 = vld [vmem:[%s1 + $0x10] sm:$0xff]
        %v191 = vld [vmem:[%s1 + $0x18] sm:$0xff]
        %v192 = vld [vmem:[%s1 + $0x20] sm:$0x1f]
        %vm193 = vcmask 302080
        %v195 = vsel %vm193, %v169, 0
        %v198 = vsel %vm193, %v170, 0
        %v201 = vsel %vm193, %v171, 0
        %v204 = vsel %vm193, %v172, 0
        %v207 = vsel %vm193, %v173, 0
        %v210 = vsel %vm193, %v174, 0
        %v213 = vsel %vm193, %v175, 0
        %v216 = vsel %vm193, %v176, 0
        %v219 = vsel %vm193, %v177, 0
        %v222 = vsel %vm193, %v178, 0
        %v225 = vsel %vm193, %v179, 0
        %v228 = vsel %vm193, %v180, 0
        %v231 = vsel %vm193, %v181, 0
        %v234 = vsel %vm193, %v182, 0
        %v237 = vsel %vm193, %v183, 0
        %v240 = vsel %vm193, %v184, 0
        %v243 = vsel %vm193, %v185, 0
        %v246 = vsel %vm193, %v186, 0
        %v249 = vsel %vm193, %v187, 0
        %vm251 = vcmask 1044480
        %v253 = vsel %vm251, %v192, 0
        %255 = vmatprep.subr.mxu0 0.0
        %256 = vmatpush1.msra.mxu0 0.0
        %257 = vmatprep.subr.mxu0 0.0
        %258 = vmatpush1.msra.mxu0 0.0
        %259 = vmatprep.subr.mxu0 0.0
        %260 = vmatpush1.msra.mxu0 0.0
        %261 = vmatprep.subr.mxu0 0.0
        %262 = vmatpush1.msra.mxu0 0.0
        %263 = vmatprep.subr.mxu0 0.0
        %264 = vmatpush1.msra.mxu0 0.0
        %265 = vmatprep.subr.mxu0 0.0
        %266 = vmatpush1.msra.mxu0 0.0
        %267 = vmatprep.subr.mxu0 0.0
        %268 = vmatpush1.msra.mxu0 0.0
        %269 = vmatprep.subr.mxu0 0.0
        %270 = vmatpush1.msra.mxu0 0.0
        %271 = vmatprep.subr.mxu0 0.0
        %272 = vmatpush1.msra.mxu0 0.0
        %273 = vmatprep.subr.mxu0 0.0
        %274 = vmatpush1.msra.mxu0 0.0
        %275 = vmatprep.subr.mxu0 0.0
        %276 = vmatpush1.msra.mxu0 0.0
        %277 = vmatprep.subr.mxu0 0.0
        %278 = vmatpush1.msra.mxu0 %v253
        %279 = vmatprep.subr.mxu0 0.0
        %280 = vmatpush1.msra.mxu0 %v191
        %281 = vmatprep.subr.mxu0 0.0
        %282 = vmatpush1.msra.mxu0 %v190
        %283 = vmatprep.subr.mxu0 0.0
        %284 = vmatpush1.msra.mxu0 %v189
        %285 = vmatprep.subr.mxu0 0.0
        %286 = vmatpush1.msra.mxu0 %v188
        %287 = vmatprep.subr.mxu0 0.0
        %288 = vmatpush2.msra.mxu0 0.0
        %289 = vmatprep.subr.mxu0 0.0
        %290 = vmatpush2.msra.mxu0 0.0
        %291 = vmatprep.subr.mxu0 0.0
        %292 = vmatpush2.msra.mxu0 0.0
        %293 = vmatprep.subr.mxu0 0.0
        %294 = vmatpush2.msra.mxu0 0.0
        %295 = vmatprep.subr.mxu0 0.0
        %296 = vmatpush2.msra.mxu0 0.0
        %297 = vmatprep.subr.mxu0 0.0
        %298 = vmatpush2.msra.mxu0 0.0
        %299 = vmatprep.subr.mxu0 0.0
        %300 = vmatpush2.msra.mxu0 0.0
        %301 = vmatprep.subr.mxu0 0.0
        %302 = vmatpush2.msra.mxu0 0.0
        %303 = vmatprep.subr.mxu0 0.0
        %304 = vmatpush2.msra.mxu0 0.0
        %305 = vmatprep.subr.mxu0 0.0
        %306 = vmatpush2.msra.mxu0 0.0
        %307 = vmatprep.subr.mxu0 0.0
        %308 = vmatpush2.msra.mxu0 0.0
        %309 = vmatprep.subr.mxu0 0.0
        %310 = vmatpush2.msra.mxu0 0.0
        %311 = vmatprep.subr.mxu0 0.0
        %312 = vmatpush2.msra.mxu0 0.0
        %313 = vmatprep.subr.mxu0 0.0
        %314 = vmatpush2.msra.mxu0 0.0
        %315 = vmatprep.subr.mxu0 0.0
        %316 = vmatpush2.msra.mxu0 0.0
        %317 = vmatprep.subr.mxu0 0.0
        %318 = vmatpush2.msra.mxu0 0.0
        %319 = vmatprep.mubr.f32.mxu0 0.0
        %320 = vmatmul.mubr.f32.gmra.mxu0 %v195
        %v321 = vpop.f32.mrf.mxu0
        %v322 = vadd.f32 0.0, %v321
        %v323 = vpop.f32.mrf.mxu0
        %324 = vmatprep.mubr.f32.mxu0 0.0
        %325 = vmatmul.mubr.f32.gmra.mxu0 %v198
        %v326 = vpop.f32.mrf.mxu0
        %v327 = vadd.f32 0.0, %v326
        %v328 = vpop.f32.mrf.mxu0
        %329 = vmatprep.mubr.f32.mxu0 0.0
        %330 = vmatmul.mubr.f32.gmra.mxu0 %v201
        %v331 = vpop.f32.mrf.mxu0
        %v332 = vadd.f32 0.0, %v331
        %v333 = vpop.f32.mrf.mxu0
        %334 = vmatprep.mubr.f32.mxu0 0.0
        %335 = vmatmul.mubr.f32.gmra.mxu0 %v204
        %v336 = vpop.f32.mrf.mxu0
        %v337 = vadd.f32 0.0, %v336
        %v338 = vpop.f32.mrf.mxu0
        %339 = vmatprep.mubr.f32.mxu0 0.0
        %340 = vmatmul.mubr.f32.gmra.mxu0 %v207
        %v341 = vpop.f32.mrf.mxu0
        %v342 = vadd.f32 0.0, %v341
        %v343 = vpop.f32.mrf.mxu0
        %344 = vmatprep.mubr.f32.mxu0 0.0
        %345 = vmatmul.mubr.f32.gmra.mxu0 %v210
        %v346 = vpop.f32.mrf.mxu0
        %v347 = vadd.f32 0.0, %v346
        %v348 = vpop.f32.mrf.mxu0
        %349 = vmatprep.mubr.f32.mxu0 0.0
        %350 = vmatmul.mubr.f32.gmra.mxu0 %v213
        %v351 = vpop.f32.mrf.mxu0
        %v352 = vadd.f32 0.0, %v351
        %v353 = vpop.f32.mrf.mxu0
        %354 = vmatprep.mubr.f32.mxu0 0.0
        %355 = vmatmul.mubr.f32.gmra.mxu0 %v216
        %v356 = vpop.f32.mrf.mxu0
        %v357 = vadd.f32 0.0, %v356
        %v358 = vpop.f32.mrf.mxu0
        %359 = vmatprep.mubr.f32.mxu0 0.0
        %360 = vmatmul.mubr.f32.gmra.mxu0 %v219
        %v361 = vpop.f32.mrf.mxu0
        %v362 = vadd.f32 0.0, %v361
        %v363 = vpop.f32.mrf.mxu0
        %364 = vmatprep.mubr.f32.mxu0 0.0
        %365 = vmatmul.mubr.f32.gmra.mxu0 %v222
        %v366 = vpop.f32.mrf.mxu0
        %v367 = vadd.f32 0.0, %v366
        %v368 = vpop.f32.mrf.mxu0
        %369 = vmatprep.mubr.f32.mxu0 0.0
        %370 = vmatmul.mubr.f32.gmra.mxu0 %v225
        %v371 = vpop.f32.mrf.mxu0
        %v372 = vadd.f32 0.0, %v371
        %v373 = vpop.f32.mrf.mxu0
        %374 = vmatprep.mubr.f32.mxu0 0.0
        %375 = vmatmul.mubr.f32.gmra.mxu0 %v228
        %v376 = vpop.f32.mrf.mxu0
        %v377 = vadd.f32 0.0, %v376
        %v378 = vpop.f32.mrf.mxu0
        %379 = vmatprep.mubr.f32.mxu0 0.0
        %380 = vmatmul.mubr.f32.gmra.mxu0 %v231
        %v381 = vpop.f32.mrf.mxu0
        %v382 = vadd.f32 0.0, %v381
        %v383 = vpop.f32.mrf.mxu0
        %384 = vmatprep.mubr.f32.mxu0 0.0
        %385 = vmatmul.mubr.f32.gmra.mxu0 %v234
        %v386 = vpop.f32.mrf.mxu0
        %v387 = vadd.f32 0.0, %v386
        %v388 = vpop.f32.mrf.mxu0
        %389 = vmatprep.mubr.f32.mxu0 0.0
        %390 = vmatmul.mubr.f32.gmra.mxu0 %v237
        %v391 = vpop.f32.mrf.mxu0
        %v392 = vadd.f32 0.0, %v391
        %v393 = vpop.f32.mrf.mxu0
        %394 = vmatprep.mubr.f32.mxu0 0.0
        %395 = vmatmul.mubr.f32.gmra.mxu0 %v240
        %v396 = vpop.f32.mrf.mxu0
        %v397 = vadd.f32 0.0, %v396
        %v398 = vpop.f32.mrf.mxu0
        %399 = vmatprep.mubr.f32.mxu0 0.0
        %400 = vmatmul.mubr.f32.gmra.mxu0 %v243
        %v401 = vpop.f32.mrf.mxu0
        %v402 = vadd.f32 0.0, %v401
        %v403 = vpop.f32.mrf.mxu0
        %404 = vmatprep.mubr.f32.mxu0 0.0
        %405 = vmatmul.mubr.f32.gmra.mxu0 %v246
        %v406 = vpop.f32.mrf.mxu0
        %v407 = vadd.f32 0.0, %v406
        %v408 = vpop.f32.mrf.mxu0
        %409 = vmatprep.mubr.f32.mxu0 0.0
        %410 = vmatmul.mubr.f32.gmra.mxu0 %v249
        %v411 = vpop.f32.mrf.mxu0
        %v412 = vadd.f32 0.0, %v411
        %v413 = vpop.f32.mrf.mxu0
        %414 = vdwg.mxu0
        %vm415 = vcmask 146432
        %416 = vst.msk [vmem:[%s157] sm:$0xff] %vm415, %v322
        %417 = vst.msk [vmem:[%s157 + $0x8] sm:$0xff] %vm415, %v327
        %418 = vst.msk [vmem:[%s157 + $0x10] sm:$0xff] %vm415, %v332
        %419 = vst.msk [vmem:[%s157 + $0x18] sm:$0xff] %vm415, %v337
        %420 = vst.msk [vmem:[%s157 + $0x20] sm:$0xff] %vm415, %v342
        %421 = vst.msk [vmem:[%s157 + $0x28] sm:$0xff] %vm415, %v347
        %422 = vst.msk [vmem:[%s157 + $0x30] sm:$0xff] %vm415, %v352
        %423 = vst.msk [vmem:[%s157 + $0x38] sm:$0xff] %vm415, %v357
        %424 = vst.msk [vmem:[%s157 + $0x40] sm:$0xff] %vm415, %v362
        %425 = vst.msk [vmem:[%s157 + $0x48] sm:$0xff] %vm415, %v367
        %426 = vst.msk [vmem:[%s157 + $0x50] sm:$0xff] %vm415, %v372
        %427 = vst.msk [vmem:[%s157 + $0x58] sm:$0xff] %vm415, %v377
        %428 = vst.msk [vmem:[%s157 + $0x60] sm:$0xff] %vm415, %v382
        %429 = vst.msk [vmem:[%s157 + $0x68] sm:$0xff] %vm415, %v387
        %430 = vst.msk [vmem:[%s157 + $0x70] sm:$0xff] %vm415, %v392
        %431 = vst.msk [vmem:[%s157 + $0x78] sm:$0xff] %vm415, %v397
        %432 = vst.msk [vmem:[%s157 + $0x80] sm:$0xff] %vm415, %v402
        %433 = vst.msk [vmem:[%s157 + $0x88] sm:$0xff] %vm415, %v407
        %434 = vst.msk [vmem:[%s157 + $0x90] sm:$0xff] %vm415, %v412
        %s435 = scalar_lea.vmem %s1, 40
        %v436 = vld [vmem:[%s435] sm:$0xff]
        %v437 = vld [vmem:[%s435 + $0x8] sm:$0xff]
        %v438 = vld [vmem:[%s435 + $0x10] sm:$0xff]
        %v439 = vld [vmem:[%s435 + $0x18] sm:$0xff]
        %v440 = vld [vmem:[%s435 + $0x20] sm:$0x1f]
        %v442 = vsel %vm251, %v440, 0
        %444 = vmatprep.subr.mxu0 0.0
        %445 = vmatpush1.msra.mxu0 0.0
        %446 = vmatprep.subr.mxu0 0.0
        %447 = vmatpush1.msra.mxu0 0.0
        %448 = vmatprep.subr.mxu0 0.0
        %449 = vmatpush1.msra.mxu0 0.0
        %450 = vmatprep.subr.mxu0 0.0
        %451 = vmatpush1.msra.mxu0 0.0
        %452 = vmatprep.subr.mxu0 0.0
        %453 = vmatpush1.msra.mxu0 0.0
        %454 = vmatprep.subr.mxu0 0.0
        %455 = vmatpush1.msra.mxu0 0.0
        %456 = vmatprep.subr.mxu0 0.0
        %457 = vmatpush1.msra.mxu0 0.0
        %458 = vmatprep.subr.mxu0 0.0
        %459 = vmatpush1.msra.mxu0 0.0
        %460 = vmatprep.subr.mxu0 0.0
        %461 = vmatpush1.msra.mxu0 0.0
        %462 = vmatprep.subr.mxu0 0.0
        %463 = vmatpush1.msra.mxu0 0.0
        %464 = vmatprep.subr.mxu0 0.0
        %465 = vmatpush1.msra.mxu0 0.0
        %466 = vmatprep.subr.mxu0 0.0
        %467 = vmatpush1.msra.mxu0 %v442
        %468 = vmatprep.subr.mxu0 0.0
        %469 = vmatpush1.msra.mxu0 %v439
        %470 = vmatprep.subr.mxu0 0.0
        %471 = vmatpush1.msra.mxu0 %v438
        %472 = vmatprep.subr.mxu0 0.0
        %473 = vmatpush1.msra.mxu0 %v437
        %474 = vmatprep.subr.mxu0 0.0
        %475 = vmatpush1.msra.mxu0 %v436
        %476 = vmatprep.subr.mxu0 0.0
        %477 = vmatpush2.msra.mxu0 0.0
        %478 = vmatprep.subr.mxu0 0.0
        %479 = vmatpush2.msra.mxu0 0.0
        %480 = vmatprep.subr.mxu0 0.0
        %481 = vmatpush2.msra.mxu0 0.0
        %482 = vmatprep.subr.mxu0 0.0
        %483 = vmatpush2.msra.mxu0 0.0
        %484 = vmatprep.subr.mxu0 0.0
        %485 = vmatpush2.msra.mxu0 0.0
        %486 = vmatprep.subr.mxu0 0.0
        %487 = vmatpush2.msra.mxu0 0.0
        %488 = vmatprep.subr.mxu0 0.0
        %489 = vmatpush2.msra.mxu0 0.0
        %490 = vmatprep.subr.mxu0 0.0
        %491 = vmatpush2.msra.mxu0 0.0
        %492 = vmatprep.subr.mxu0 0.0
        %493 = vmatpush2.msra.mxu0 0.0
        %494 = vmatprep.subr.mxu0 0.0
        %495 = vmatpush2.msra.mxu0 0.0
        %496 = vmatprep.subr.mxu0 0.0
        %497 = vmatpush2.msra.mxu0 0.0
        %498 = vmatprep.subr.mxu0 0.0
        %499 = vmatpush2.msra.mxu0 0.0
        %500 = vmatprep.subr.mxu0 0.0
        %501 = vmatpush2.msra.mxu0 0.0
        %502 = vmatprep.subr.mxu0 0.0
        %503 = vmatpush2.msra.mxu0 0.0
        %504 = vmatprep.subr.mxu0 0.0
        %505 = vmatpush2.msra.mxu0 0.0
        %506 = vmatprep.subr.mxu0 0.0
        %507 = vmatpush2.msra.mxu0 0.0
        %508 = vmatprep.mubr.f32.mxu0 0.0
        %509 = vmatmul.mubr.f32.gmra.mxu0 %v195
        %v510 = vpop.f32.mrf.mxu0
        %v511 = vadd.f32 0.0, %v510
        %v512 = vpop.f32.mrf.mxu0
        %513 = vmatprep.mubr.f32.mxu0 0.0
        %514 = vmatmul.mubr.f32.gmra.mxu0 %v198
        %v515 = vpop.f32.mrf.mxu0
        %v516 = vadd.f32 0.0, %v515
        %v517 = vpop.f32.mrf.mxu0
        %518 = vmatprep.mubr.f32.mxu0 0.0
        %519 = vmatmul.mubr.f32.gmra.mxu0 %v201
        %v520 = vpop.f32.mrf.mxu0
        %v521 = vadd.f32 0.0, %v520
        %v522 = vpop.f32.mrf.mxu0
        %523 = vmatprep.mubr.f32.mxu0 0.0
        %524 = vmatmul.mubr.f32.gmra.mxu0 %v204
        %v525 = vpop.f32.mrf.mxu0
        %v526 = vadd.f32 0.0, %v525
        %v527 = vpop.f32.mrf.mxu0
        %528 = vmatprep.mubr.f32.mxu0 0.0
        %529 = vmatmul.mubr.f32.gmra.mxu0 %v207
        %v530 = vpop.f32.mrf.mxu0
        %v531 = vadd.f32 0.0, %v530
        %v532 = vpop.f32.mrf.mxu0
        %533 = vmatprep.mubr.f32.mxu0 0.0
        %534 = vmatmul.mubr.f32.gmra.mxu0 %v210
        %v535 = vpop.f32.mrf.mxu0
        %v536 = vadd.f32 0.0, %v535
        %v537 = vpop.f32.mrf.mxu0
        %538 = vmatprep.mubr.f32.mxu0 0.0
        %539 = vmatmul.mubr.f32.gmra.mxu0 %v213
        %v540 = vpop.f32.mrf.mxu0
        %v541 = vadd.f32 0.0, %v540
        %v542 = vpop.f32.mrf.mxu0
        %543 = vmatprep.mubr.f32.mxu0 0.0
        %544 = vmatmul.mubr.f32.gmra.mxu0 %v216
        %v545 = vpop.f32.mrf.mxu0
        %v546 = vadd.f32 0.0, %v545
        %v547 = vpop.f32.mrf.mxu0
        %548 = vmatprep.mubr.f32.mxu0 0.0
        %549 = vmatmul.mubr.f32.gmra.mxu0 %v219
        %v550 = vpop.f32.mrf.mxu0
        %v551 = vadd.f32 0.0, %v550
        %v552 = vpop.f32.mrf.mxu0
        %553 = vmatprep.mubr.f32.mxu0 0.0
        %554 = vmatmul.mubr.f32.gmra.mxu0 %v222
        %v555 = vpop.f32.mrf.mxu0
        %v556 = vadd.f32 0.0, %v555
        %v557 = vpop.f32.mrf.mxu0
        %558 = vmatprep.mubr.f32.mxu0 0.0
        %559 = vmatmul.mubr.f32.gmra.mxu0 %v225
        %v560 = vpop.f32.mrf.mxu0
        %v561 = vadd.f32 0.0, %v560
        %v562 = vpop.f32.mrf.mxu0
        %563 = vmatprep.mubr.f32.mxu0 0.0
        %564 = vmatmul.mubr.f32.gmra.mxu0 %v228
        %v565 = vpop.f32.mrf.mxu0
        %v566 = vadd.f32 0.0, %v565
        %v567 = vpop.f32.mrf.mxu0
        %568 = vmatprep.mubr.f32.mxu0 0.0
        %569 = vmatmul.mubr.f32.gmra.mxu0 %v231
        %v570 = vpop.f32.mrf.mxu0
        %v571 = vadd.f32 0.0, %v570
        %v572 = vpop.f32.mrf.mxu0
        %573 = vmatprep.mubr.f32.mxu0 0.0
        %574 = vmatmul.mubr.f32.gmra.mxu0 %v234
        %v575 = vpop.f32.mrf.mxu0
        %v576 = vadd.f32 0.0, %v575
        %v577 = vpop.f32.mrf.mxu0
        %578 = vmatprep.mubr.f32.mxu0 0.0
        %579 = vmatmul.mubr.f32.gmra.mxu0 %v237
        %v580 = vpop.f32.mrf.mxu0
        %v581 = vadd.f32 0.0, %v580
        %v582 = vpop.f32.mrf.mxu0
        %583 = vmatprep.mubr.f32.mxu0 0.0
        %584 = vmatmul.mubr.f32.gmra.mxu0 %v240
        %v585 = vpop.f32.mrf.mxu0
        %v586 = vadd.f32 0.0, %v585
        %v587 = vpop.f32.mrf.mxu0
        %588 = vmatprep.mubr.f32.mxu0 0.0
        %589 = vmatmul.mubr.f32.gmra.mxu0 %v243
        %v590 = vpop.f32.mrf.mxu0
        %v591 = vadd.f32 0.0, %v590
        %v592 = vpop.f32.mrf.mxu0
        %593 = vmatprep.mubr.f32.mxu0 0.0
        %594 = vmatmul.mubr.f32.gmra.mxu0 %v246
        %v595 = vpop.f32.mrf.mxu0
        %v596 = vadd.f32 0.0, %v595
        %v597 = vpop.f32.mrf.mxu0
        %598 = vmatprep.mubr.f32.mxu0 0.0
        %599 = vmatmul.mubr.f32.gmra.mxu0 %v249
        %v600 = vpop.f32.mrf.mxu0
        %v601 = vadd.f32 0.0, %v600
        %v602 = vpop.f32.mrf.mxu0
        %603 = vdwg.mxu0
        %s604 = scalar_lea.vmem %s157, 152 [#allocation2]
        %605 = vst.msk [vmem:[%s604] sm:$0xff] %vm415, %v511
        %606 = vst.msk [vmem:[%s604 + $0x8] sm:$0xff] %vm415, %v516
        %607 = vst.msk [vmem:[%s604 + $0x10] sm:$0xff] %vm415, %v521
        %608 = vst.msk [vmem:[%s604 + $0x18] sm:$0xff] %vm415, %v526
        %609 = vst.msk [vmem:[%s604 + $0x20] sm:$0xff] %vm415, %v531
        %610 = vst.msk [vmem:[%s604 + $0x28] sm:$0xff] %vm415, %v536
        %611 = vst.msk [vmem:[%s604 + $0x30] sm:$0xff] %vm415, %v541
        %612 = vst.msk [vmem:[%s604 + $0x38] sm:$0xff] %vm415, %v546
        %613 = vst.msk [vmem:[%s604 + $0x40] sm:$0xff] %vm415, %v551
        %614 = vst.msk [vmem:[%s604 + $0x48] sm:$0xff] %vm415, %v556
        %615 = vst.msk [vmem:[%s604 + $0x50] sm:$0xff] %vm415, %v561
        %616 = vst.msk [vmem:[%s604 + $0x58] sm:$0xff] %vm415, %v566
        %617 = vst.msk [vmem:[%s604 + $0x60] sm:$0xff] %vm415, %v571
        %618 = vst.msk [vmem:[%s604 + $0x68] sm:$0xff] %vm415, %v576
        %619 = vst.msk [vmem:[%s604 + $0x70] sm:$0xff] %vm415, %v581
        %620 = vst.msk [vmem:[%s604 + $0x78] sm:$0xff] %vm415, %v586
        %621 = vst.msk [vmem:[%s604 + $0x80] sm:$0xff] %vm415, %v591
        %622 = vst.msk [vmem:[%s604 + $0x88] sm:$0xff] %vm415, %v596
        %623 = vst.msk [vmem:[%s604 + $0x90] sm:$0xff] %vm415, %v601
        %s624 = scalar_lea.vmem %s1, 80
        %v625 = vld [vmem:[%s624] sm:$0xff]
        %v626 = vld [vmem:[%s624 + $0x8] sm:$0xff]
        %v627 = vld [vmem:[%s624 + $0x10] sm:$0xff]
        %v628 = vld [vmem:[%s624 + $0x18] sm:$0xff]
        %v629 = vld [vmem:[%s624 + $0x20] sm:$0x1f]
        %v631 = vsel %vm251, %v629, 0
        %633 = vmatprep.subr.mxu0 0.0
        %634 = vmatpush1.msra.mxu0 0.0
        %635 = vmatprep.subr.mxu0 0.0
        %636 = vmatpush1.msra.mxu0 0.0
        %637 = vmatprep.subr.mxu0 0.0
        %638 = vmatpush1.msra.mxu0 0.0
        %639 = vmatprep.subr.mxu0 0.0
        %640 = vmatpush1.msra.mxu0 0.0
        %641 = vmatprep.subr.mxu0 0.0
        %642 = vmatpush1.msra.mxu0 0.0
        %643 = vmatprep.subr.mxu0 0.0
        %644 = vmatpush1.msra.mxu0 0.0
        %645 = vmatprep.subr.mxu0 0.0
        %646 = vmatpush1.msra.mxu0 0.0
        %647 = vmatprep.subr.mxu0 0.0
        %648 = vmatpush1.msra.mxu0 0.0
        %649 = vmatprep.subr.mxu0 0.0
        %650 = vmatpush1.msra.mxu0 0.0
        %651 = vmatprep.subr.mxu0 0.0
        %652 = vmatpush1.msra.mxu0 0.0
        %653 = vmatprep.subr.mxu0 0.0
        %654 = vmatpush1.msra.mxu0 0.0
        %655 = vmatprep.subr.mxu0 0.0
        %656 = vmatpush1.msra.mxu0 %v631
        %657 = vmatprep.subr.mxu0 0.0
        %658 = vmatpush1.msra.mxu0 %v628
        %659 = vmatprep.subr.mxu0 0.0
        %660 = vmatpush1.msra.mxu0 %v627
        %661 = vmatprep.subr.mxu0 0.0
        %662 = vmatpush1.msra.mxu0 %v626
        %663 = vmatprep.subr.mxu0 0.0
        %664 = vmatpush1.msra.mxu0 %v625
        %665 = vmatprep.subr.mxu0 0.0
        %666 = vmatpush2.msra.mxu0 0.0
        %667 = vmatprep.subr.mxu0 0.0
        %668 = vmatpush2.msra.mxu0 0.0
        %669 = vmatprep.subr.mxu0 0.0
        %670 = vmatpush2.msra.mxu0 0.0
        %671 = vmatprep.subr.mxu0 0.0
        %672 = vmatpush2.msra.mxu0 0.0
        %673 = vmatprep.subr.mxu0 0.0
        %674 = vmatpush2.msra.mxu0 0.0
        %675 = vmatprep.subr.mxu0 0.0
        %676 = vmatpush2.msra.mxu0 0.0
        %677 = vmatprep.subr.mxu0 0.0
        %678 = vmatpush2.msra.mxu0 0.0
        %679 = vmatprep.subr.mxu0 0.0
        %680 = vmatpush2.msra.mxu0 0.0
        %681 = vmatprep.subr.mxu0 0.0
        %682 = vmatpush2.msra.mxu0 0.0
        %683 = vmatprep.subr.mxu0 0.0
        %684 = vmatpush2.msra.mxu0 0.0
        %685 = vmatprep.subr.mxu0 0.0
        %686 = vmatpush2.msra.mxu0 0.0
        %687 = vmatprep.subr.mxu0 0.0
        %688 = vmatpush2.msra.mxu0 0.0
        %689 = vmatprep.subr.mxu0 0.0
        %690 = vmatpush2.msra.mxu0 0.0
        %691 = vmatprep.subr.mxu0 0.0
        %692 = vmatpush2.msra.mxu0 0.0
        %693 = vmatprep.subr.mxu0 0.0
        %694 = vmatpush2.msra.mxu0 0.0
        %695 = vmatprep.subr.mxu0 0.0
        %696 = vmatpush2.msra.mxu0 0.0
        %697 = vmatprep.mubr.f32.mxu0 0.0
        %698 = vmatmul.mubr.f32.gmra.mxu0 %v195
        %v699 = vpop.f32.mrf.mxu0
        %v700 = vadd.f32 0.0, %v699
        %v701 = vpop.f32.mrf.mxu0
        %702 = vmatprep.mubr.f32.mxu0 0.0
        %703 = vmatmul.mubr.f32.gmra.mxu0 %v198
        %v704 = vpop.f32.mrf.mxu0
        %v705 = vadd.f32 0.0, %v704
        %v706 = vpop.f32.mrf.mxu0
        %707 = vmatprep.mubr.f32.mxu0 0.0
        %708 = vmatmul.mubr.f32.gmra.mxu0 %v201
        %v709 = vpop.f32.mrf.mxu0
        %v710 = vadd.f32 0.0, %v709
        %v711 = vpop.f32.mrf.mxu0
        %712 = vmatprep.mubr.f32.mxu0 0.0
        %713 = vmatmul.mubr.f32.gmra.mxu0 %v204
        %v714 = vpop.f32.mrf.mxu0
        %v715 = vadd.f32 0.0, %v714
        %v716 = vpop.f32.mrf.mxu0
        %717 = vmatprep.mubr.f32.mxu0 0.0
        %718 = vmatmul.mubr.f32.gmra.mxu0 %v207
        %v719 = vpop.f32.mrf.mxu0
        %v720 = vadd.f32 0.0, %v719
        %v721 = vpop.f32.mrf.mxu0
        %722 = vmatprep.mubr.f32.mxu0 0.0
        %723 = vmatmul.mubr.f32.gmra.mxu0 %v210
        %v724 = vpop.f32.mrf.mxu0
        %v725 = vadd.f32 0.0, %v724
        %v726 = vpop.f32.mrf.mxu0
        %727 = vmatprep.mubr.f32.mxu0 0.0
        %728 = vmatmul.mubr.f32.gmra.mxu0 %v213
        %v729 = vpop.f32.mrf.mxu0
        %v730 = vadd.f32 0.0, %v729
        %v731 = vpop.f32.mrf.mxu0
        %732 = vmatprep.mubr.f32.mxu0 0.0
        %733 = vmatmul.mubr.f32.gmra.mxu0 %v216
        %v734 = vpop.f32.mrf.mxu0
        %v735 = vadd.f32 0.0, %v734
        %v736 = vpop.f32.mrf.mxu0
        %737 = vmatprep.mubr.f32.mxu0 0.0
        %738 = vmatmul.mubr.f32.gmra.mxu0 %v219
        %v739 = vpop.f32.mrf.mxu0
        %v740 = vadd.f32 0.0, %v739
        %v741 = vpop.f32.mrf.mxu0
        %742 = vmatprep.mubr.f32.mxu0 0.0
        %743 = vmatmul.mubr.f32.gmra.mxu0 %v222
        %v744 = vpop.f32.mrf.mxu0
        %v745 = vadd.f32 0.0, %v744
        %v746 = vpop.f32.mrf.mxu0
        %747 = vmatprep.mubr.f32.mxu0 0.0
        %748 = vmatmul.mubr.f32.gmra.mxu0 %v225
        %v749 = vpop.f32.mrf.mxu0
        %v750 = vadd.f32 0.0, %v749
        %v751 = vpop.f32.mrf.mxu0
        %752 = vmatprep.mubr.f32.mxu0 0.0
        %753 = vmatmul.mubr.f32.gmra.mxu0 %v228
        %v754 = vpop.f32.mrf.mxu0
        %v755 = vadd.f32 0.0, %v754
        %v756 = vpop.f32.mrf.mxu0
        %757 = vmatprep.mubr.f32.mxu0 0.0
        %758 = vmatmul.mubr.f32.gmra.mxu0 %v231
        %v759 = vpop.f32.mrf.mxu0
        %v760 = vadd.f32 0.0, %v759
        %v761 = vpop.f32.mrf.mxu0
        %762 = vmatprep.mubr.f32.mxu0 0.0
        %763 = vmatmul.mubr.f32.gmra.mxu0 %v234
        %v764 = vpop.f32.mrf.mxu0
        %v765 = vadd.f32 0.0, %v764
        %v766 = vpop.f32.mrf.mxu0
        %767 = vmatprep.mubr.f32.mxu0 0.0
        %768 = vmatmul.mubr.f32.gmra.mxu0 %v237
        %v769 = vpop.f32.mrf.mxu0
        %v770 = vadd.f32 0.0, %v769
        %v771 = vpop.f32.mrf.mxu0
        %772 = vmatprep.mubr.f32.mxu0 0.0
        %773 = vmatmul.mubr.f32.gmra.mxu0 %v240
        %v774 = vpop.f32.mrf.mxu0
        %v775 = vadd.f32 0.0, %v774
        %v776 = vpop.f32.mrf.mxu0
        %777 = vmatprep.mubr.f32.mxu0 0.0
        %778 = vmatmul.mubr.f32.gmra.mxu0 %v243
        %v779 = vpop.f32.mrf.mxu0
        %v780 = vadd.f32 0.0, %v779
        %v781 = vpop.f32.mrf.mxu0
        %782 = vmatprep.mubr.f32.mxu0 0.0
        %783 = vmatmul.mubr.f32.gmra.mxu0 %v246
        %v784 = vpop.f32.mrf.mxu0
        %v785 = vadd.f32 0.0, %v784
        %v786 = vpop.f32.mrf.mxu0
        %787 = vmatprep.mubr.f32.mxu0 0.0
        %788 = vmatmul.mubr.f32.gmra.mxu0 %v249
        %v789 = vpop.f32.mrf.mxu0
        %v790 = vadd.f32 0.0, %v789
        %v791 = vpop.f32.mrf.mxu0
        %792 = vdwg.mxu0
        %s793 = scalar_lea.vmem %s157, 304 [#allocation2]
        %794 = vst.msk [vmem:[%s793] sm:$0xff] %vm415, %v700
        %795 = vst.msk [vmem:[%s793 + $0x8] sm:$0xff] %vm415, %v705
        %796 = vst.msk [vmem:[%s793 + $0x10] sm:$0xff] %vm415, %v710
        %797 = vst.msk [vmem:[%s793 + $0x18] sm:$0xff] %vm415, %v715
        %798 = vst.msk [vmem:[%s793 + $0x20] sm:$0xff] %vm415, %v720
        %799 = vst.msk [vmem:[%s793 + $0x28] sm:$0xff] %vm415, %v725
        %800 = vst.msk [vmem:[%s793 + $0x30] sm:$0xff] %vm415, %v730
        %801 = vst.msk [vmem:[%s793 + $0x38] sm:$0xff] %vm415, %v735
        %802 = vst.msk [vmem:[%s793 + $0x40] sm:$0xff] %vm415, %v740
        %803 = vst.msk [vmem:[%s793 + $0x48] sm:$0xff] %vm415, %v745
        %804 = vst.msk [vmem:[%s793 + $0x50] sm:$0xff] %vm415, %v750
        %805 = vst.msk [vmem:[%s793 + $0x58] sm:$0xff] %vm415, %v755
        %806 = vst.msk [vmem:[%s793 + $0x60] sm:$0xff] %vm415, %v760
        %807 = vst.msk [vmem:[%s793 + $0x68] sm:$0xff] %vm415, %v765
        %808 = vst.msk [vmem:[%s793 + $0x70] sm:$0xff] %vm415, %v770
        %809 = vst.msk [vmem:[%s793 + $0x78] sm:$0xff] %vm415, %v775
        %810 = vst.msk [vmem:[%s793 + $0x80] sm:$0xff] %vm415, %v780
        %811 = vst.msk [vmem:[%s793 + $0x88] sm:$0xff] %vm415, %v785
        %812 = vst.msk [vmem:[%s793 + $0x90] sm:$0xff] %vm415, %v790
        %s813 = scalar_lea.vmem %s1, 120
        %v814 = vld [vmem:[%s813] sm:$0xff]
        %v815 = vld [vmem:[%s813 + $0x8] sm:$0xff]
        %v816 = vld [vmem:[%s813 + $0x10] sm:$0xff]
        %v817 = vld [vmem:[%s813 + $0x18] sm:$0xff]
        %v818 = vld [vmem:[%s813 + $0x20] sm:$0x1f]
        %v820 = vsel %vm251, %v818, 0
        %822 = vmatprep.subr.mxu0 0.0
        %823 = vmatpush1.msra.mxu0 0.0
        %824 = vmatprep.subr.mxu0 0.0
        %825 = vmatpush1.msra.mxu0 0.0
        %826 = vmatprep.subr.mxu0 0.0
        %827 = vmatpush1.msra.mxu0 0.0
        %828 = vmatprep.subr.mxu0 0.0
        %829 = vmatpush1.msra.mxu0 0.0
        %830 = vmatprep.subr.mxu0 0.0
        %831 = vmatpush1.msra.mxu0 0.0
        %832 = vmatprep.subr.mxu0 0.0
        %833 = vmatpush1.msra.mxu0 0.0
        %834 = vmatprep.subr.mxu0 0.0
        %835 = vmatpush1.msra.mxu0 0.0
        %836 = vmatprep.subr.mxu0 0.0
        %837 = vmatpush1.msra.mxu0 0.0
        %838 = vmatprep.subr.mxu0 0.0
        %839 = vmatpush1.msra.mxu0 0.0
        %840 = vmatprep.subr.mxu0 0.0
        %841 = vmatpush1.msra.mxu0 0.0
        %842 = vmatprep.subr.mxu0 0.0
        %843 = vmatpush1.msra.mxu0 0.0
        %844 = vmatprep.subr.mxu0 0.0
        %845 = vmatpush1.msra.mxu0 %v820
        %846 = vmatprep.subr.mxu0 0.0
        %847 = vmatpush1.msra.mxu0 %v817
        %848 = vmatprep.subr.mxu0 0.0
        %849 = vmatpush1.msra.mxu0 %v816
        %850 = vmatprep.subr.mxu0 0.0
        %851 = vmatpush1.msra.mxu0 %v815
        %852 = vmatprep.subr.mxu0 0.0
        %853 = vmatpush1.msra.mxu0 %v814
        %854 = vmatprep.subr.mxu0 0.0
        %855 = vmatpush2.msra.mxu0 0.0
        %856 = vmatprep.subr.mxu0 0.0
        %857 = vmatpush2.msra.mxu0 0.0
        %858 = vmatprep.subr.mxu0 0.0
        %859 = vmatpush2.msra.mxu0 0.0
        %860 = vmatprep.subr.mxu0 0.0
        %861 = vmatpush2.msra.mxu0 0.0
        %862 = vmatprep.subr.mxu0 0.0
        %863 = vmatpush2.msra.mxu0 0.0
        %864 = vmatprep.subr.mxu0 0.0
        %865 = vmatpush2.msra.mxu0 0.0
        %866 = vmatprep.subr.mxu0 0.0
        %867 = vmatpush2.msra.mxu0 0.0
        %868 = vmatprep.subr.mxu0 0.0
        %869 = vmatpush2.msra.mxu0 0.0
        %870 = vmatprep.subr.mxu0 0.0
        %871 = vmatpush2.msra.mxu0 0.0
        %872 = vmatprep.subr.mxu0 0.0
        %873 = vmatpush2.msra.mxu0 0.0
        %874 = vmatprep.subr.mxu0 0.0
        %875 = vmatpush2.msra.mxu0 0.0
        %876 = vmatprep.subr.mxu0 0.0
        %877 = vmatpush2.msra.mxu0 0.0
        %878 = vmatprep.subr.mxu0 0.0
        %879 = vmatpush2.msra.mxu0 0.0
        %880 = vmatprep.subr.mxu0 0.0
        %881 = vmatpush2.msra.mxu0 0.0
        %882 = vmatprep.subr.mxu0 0.0
        %883 = vmatpush2.msra.mxu0 0.0
        %884 = vmatprep.subr.mxu0 0.0
        %885 = vmatpush2.msra.mxu0 0.0
        %886 = vmatprep.mubr.f32.mxu0 0.0
        %887 = vmatmul.mubr.f32.gmra.mxu0 %v195
        %v888 = vpop.f32.mrf.mxu0
        %v889 = vadd.f32 0.0, %v888
        %v890 = vpop.f32.mrf.mxu0
        %891 = vmatprep.mubr.f32.mxu0 0.0
        %892 = vmatmul.mubr.f32.gmra.mxu0 %v198
        %v893 = vpop.f32.mrf.mxu0
        %v894 = vadd.f32 0.0, %v893
        %v895 = vpop.f32.mrf.mxu0
        %896 = vmatprep.mubr.f32.mxu0 0.0
        %897 = vmatmul.mubr.f32.gmra.mxu0 %v201
        %v898 = vpop.f32.mrf.mxu0
        %v899 = vadd.f32 0.0, %v898
        %v900 = vpop.f32.mrf.mxu0
        %901 = vmatprep.mubr.f32.mxu0 0.0
        %902 = vmatmul.mubr.f32.gmra.mxu0 %v204
        %v903 = vpop.f32.mrf.mxu0
        %v904 = vadd.f32 0.0, %v903
        %v905 = vpop.f32.mrf.mxu0
        %906 = vmatprep.mubr.f32.mxu0 0.0
        %907 = vmatmul.mubr.f32.gmra.mxu0 %v207
        %v908 = vpop.f32.mrf.mxu0
        %v909 = vadd.f32 0.0, %v908
        %v910 = vpop.f32.mrf.mxu0
        %911 = vmatprep.mubr.f32.mxu0 0.0
        %912 = vmatmul.mubr.f32.gmra.mxu0 %v210
        %v913 = vpop.f32.mrf.mxu0
        %v914 = vadd.f32 0.0, %v913
        %v915 = vpop.f32.mrf.mxu0
        %916 = vmatprep.mubr.f32.mxu0 0.0
        %917 = vmatmul.mubr.f32.gmra.mxu0 %v213
        %v918 = vpop.f32.mrf.mxu0
        %v919 = vadd.f32 0.0, %v918
        %v920 = vpop.f32.mrf.mxu0
        %921 = vmatprep.mubr.f32.mxu0 0.0
        %922 = vmatmul.mubr.f32.gmra.mxu0 %v216
        %v923 = vpop.f32.mrf.mxu0
        %v924 = vadd.f32 0.0, %v923
        %v925 = vpop.f32.mrf.mxu0
        %926 = vmatprep.mubr.f32.mxu0 0.0
        %927 = vmatmul.mubr.f32.gmra.mxu0 %v219
        %v928 = vpop.f32.mrf.mxu0
        %v929 = vadd.f32 0.0, %v928
        %v930 = vpop.f32.mrf.mxu0
        %931 = vmatprep.mubr.f32.mxu0 0.0
        %932 = vmatmul.mubr.f32.gmra.mxu0 %v222
        %v933 = vpop.f32.mrf.mxu0
        %v934 = vadd.f32 0.0, %v933
        %v935 = vpop.f32.mrf.mxu0
        %936 = vmatprep.mubr.f32.mxu0 0.0
        %937 = vmatmul.mubr.f32.gmra.mxu0 %v225
        %v938 = vpop.f32.mrf.mxu0
        %v939 = vadd.f32 0.0, %v938
        %v940 = vpop.f32.mrf.mxu0
        %941 = vmatprep.mubr.f32.mxu0 0.0
        %942 = vmatmul.mubr.f32.gmra.mxu0 %v228
        %v943 = vpop.f32.mrf.mxu0
        %v944 = vadd.f32 0.0, %v943
        %v945 = vpop.f32.mrf.mxu0
        %946 = vmatprep.mubr.f32.mxu0 0.0
        %947 = vmatmul.mubr.f32.gmra.mxu0 %v231
        %v948 = vpop.f32.mrf.mxu0
        %v949 = vadd.f32 0.0, %v948
        %v950 = vpop.f32.mrf.mxu0
        %951 = vmatprep.mubr.f32.mxu0 0.0
        %952 = vmatmul.mubr.f32.gmra.mxu0 %v234
        %v953 = vpop.f32.mrf.mxu0
        %v954 = vadd.f32 0.0, %v953
        %v955 = vpop.f32.mrf.mxu0
        %956 = vmatprep.mubr.f32.mxu0 0.0
        %957 = vmatmul.mubr.f32.gmra.mxu0 %v237
        %v958 = vpop.f32.mrf.mxu0
        %v959 = vadd.f32 0.0, %v958
        %v960 = vpop.f32.mrf.mxu0
        %961 = vmatprep.mubr.f32.mxu0 0.0
        %962 = vmatmul.mubr.f32.gmra.mxu0 %v240
        %v963 = vpop.f32.mrf.mxu0
        %v964 = vadd.f32 0.0, %v963
        %v965 = vpop.f32.mrf.mxu0
        %966 = vmatprep.mubr.f32.mxu0 0.0
        %967 = vmatmul.mubr.f32.gmra.mxu0 %v243
        %v968 = vpop.f32.mrf.mxu0
        %v969 = vadd.f32 0.0, %v968
        %v970 = vpop.f32.mrf.mxu0
        %971 = vmatprep.mubr.f32.mxu0 0.0
        %972 = vmatmul.mubr.f32.gmra.mxu0 %v246
        %v973 = vpop.f32.mrf.mxu0
        %v974 = vadd.f32 0.0, %v973
        %v975 = vpop.f32.mrf.mxu0
        %976 = vmatprep.mubr.f32.mxu0 0.0
        %977 = vmatmul.mubr.f32.gmra.mxu0 %v249
        %v978 = vpop.f32.mrf.mxu0
        %v979 = vadd.f32 0.0, %v978
        %v980 = vpop.f32.mrf.mxu0
        %981 = vdwg.mxu0
        %s982 = scalar_lea.vmem %s157, 456 [#allocation2]
        %983 = vst.msk [vmem:[%s982] sm:$0xff] %vm415, %v889
        %984 = vst.msk [vmem:[%s982 + $0x8] sm:$0xff] %vm415, %v894
        %985 = vst.msk [vmem:[%s982 + $0x10] sm:$0xff] %vm415, %v899
        %986 = vst.msk [vmem:[%s982 + $0x18] sm:$0xff] %vm415, %v904
        %987 = vst.msk [vmem:[%s982 + $0x20] sm:$0xff] %vm415, %v909
        %988 = vst.msk [vmem:[%s982 + $0x28] sm:$0xff] %vm415, %v914
        %989 = vst.msk [vmem:[%s982 + $0x30] sm:$0xff] %vm415, %v919
        %990 = vst.msk [vmem:[%s982 + $0x38] sm:$0xff] %vm415, %v924
        %991 = vst.msk [vmem:[%s982 + $0x40] sm:$0xff] %vm415, %v929
        %992 = vst.msk [vmem:[%s982 + $0x48] sm:$0xff] %vm415, %v934
        %993 = vst.msk [vmem:[%s982 + $0x50] sm:$0xff] %vm415, %v939
        %994 = vst.msk [vmem:[%s982 + $0x58] sm:$0xff] %vm415, %v944
        %995 = vst.msk [vmem:[%s982 + $0x60] sm:$0xff] %vm415, %v949
        %996 = vst.msk [vmem:[%s982 + $0x68] sm:$0xff] %vm415, %v954
        %997 = vst.msk [vmem:[%s982 + $0x70] sm:$0xff] %vm415, %v959
        %998 = vst.msk [vmem:[%s982 + $0x78] sm:$0xff] %vm415, %v964
        %999 = vst.msk [vmem:[%s982 + $0x80] sm:$0xff] %vm415, %v969
        %1000 = vst.msk [vmem:[%s982 + $0x88] sm:$0xff] %vm415, %v974
        %1001 = vst.msk [vmem:[%s982 + $0x90] sm:$0xff] %vm415, %v979
        %s1002 = scalar_lea.vmem %s1, 160
        %v1003 = vld [vmem:[%s1002] sm:$0xff]
        %v1004 = vld [vmem:[%s1002 + $0x8] sm:$0xff]
        %v1005 = vld [vmem:[%s1002 + $0x10] sm:$0xff]
        %v1006 = vld [vmem:[%s1002 + $0x18] sm:$0xff]
        %v1007 = vld [vmem:[%s1002 + $0x20] sm:$0x1f]
        %v1009 = vsel %vm251, %v1007, 0
        %1011 = vmatprep.subr.mxu0 0.0
        %1012 = vmatpush1.msra.mxu0 0.0
        %1013 = vmatprep.subr.mxu0 0.0
        %1014 = vmatpush1.msra.mxu0 0.0
        %1015 = vmatprep.subr.mxu0 0.0
        %1016 = vmatpush1.msra.mxu0 0.0
        %1017 = vmatprep.subr.mxu0 0.0
        %1018 = vmatpush1.msra.mxu0 0.0
        %1019 = vmatprep.subr.mxu0 0.0
        %1020 = vmatpush1.msra.mxu0 0.0
        %1021 = vmatprep.subr.mxu0 0.0
        %1022 = vmatpush1.msra.mxu0 0.0
        %1023 = vmatprep.subr.mxu0 0.0
        %1024 = vmatpush1.msra.mxu0 0.0
        %1025 = vmatprep.subr.mxu0 0.0
        %1026 = vmatpush1.msra.mxu0 0.0
        %1027 = vmatprep.subr.mxu0 0.0
        %1028 = vmatpush1.msra.mxu0 0.0
        %1029 = vmatprep.subr.mxu0 0.0
        %1030 = vmatpush1.msra.mxu0 0.0
        %1031 = vmatprep.subr.mxu0 0.0
        %1032 = vmatpush1.msra.mxu0 0.0
        %1033 = vmatprep.subr.mxu0 0.0
        %1034 = vmatpush1.msra.mxu0 %v1009
        %1035 = vmatprep.subr.mxu0 0.0
        %1036 = vmatpush1.msra.mxu0 %v1006
        %1037 = vmatprep.subr.mxu0 0.0
        %1038 = vmatpush1.msra.mxu0 %v1005
        %1039 = vmatprep.subr.mxu0 0.0
        %1040 = vmatpush1.msra.mxu0 %v1004
        %1041 = vmatprep.subr.mxu0 0.0
        %1042 = vmatpush1.msra.mxu0 %v1003
        %1043 = vmatprep.subr.mxu0 0.0
        %1044 = vmatpush2.msra.mxu0 0.0
        %1045 = vmatprep.subr.mxu0 0.0
        %1046 = vmatpush2.msra.mxu0 0.0
        %1047 = vmatprep.subr.mxu0 0.0
        %1048 = vmatpush2.msra.mxu0 0.0
        %1049 = vmatprep.subr.mxu0 0.0
        %1050 = vmatpush2.msra.mxu0 0.0
        %1051 = vmatprep.subr.mxu0 0.0
        %1052 = vmatpush2.msra.mxu0 0.0
        %1053 = vmatprep.subr.mxu0 0.0
        %1054 = vmatpush2.msra.mxu0 0.0
        %1055 = vmatprep.subr.mxu0 0.0
        %1056 = vmatpush2.msra.mxu0 0.0
        %1057 = vmatprep.subr.mxu0 0.0
        %1058 = vmatpush2.msra.mxu0 0.0
        %1059 = vmatprep.subr.mxu0 0.0
        %1060 = vmatpush2.msra.mxu0 0.0
        %1061 = vmatprep.subr.mxu0 0.0
        %1062 = vmatpush2.msra.mxu0 0.0
        %1063 = vmatprep.subr.mxu0 0.0
        %1064 = vmatpush2.msra.mxu0 0.0
        %1065 = vmatprep.subr.mxu0 0.0
        %1066 = vmatpush2.msra.mxu0 0.0
        %1067 = vmatprep.subr.mxu0 0.0
        %1068 = vmatpush2.msra.mxu0 0.0
        %1069 = vmatprep.subr.mxu0 0.0
        %1070 = vmatpush2.msra.mxu0 0.0
        %1071 = vmatprep.subr.mxu0 0.0
        %1072 = vmatpush2.msra.mxu0 0.0
        %1073 = vmatprep.subr.mxu0 0.0
        %1074 = vmatpush2.msra.mxu0 0.0
        %1075 = vmatprep.mubr.f32.mxu0 0.0
        %1076 = vmatmul.mubr.f32.gmra.mxu0 %v195
        %v1077 = vpop.f32.mrf.mxu0
        %v1078 = vadd.f32 0.0, %v1077
        %v1079 = vpop.f32.mrf.mxu0
        %1080 = vmatprep.mubr.f32.mxu0 0.0
        %1081 = vmatmul.mubr.f32.gmra.mxu0 %v198
        %v1082 = vpop.f32.mrf.mxu0
        %v1083 = vadd.f32 0.0, %v1082
        %v1084 = vpop.f32.mrf.mxu0
        %1085 = vmatprep.mubr.f32.mxu0 0.0
        %1086 = vmatmul.mubr.f32.gmra.mxu0 %v201
        %v1087 = vpop.f32.mrf.mxu0
        %v1088 = vadd.f32 0.0, %v1087
        %v1089 = vpop.f32.mrf.mxu0
        %1090 = vmatprep.mubr.f32.mxu0 0.0
        %1091 = vmatmul.mubr.f32.gmra.mxu0 %v204
        %v1092 = vpop.f32.mrf.mxu0
        %v1093 = vadd.f32 0.0, %v1092
        %v1094 = vpop.f32.mrf.mxu0
        %1095 = vmatprep.mubr.f32.mxu0 0.0
        %1096 = vmatmul.mubr.f32.gmra.mxu0 %v207
        %v1097 = vpop.f32.mrf.mxu0
        %v1098 = vadd.f32 0.0, %v1097
        %v1099 = vpop.f32.mrf.mxu0
        %1100 = vmatprep.mubr.f32.mxu0 0.0
        %1101 = vmatmul.mubr.f32.gmra.mxu0 %v210
        %v1102 = vpop.f32.mrf.mxu0
        %v1103 = vadd.f32 0.0, %v1102
        %v1104 = vpop.f32.mrf.mxu0
        %1105 = vmatprep.mubr.f32.mxu0 0.0
        %1106 = vmatmul.mubr.f32.gmra.mxu0 %v213
        %v1107 = vpop.f32.mrf.mxu0
        %v1108 = vadd.f32 0.0, %v1107
        %v1109 = vpop.f32.mrf.mxu0
        %1110 = vmatprep.mubr.f32.mxu0 0.0
        %1111 = vmatmul.mubr.f32.gmra.mxu0 %v216
        %v1112 = vpop.f32.mrf.mxu0
        %v1113 = vadd.f32 0.0, %v1112
        %v1114 = vpop.f32.mrf.mxu0
        %1115 = vmatprep.mubr.f32.mxu0 0.0
        %1116 = vmatmul.mubr.f32.gmra.mxu0 %v219
        %v1117 = vpop.f32.mrf.mxu0
        %v1118 = vadd.f32 0.0, %v1117
        %v1119 = vpop.f32.mrf.mxu0
        %1120 = vmatprep.mubr.f32.mxu0 0.0
        %1121 = vmatmul.mubr.f32.gmra.mxu0 %v222
        %v1122 = vpop.f32.mrf.mxu0
        %v1123 = vadd.f32 0.0, %v1122
        %v1124 = vpop.f32.mrf.mxu0
        %1125 = vmatprep.mubr.f32.mxu0 0.0
        %1126 = vmatmul.mubr.f32.gmra.mxu0 %v225
        %v1127 = vpop.f32.mrf.mxu0
        %v1128 = vadd.f32 0.0, %v1127
        %v1129 = vpop.f32.mrf.mxu0
        %1130 = vmatprep.mubr.f32.mxu0 0.0
        %1131 = vmatmul.mubr.f32.gmra.mxu0 %v228
        %v1132 = vpop.f32.mrf.mxu0
        %v1133 = vadd.f32 0.0, %v1132
        %v1134 = vpop.f32.mrf.mxu0
        %1135 = vmatprep.mubr.f32.mxu0 0.0
        %1136 = vmatmul.mubr.f32.gmra.mxu0 %v231
        %v1137 = vpop.f32.mrf.mxu0
        %v1138 = vadd.f32 0.0, %v1137
        %v1139 = vpop.f32.mrf.mxu0
        %1140 = vmatprep.mubr.f32.mxu0 0.0
        %1141 = vmatmul.mubr.f32.gmra.mxu0 %v234
        %v1142 = vpop.f32.mrf.mxu0
        %v1143 = vadd.f32 0.0, %v1142
        %v1144 = vpop.f32.mrf.mxu0
        %1145 = vmatprep.mubr.f32.mxu0 0.0
        %1146 = vmatmul.mubr.f32.gmra.mxu0 %v237
        %v1147 = vpop.f32.mrf.mxu0
        %v1148 = vadd.f32 0.0, %v1147
        %v1149 = vpop.f32.mrf.mxu0
        %1150 = vmatprep.mubr.f32.mxu0 0.0
        %1151 = vmatmul.mubr.f32.gmra.mxu0 %v240
        %v1152 = vpop.f32.mrf.mxu0
        %v1153 = vadd.f32 0.0, %v1152
        %v1154 = vpop.f32.mrf.mxu0
        %1155 = vmatprep.mubr.f32.mxu0 0.0
        %1156 = vmatmul.mubr.f32.gmra.mxu0 %v243
        %v1157 = vpop.f32.mrf.mxu0
        %v1158 = vadd.f32 0.0, %v1157
        %v1159 = vpop.f32.mrf.mxu0
        %1160 = vmatprep.mubr.f32.mxu0 0.0
        %1161 = vmatmul.mubr.f32.gmra.mxu0 %v246
        %v1162 = vpop.f32.mrf.mxu0
        %v1163 = vadd.f32 0.0, %v1162
        %v1164 = vpop.f32.mrf.mxu0
        %1165 = vmatprep.mubr.f32.mxu0 0.0
        %1166 = vmatmul.mubr.f32.gmra.mxu0 %v249
        %v1167 = vpop.f32.mrf.mxu0
        %v1168 = vadd.f32 0.0, %v1167
        %v1169 = vpop.f32.mrf.mxu0
        %1170 = vdwg.mxu0
        %s1171 = scalar_lea.vmem %s157, 608 [#allocation2]
        %1172 = vst.msk [vmem:[%s1171] sm:$0xff] %vm415, %v1078
        %1173 = vst.msk [vmem:[%s1171 + $0x8] sm:$0xff] %vm415, %v1083
        %1174 = vst.msk [vmem:[%s1171 + $0x10] sm:$0xff] %vm415, %v1088
        %1175 = vst.msk [vmem:[%s1171 + $0x18] sm:$0xff] %vm415, %v1093
        %1176 = vst.msk [vmem:[%s1171 + $0x20] sm:$0xff] %vm415, %v1098
        %1177 = vst.msk [vmem:[%s1171 + $0x28] sm:$0xff] %vm415, %v1103
        %1178 = vst.msk [vmem:[%s1171 + $0x30] sm:$0xff] %vm415, %v1108
        %1179 = vst.msk [vmem:[%s1171 + $0x38] sm:$0xff] %vm415, %v1113
        %1180 = vst.msk [vmem:[%s1171 + $0x40] sm:$0xff] %vm415, %v1118
        %1181 = vst.msk [vmem:[%s1171 + $0x48] sm:$0xff] %vm415, %v1123
        %1182 = vst.msk [vmem:[%s1171 + $0x50] sm:$0xff] %vm415, %v1128
        %1183 = vst.msk [vmem:[%s1171 + $0x58] sm:$0xff] %vm415, %v1133
        %1184 = vst.msk [vmem:[%s1171 + $0x60] sm:$0xff] %vm415, %v1138
        %1185 = vst.msk [vmem:[%s1171 + $0x68] sm:$0xff] %vm415, %v1143
        %1186 = vst.msk [vmem:[%s1171 + $0x70] sm:$0xff] %vm415, %v1148
        %1187 = vst.msk [vmem:[%s1171 + $0x78] sm:$0xff] %vm415, %v1153
        %1188 = vst.msk [vmem:[%s1171 + $0x80] sm:$0xff] %vm415, %v1158
        %1189 = vst.msk [vmem:[%s1171 + $0x88] sm:$0xff] %vm415, %v1163
        %1190 = vst.msk [vmem:[%s1171 + $0x90] sm:$0xff] %vm415, %v1168
        %s1191 = scalar_lea.vmem %s1, 200
        %v1192 = vld [vmem:[%s1191] sm:$0xff]
        %v1193 = vld [vmem:[%s1191 + $0x8] sm:$0xff]
        %v1194 = vld [vmem:[%s1191 + $0x10] sm:$0xff]
        %v1195 = vld [vmem:[%s1191 + $0x18] sm:$0xff]
        %v1196 = vld [vmem:[%s1191 + $0x20] sm:$0x1f]
        %v1198 = vsel %vm251, %v1196, 0
        %1200 = vmatprep.subr.mxu0 0.0
        %1201 = vmatpush1.msra.mxu0 0.0
        %1202 = vmatprep.subr.mxu0 0.0
        %1203 = vmatpush1.msra.mxu0 0.0
        %1204 = vmatprep.subr.mxu0 0.0
        %1205 = vmatpush1.msra.mxu0 0.0
        %1206 = vmatprep.subr.mxu0 0.0
        %1207 = vmatpush1.msra.mxu0 0.0
        %1208 = vmatprep.subr.mxu0 0.0
        %1209 = vmatpush1.msra.mxu0 0.0
        %1210 = vmatprep.subr.mxu0 0.0
        %1211 = vmatpush1.msra.mxu0 0.0
        %1212 = vmatprep.subr.mxu0 0.0
        %1213 = vmatpush1.msra.mxu0 0.0
        %1214 = vmatprep.subr.mxu0 0.0
        %1215 = vmatpush1.msra.mxu0 0.0
        %1216 = vmatprep.subr.mxu0 0.0
        %1217 = vmatpush1.msra.mxu0 0.0
        %1218 = vmatprep.subr.mxu0 0.0
        %1219 = vmatpush1.msra.mxu0 0.0
        %1220 = vmatprep.subr.mxu0 0.0
        %1221 = vmatpush1.msra.mxu0 0.0
        %1222 = vmatprep.subr.mxu0 0.0
        %1223 = vmatpush1.msra.mxu0 %v1198
        %1224 = vmatprep.subr.mxu0 0.0
        %1225 = vmatpush1.msra.mxu0 %v1195
        %1226 = vmatprep.subr.mxu0 0.0
        %1227 = vmatpush1.msra.mxu0 %v1194
        %1228 = vmatprep.subr.mxu0 0.0
        %1229 = vmatpush1.msra.mxu0 %v1193
        %1230 = vmatprep.subr.mxu0 0.0
        %1231 = vmatpush1.msra.mxu0 %v1192
        %1232 = vmatprep.subr.mxu0 0.0
        %1233 = vmatpush2.msra.mxu0 0.0
        %1234 = vmatprep.subr.mxu0 0.0
        %1235 = vmatpush2.msra.mxu0 0.0
        %1236 = vmatprep.subr.mxu0 0.0
        %1237 = vmatpush2.msra.mxu0 0.0
        %1238 = vmatprep.subr.mxu0 0.0
        %1239 = vmatpush2.msra.mxu0 0.0
        %1240 = vmatprep.subr.mxu0 0.0
        %1241 = vmatpush2.msra.mxu0 0.0
        %1242 = vmatprep.subr.mxu0 0.0
        %1243 = vmatpush2.msra.mxu0 0.0
        %1244 = vmatprep.subr.mxu0 0.0
        %1245 = vmatpush2.msra.mxu0 0.0
        %1246 = vmatprep.subr.mxu0 0.0
        %1247 = vmatpush2.msra.mxu0 0.0
        %1248 = vmatprep.subr.mxu0 0.0
        %1249 = vmatpush2.msra.mxu0 0.0
        %1250 = vmatprep.subr.mxu0 0.0
        %1251 = vmatpush2.msra.mxu0 0.0
        %1252 = vmatprep.subr.mxu0 0.0
        %1253 = vmatpush2.msra.mxu0 0.0
        %1254 = vmatprep.subr.mxu0 0.0
        %1255 = vmatpush2.msra.mxu0 0.0
        %1256 = vmatprep.subr.mxu0 0.0
        %1257 = vmatpush2.msra.mxu0 0.0
        %1258 = vmatprep.subr.mxu0 0.0
        %1259 = vmatpush2.msra.mxu0 0.0
        %1260 = vmatprep.subr.mxu0 0.0
        %1261 = vmatpush2.msra.mxu0 0.0
        %1262 = vmatprep.subr.mxu0 0.0
        %1263 = vmatpush2.msra.mxu0 0.0
        %1264 = vmatprep.mubr.f32.mxu0 0.0
        %1265 = vmatmul.mubr.f32.gmra.mxu0 %v195
        %v1266 = vpop.f32.mrf.mxu0
        %v1267 = vadd.f32 0.0, %v1266
        %v1268 = vpop.f32.mrf.mxu0
        %1269 = vmatprep.mubr.f32.mxu0 0.0
        %1270 = vmatmul.mubr.f32.gmra.mxu0 %v198
        %v1271 = vpop.f32.mrf.mxu0
        %v1272 = vadd.f32 0.0, %v1271
        %v1273 = vpop.f32.mrf.mxu0
        %1274 = vmatprep.mubr.f32.mxu0 0.0
        %1275 = vmatmul.mubr.f32.gmra.mxu0 %v201
        %v1276 = vpop.f32.mrf.mxu0
        %v1277 = vadd.f32 0.0, %v1276
        %v1278 = vpop.f32.mrf.mxu0
        %1279 = vmatprep.mubr.f32.mxu0 0.0
        %1280 = vmatmul.mubr.f32.gmra.mxu0 %v204
        %v1281 = vpop.f32.mrf.mxu0
        %v1282 = vadd.f32 0.0, %v1281
        %v1283 = vpop.f32.mrf.mxu0
        %1284 = vmatprep.mubr.f32.mxu0 0.0
        %1285 = vmatmul.mubr.f32.gmra.mxu0 %v207
        %v1286 = vpop.f32.mrf.mxu0
        %v1287 = vadd.f32 0.0, %v1286
        %v1288 = vpop.f32.mrf.mxu0
        %1289 = vmatprep.mubr.f32.mxu0 0.0
        %1290 = vmatmul.mubr.f32.gmra.mxu0 %v210
        %v1291 = vpop.f32.mrf.mxu0
        %v1292 = vadd.f32 0.0, %v1291
        %v1293 = vpop.f32.mrf.mxu0
        %1294 = vmatprep.mubr.f32.mxu0 0.0
        %1295 = vmatmul.mubr.f32.gmra.mxu0 %v213
        %v1296 = vpop.f32.mrf.mxu0
        %v1297 = vadd.f32 0.0, %v1296
        %v1298 = vpop.f32.mrf.mxu0
        %1299 = vmatprep.mubr.f32.mxu0 0.0
        %1300 = vmatmul.mubr.f32.gmra.mxu0 %v216
        %v1301 = vpop.f32.mrf.mxu0
        %v1302 = vadd.f32 0.0, %v1301
        %v1303 = vpop.f32.mrf.mxu0
        %1304 = vmatprep.mubr.f32.mxu0 0.0
        %1305 = vmatmul.mubr.f32.gmra.mxu0 %v219
        %v1306 = vpop.f32.mrf.mxu0
        %v1307 = vadd.f32 0.0, %v1306
        %v1308 = vpop.f32.mrf.mxu0
        %1309 = vmatprep.mubr.f32.mxu0 0.0
        %1310 = vmatmul.mubr.f32.gmra.mxu0 %v222
        %v1311 = vpop.f32.mrf.mxu0
        %v1312 = vadd.f32 0.0, %v1311
        %v1313 = vpop.f32.mrf.mxu0
        %1314 = vmatprep.mubr.f32.mxu0 0.0
        %1315 = vmatmul.mubr.f32.gmra.mxu0 %v225
        %v1316 = vpop.f32.mrf.mxu0
        %v1317 = vadd.f32 0.0, %v1316
        %v1318 = vpop.f32.mrf.mxu0
        %1319 = vmatprep.mubr.f32.mxu0 0.0
        %1320 = vmatmul.mubr.f32.gmra.mxu0 %v228
        %v1321 = vpop.f32.mrf.mxu0
        %v1322 = vadd.f32 0.0, %v1321
        %v1323 = vpop.f32.mrf.mxu0
        %1324 = vmatprep.mubr.f32.mxu0 0.0
        %1325 = vmatmul.mubr.f32.gmra.mxu0 %v231
        %v1326 = vpop.f32.mrf.mxu0
        %v1327 = vadd.f32 0.0, %v1326
        %v1328 = vpop.f32.mrf.mxu0
        %1329 = vmatprep.mubr.f32.mxu0 0.0
        %1330 = vmatmul.mubr.f32.gmra.mxu0 %v234
        %v1331 = vpop.f32.mrf.mxu0
        %v1332 = vadd.f32 0.0, %v1331
        %v1333 = vpop.f32.mrf.mxu0
        %1334 = vmatprep.mubr.f32.mxu0 0.0
        %1335 = vmatmul.mubr.f32.gmra.mxu0 %v237
        %v1336 = vpop.f32.mrf.mxu0
        %v1337 = vadd.f32 0.0, %v1336
        %v1338 = vpop.f32.mrf.mxu0
        %1339 = vmatprep.mubr.f32.mxu0 0.0
        %1340 = vmatmul.mubr.f32.gmra.mxu0 %v240
        %v1341 = vpop.f32.mrf.mxu0
        %v1342 = vadd.f32 0.0, %v1341
        %v1343 = vpop.f32.mrf.mxu0
        %1344 = vmatprep.mubr.f32.mxu0 0.0
        %1345 = vmatmul.mubr.f32.gmra.mxu0 %v243
        %v1346 = vpop.f32.mrf.mxu0
        %v1347 = vadd.f32 0.0, %v1346
        %v1348 = vpop.f32.mrf.mxu0
        %1349 = vmatprep.mubr.f32.mxu0 0.0
        %1350 = vmatmul.mubr.f32.gmra.mxu0 %v246
        %v1351 = vpop.f32.mrf.mxu0
        %v1352 = vadd.f32 0.0, %v1351
        %v1353 = vpop.f32.mrf.mxu0
        %1354 = vmatprep.mubr.f32.mxu0 0.0
        %1355 = vmatmul.mubr.f32.gmra.mxu0 %v249
        %v1356 = vpop.f32.mrf.mxu0
        %v1357 = vadd.f32 0.0, %v1356
        %v1358 = vpop.f32.mrf.mxu0
        %1359 = vdwg.mxu0
        %s1360 = scalar_lea.vmem %s157, 760 [#allocation2]
        %1361 = vst.msk [vmem:[%s1360] sm:$0xff] %vm415, %v1267
        %1362 = vst.msk [vmem:[%s1360 + $0x8] sm:$0xff] %vm415, %v1272
        %1363 = vst.msk [vmem:[%s1360 + $0x10] sm:$0xff] %vm415, %v1277
        %1364 = vst.msk [vmem:[%s1360 + $0x18] sm:$0xff] %vm415, %v1282
        %1365 = vst.msk [vmem:[%s1360 + $0x20] sm:$0xff] %vm415, %v1287
        %1366 = vst.msk [vmem:[%s1360 + $0x28] sm:$0xff] %vm415, %v1292
        %1367 = vst.msk [vmem:[%s1360 + $0x30] sm:$0xff] %vm415, %v1297
        %1368 = vst.msk [vmem:[%s1360 + $0x38] sm:$0xff] %vm415, %v1302
        %1369 = vst.msk [vmem:[%s1360 + $0x40] sm:$0xff] %vm415, %v1307
        %1370 = vst.msk [vmem:[%s1360 + $0x48] sm:$0xff] %vm415, %v1312
        %1371 = vst.msk [vmem:[%s1360 + $0x50] sm:$0xff] %vm415, %v1317
        %1372 = vst.msk [vmem:[%s1360 + $0x58] sm:$0xff] %vm415, %v1322
        %1373 = vst.msk [vmem:[%s1360 + $0x60] sm:$0xff] %vm415, %v1327
        %1374 = vst.msk [vmem:[%s1360 + $0x68] sm:$0xff] %vm415, %v1332
        %1375 = vst.msk [vmem:[%s1360 + $0x70] sm:$0xff] %vm415, %v1337
        %1376 = vst.msk [vmem:[%s1360 + $0x78] sm:$0xff] %vm415, %v1342
        %1377 = vst.msk [vmem:[%s1360 + $0x80] sm:$0xff] %vm415, %v1347
        %1378 = vst.msk [vmem:[%s1360 + $0x88] sm:$0xff] %vm415, %v1352
        %1379 = vst.msk [vmem:[%s1360 + $0x90] sm:$0xff] %vm415, %v1357
        %s1380 = scalar_lea.vmem %s1, 240
        %v1381 = vld [vmem:[%s1380] sm:$0xff]
        %v1382 = vld [vmem:[%s1380 + $0x8] sm:$0xff]
        %v1383 = vld [vmem:[%s1380 + $0x10] sm:$0xff]
        %v1384 = vld [vmem:[%s1380 + $0x18] sm:$0xff]
        %v1385 = vld [vmem:[%s1380 + $0x20] sm:$0x1f]
        %v1387 = vsel %vm251, %v1385, 0
        %1389 = vmatprep.subr.mxu0 0.0
        %1390 = vmatpush1.msra.mxu0 0.0
        %1391 = vmatprep.subr.mxu0 0.0
        %1392 = vmatpush1.msra.mxu0 0.0
        %1393 = vmatprep.subr.mxu0 0.0
        %1394 = vmatpush1.msra.mxu0 0.0
        %1395 = vmatprep.subr.mxu0 0.0
        %1396 = vmatpush1.msra.mxu0 0.0
        %1397 = vmatprep.subr.mxu0 0.0
        %1398 = vmatpush1.msra.mxu0 0.0
        %1399 = vmatprep.subr.mxu0 0.0
        %1400 = vmatpush1.msra.mxu0 0.0
        %1401 = vmatprep.subr.mxu0 0.0
        %1402 = vmatpush1.msra.mxu0 0.0
        %1403 = vmatprep.subr.mxu0 0.0
        %1404 = vmatpush1.msra.mxu0 0.0
        %1405 = vmatprep.subr.mxu0 0.0
        %1406 = vmatpush1.msra.mxu0 0.0
        %1407 = vmatprep.subr.mxu0 0.0
        %1408 = vmatpush1.msra.mxu0 0.0
        %1409 = vmatprep.subr.mxu0 0.0
        %1410 = vmatpush1.msra.mxu0 0.0
        %1411 = vmatprep.subr.mxu0 0.0
        %1412 = vmatpush1.msra.mxu0 %v1387
        %1413 = vmatprep.subr.mxu0 0.0
        %1414 = vmatpush1.msra.mxu0 %v1384
        %1415 = vmatprep.subr.mxu0 0.0
        %1416 = vmatpush1.msra.mxu0 %v1383
        %1417 = vmatprep.subr.mxu0 0.0
        %1418 = vmatpush1.msra.mxu0 %v1382
        %1419 = vmatprep.subr.mxu0 0.0
        %1420 = vmatpush1.msra.mxu0 %v1381
        %1421 = vmatprep.subr.mxu0 0.0
        %1422 = vmatpush2.msra.mxu0 0.0
        %1423 = vmatprep.subr.mxu0 0.0
        %1424 = vmatpush2.msra.mxu0 0.0
        %1425 = vmatprep.subr.mxu0 0.0
        %1426 = vmatpush2.msra.mxu0 0.0
        %1427 = vmatprep.subr.mxu0 0.0
        %1428 = vmatpush2.msra.mxu0 0.0
        %1429 = vmatprep.subr.mxu0 0.0
        %1430 = vmatpush2.msra.mxu0 0.0
        %1431 = vmatprep.subr.mxu0 0.0
        %1432 = vmatpush2.msra.mxu0 0.0
        %1433 = vmatprep.subr.mxu0 0.0
        %1434 = vmatpush2.msra.mxu0 0.0
        %1435 = vmatprep.subr.mxu0 0.0
        %1436 = vmatpush2.msra.mxu0 0.0
        %1437 = vmatprep.subr.mxu0 0.0
        %1438 = vmatpush2.msra.mxu0 0.0
        %1439 = vmatprep.subr.mxu0 0.0
        %1440 = vmatpush2.msra.mxu0 0.0
        %1441 = vmatprep.subr.mxu0 0.0
        %1442 = vmatpush2.msra.mxu0 0.0
        %1443 = vmatprep.subr.mxu0 0.0
        %1444 = vmatpush2.msra.mxu0 0.0
        %1445 = vmatprep.subr.mxu0 0.0
        %1446 = vmatpush2.msra.mxu0 0.0
        %1447 = vmatprep.subr.mxu0 0.0
        %1448 = vmatpush2.msra.mxu0 0.0
        %1449 = vmatprep.subr.mxu0 0.0
        %1450 = vmatpush2.msra.mxu0 0.0
        %1451 = vmatprep.subr.mxu0 0.0
        %1452 = vmatpush2.msra.mxu0 0.0
        %1453 = vmatprep.mubr.f32.mxu0 0.0
        %1454 = vmatmul.mubr.f32.gmra.mxu0 %v195
        %v1455 = vpop.f32.mrf.mxu0
        %v1456 = vadd.f32 0.0, %v1455
        %v1457 = vpop.f32.mrf.mxu0
        %1458 = vmatprep.mubr.f32.mxu0 0.0
        %1459 = vmatmul.mubr.f32.gmra.mxu0 %v198
        %v1460 = vpop.f32.mrf.mxu0
        %v1461 = vadd.f32 0.0, %v1460
        %v1462 = vpop.f32.mrf.mxu0
        %1463 = vmatprep.mubr.f32.mxu0 0.0
        %1464 = vmatmul.mubr.f32.gmra.mxu0 %v201
        %v1465 = vpop.f32.mrf.mxu0
        %v1466 = vadd.f32 0.0, %v1465
        %v1467 = vpop.f32.mrf.mxu0
        %1468 = vmatprep.mubr.f32.mxu0 0.0
        %1469 = vmatmul.mubr.f32.gmra.mxu0 %v204
        %v1470 = vpop.f32.mrf.mxu0
        %v1471 = vadd.f32 0.0, %v1470
        %v1472 = vpop.f32.mrf.mxu0
        %1473 = vmatprep.mubr.f32.mxu0 0.0
        %1474 = vmatmul.mubr.f32.gmra.mxu0 %v207
        %v1475 = vpop.f32.mrf.mxu0
        %v1476 = vadd.f32 0.0, %v1475
        %v1477 = vpop.f32.mrf.mxu0
        %1478 = vmatprep.mubr.f32.mxu0 0.0
        %1479 = vmatmul.mubr.f32.gmra.mxu0 %v210
        %v1480 = vpop.f32.mrf.mxu0
        %v1481 = vadd.f32 0.0, %v1480
        %v1482 = vpop.f32.mrf.mxu0
        %1483 = vmatprep.mubr.f32.mxu0 0.0
        %1484 = vmatmul.mubr.f32.gmra.mxu0 %v213
        %v1485 = vpop.f32.mrf.mxu0
        %v1486 = vadd.f32 0.0, %v1485
        %v1487 = vpop.f32.mrf.mxu0
        %1488 = vmatprep.mubr.f32.mxu0 0.0
        %1489 = vmatmul.mubr.f32.gmra.mxu0 %v216
        %v1490 = vpop.f32.mrf.mxu0
        %v1491 = vadd.f32 0.0, %v1490
        %v1492 = vpop.f32.mrf.mxu0
        %1493 = vmatprep.mubr.f32.mxu0 0.0
        %1494 = vmatmul.mubr.f32.gmra.mxu0 %v219
        %v1495 = vpop.f32.mrf.mxu0
        %v1496 = vadd.f32 0.0, %v1495
        %v1497 = vpop.f32.mrf.mxu0
        %1498 = vmatprep.mubr.f32.mxu0 0.0
        %1499 = vmatmul.mubr.f32.gmra.mxu0 %v222
        %v1500 = vpop.f32.mrf.mxu0
        %v1501 = vadd.f32 0.0, %v1500
        %v1502 = vpop.f32.mrf.mxu0
        %1503 = vmatprep.mubr.f32.mxu0 0.0
        %1504 = vmatmul.mubr.f32.gmra.mxu0 %v225
        %v1505 = vpop.f32.mrf.mxu0
        %v1506 = vadd.f32 0.0, %v1505
        %v1507 = vpop.f32.mrf.mxu0
        %1508 = vmatprep.mubr.f32.mxu0 0.0
        %1509 = vmatmul.mubr.f32.gmra.mxu0 %v228
        %v1510 = vpop.f32.mrf.mxu0
        %v1511 = vadd.f32 0.0, %v1510
        %v1512 = vpop.f32.mrf.mxu0
        %1513 = vmatprep.mubr.f32.mxu0 0.0
        %1514 = vmatmul.mubr.f32.gmra.mxu0 %v231
        %v1515 = vpop.f32.mrf.mxu0
        %v1516 = vadd.f32 0.0, %v1515
        %v1517 = vpop.f32.mrf.mxu0
        %1518 = vmatprep.mubr.f32.mxu0 0.0
        %1519 = vmatmul.mubr.f32.gmra.mxu0 %v234
        %v1520 = vpop.f32.mrf.mxu0
        %v1521 = vadd.f32 0.0, %v1520
        %v1522 = vpop.f32.mrf.mxu0
        %1523 = vmatprep.mubr.f32.mxu0 0.0
        %1524 = vmatmul.mubr.f32.gmra.mxu0 %v237
        %v1525 = vpop.f32.mrf.mxu0
        %v1526 = vadd.f32 0.0, %v1525
        %v1527 = vpop.f32.mrf.mxu0
        %1528 = vmatprep.mubr.f32.mxu0 0.0
        %1529 = vmatmul.mubr.f32.gmra.mxu0 %v240
        %v1530 = vpop.f32.mrf.mxu0
        %v1531 = vadd.f32 0.0, %v1530
        %v1532 = vpop.f32.mrf.mxu0
        %1533 = vmatprep.mubr.f32.mxu0 0.0
        %1534 = vmatmul.mubr.f32.gmra.mxu0 %v243
        %v1535 = vpop.f32.mrf.mxu0
        %v1536 = vadd.f32 0.0, %v1535
        %v1537 = vpop.f32.mrf.mxu0
        %1538 = vmatprep.mubr.f32.mxu0 0.0
        %1539 = vmatmul.mubr.f32.gmra.mxu0 %v246
        %v1540 = vpop.f32.mrf.mxu0
        %v1541 = vadd.f32 0.0, %v1540
        %v1542 = vpop.f32.mrf.mxu0
        %1543 = vmatprep.mubr.f32.mxu0 0.0
        %1544 = vmatmul.mubr.f32.gmra.mxu0 %v249
        %v1545 = vpop.f32.mrf.mxu0
        %v1546 = vadd.f32 0.0, %v1545
        %v1547 = vpop.f32.mrf.mxu0
        %1548 = vdwg.mxu0
        %s1549 = scalar_lea.vmem %s157, 912 [#allocation2]
        %1550 = vst.msk [vmem:[%s1549] sm:$0xff] %vm415, %v1456
        %1551 = vst.msk [vmem:[%s1549 + $0x8] sm:$0xff] %vm415, %v1461
        %1552 = vst.msk [vmem:[%s1549 + $0x10] sm:$0xff] %vm415, %v1466
        %1553 = vst.msk [vmem:[%s1549 + $0x18] sm:$0xff] %vm415, %v1471
        %1554 = vst.msk [vmem:[%s1549 + $0x20] sm:$0xff] %vm415, %v1476
        %1555 = vst.msk [vmem:[%s1549 + $0x28] sm:$0xff] %vm415, %v1481
        %1556 = vst.msk [vmem:[%s1549 + $0x30] sm:$0xff] %vm415, %v1486
        %1557 = vst.msk [vmem:[%s1549 + $0x38] sm:$0xff] %vm415, %v1491
        %1558 = vst.msk [vmem:[%s1549 + $0x40] sm:$0xff] %vm415, %v1496
        %1559 = vst.msk [vmem:[%s1549 + $0x48] sm:$0xff] %vm415, %v1501
        %1560 = vst.msk [vmem:[%s1549 + $0x50] sm:$0xff] %vm415, %v1506
        %1561 = vst.msk [vmem:[%s1549 + $0x58] sm:$0xff] %vm415, %v1511
        %1562 = vst.msk [vmem:[%s1549 + $0x60] sm:$0xff] %vm415, %v1516
        %1563 = vst.msk [vmem:[%s1549 + $0x68] sm:$0xff] %vm415, %v1521
        %1564 = vst.msk [vmem:[%s1549 + $0x70] sm:$0xff] %vm415, %v1526
        %1565 = vst.msk [vmem:[%s1549 + $0x78] sm:$0xff] %vm415, %v1531
        %1566 = vst.msk [vmem:[%s1549 + $0x80] sm:$0xff] %vm415, %v1536
        %1567 = vst.msk [vmem:[%s1549 + $0x88] sm:$0xff] %vm415, %v1541
        %1568 = vst.msk [vmem:[%s1549 + $0x90] sm:$0xff] %vm415, %v1546
        %s1569 = scalar_lea.vmem %s1, 280
        %v1570 = vld [vmem:[%s1569] sm:$0xff]
        %v1571 = vld [vmem:[%s1569 + $0x8] sm:$0xff]
        %v1572 = vld [vmem:[%s1569 + $0x10] sm:$0xff]
        %v1573 = vld [vmem:[%s1569 + $0x18] sm:$0xff]
        %v1574 = vld [vmem:[%s1569 + $0x20] sm:$0x1f]
        %v1576 = vsel %vm251, %v1574, 0
        %1578 = vmatprep.subr.mxu0 0.0
        %1579 = vmatpush1.msra.mxu0 0.0
        %1580 = vmatprep.subr.mxu0 0.0
        %1581 = vmatpush1.msra.mxu0 0.0
        %1582 = vmatprep.subr.mxu0 0.0
        %1583 = vmatpush1.msra.mxu0 0.0
        %1584 = vmatprep.subr.mxu0 0.0
        %1585 = vmatpush1.msra.mxu0 0.0
        %1586 = vmatprep.subr.mxu0 0.0
        %1587 = vmatpush1.msra.mxu0 0.0
        %1588 = vmatprep.subr.mxu0 0.0
        %1589 = vmatpush1.msra.mxu0 0.0
        %1590 = vmatprep.subr.mxu0 0.0
        %1591 = vmatpush1.msra.mxu0 0.0
        %1592 = vmatprep.subr.mxu0 0.0
        %1593 = vmatpush1.msra.mxu0 0.0
        %1594 = vmatprep.subr.mxu0 0.0
        %1595 = vmatpush1.msra.mxu0 0.0
        %1596 = vmatprep.subr.mxu0 0.0
        %1597 = vmatpush1.msra.mxu0 0.0
        %1598 = vmatprep.subr.mxu0 0.0
        %1599 = vmatpush1.msra.mxu0 0.0
        %1600 = vmatprep.subr.mxu0 0.0
        %1601 = vmatpush1.msra.mxu0 %v1576
        %1602 = vmatprep.subr.mxu0 0.0
        %1603 = vmatpush1.msra.mxu0 %v1573
        %1604 = vmatprep.subr.mxu0 0.0
        %1605 = vmatpush1.msra.mxu0 %v1572
        %1606 = vmatprep.subr.mxu0 0.0
        %1607 = vmatpush1.msra.mxu0 %v1571
        %1608 = vmatprep.subr.mxu0 0.0
        %1609 = vmatpush1.msra.mxu0 %v1570
        %1610 = vmatprep.subr.mxu0 0.0
        %1611 = vmatpush2.msra.mxu0 0.0
        %1612 = vmatprep.subr.mxu0 0.0
        %1613 = vmatpush2.msra.mxu0 0.0
        %1614 = vmatprep.subr.mxu0 0.0
        %1615 = vmatpush2.msra.mxu0 0.0
        %1616 = vmatprep.subr.mxu0 0.0
        %1617 = vmatpush2.msra.mxu0 0.0
        %1618 = vmatprep.subr.mxu0 0.0
        %1619 = vmatpush2.msra.mxu0 0.0
        %1620 = vmatprep.subr.mxu0 0.0
        %1621 = vmatpush2.msra.mxu0 0.0
        %1622 = vmatprep.subr.mxu0 0.0
        %1623 = vmatpush2.msra.mxu0 0.0
        %1624 = vmatprep.subr.mxu0 0.0
        %1625 = vmatpush2.msra.mxu0 0.0
        %1626 = vmatprep.subr.mxu0 0.0
        %1627 = vmatpush2.msra.mxu0 0.0
        %1628 = vmatprep.subr.mxu0 0.0
        %1629 = vmatpush2.msra.mxu0 0.0
        %1630 = vmatprep.subr.mxu0 0.0
        %1631 = vmatpush2.msra.mxu0 0.0
        %1632 = vmatprep.subr.mxu0 0.0
        %1633 = vmatpush2.msra.mxu0 0.0
        %1634 = vmatprep.subr.mxu0 0.0
        %1635 = vmatpush2.msra.mxu0 0.0
        %1636 = vmatprep.subr.mxu0 0.0
        %1637 = vmatpush2.msra.mxu0 0.0
        %1638 = vmatprep.subr.mxu0 0.0
        %1639 = vmatpush2.msra.mxu0 0.0
        %1640 = vmatprep.subr.mxu0 0.0
        %1641 = vmatpush2.msra.mxu0 0.0
        %1642 = vmatprep.mubr.f32.mxu0 0.0
        %1643 = vmatmul.mubr.f32.gmra.mxu0 %v195
        %v1644 = vpop.f32.mrf.mxu0
        %v1645 = vadd.f32 0.0, %v1644
        %v1646 = vpop.f32.mrf.mxu0
        %1647 = vmatprep.mubr.f32.mxu0 0.0
        %1648 = vmatmul.mubr.f32.gmra.mxu0 %v198
        %v1649 = vpop.f32.mrf.mxu0
        %v1650 = vadd.f32 0.0, %v1649
        %v1651 = vpop.f32.mrf.mxu0
        %1652 = vmatprep.mubr.f32.mxu0 0.0
        %1653 = vmatmul.mubr.f32.gmra.mxu0 %v201
        %v1654 = vpop.f32.mrf.mxu0
        %v1655 = vadd.f32 0.0, %v1654
        %v1656 = vpop.f32.mrf.mxu0
        %1657 = vmatprep.mubr.f32.mxu0 0.0
        %1658 = vmatmul.mubr.f32.gmra.mxu0 %v204
        %v1659 = vpop.f32.mrf.mxu0
        %v1660 = vadd.f32 0.0, %v1659
        %v1661 = vpop.f32.mrf.mxu0
        %1662 = vmatprep.mubr.f32.mxu0 0.0
        %1663 = vmatmul.mubr.f32.gmra.mxu0 %v207
        %v1664 = vpop.f32.mrf.mxu0
        %v1665 = vadd.f32 0.0, %v1664
        %v1666 = vpop.f32.mrf.mxu0
        %1667 = vmatprep.mubr.f32.mxu0 0.0
        %1668 = vmatmul.mubr.f32.gmra.mxu0 %v210
        %v1669 = vpop.f32.mrf.mxu0
        %v1670 = vadd.f32 0.0, %v1669
        %v1671 = vpop.f32.mrf.mxu0
        %1672 = vmatprep.mubr.f32.mxu0 0.0
        %1673 = vmatmul.mubr.f32.gmra.mxu0 %v213
        %v1674 = vpop.f32.mrf.mxu0
        %v1675 = vadd.f32 0.0, %v1674
        %v1676 = vpop.f32.mrf.mxu0
        %1677 = vmatprep.mubr.f32.mxu0 0.0
        %1678 = vmatmul.mubr.f32.gmra.mxu0 %v216
        %v1679 = vpop.f32.mrf.mxu0
        %v1680 = vadd.f32 0.0, %v1679
        %v1681 = vpop.f32.mrf.mxu0
        %1682 = vmatprep.mubr.f32.mxu0 0.0
        %1683 = vmatmul.mubr.f32.gmra.mxu0 %v219
        %v1684 = vpop.f32.mrf.mxu0
        %v1685 = vadd.f32 0.0, %v1684
        %v1686 = vpop.f32.mrf.mxu0
        %1687 = vmatprep.mubr.f32.mxu0 0.0
        %1688 = vmatmul.mubr.f32.gmra.mxu0 %v222
        %v1689 = vpop.f32.mrf.mxu0
        %v1690 = vadd.f32 0.0, %v1689
        %v1691 = vpop.f32.mrf.mxu0
        %1692 = vmatprep.mubr.f32.mxu0 0.0
        %1693 = vmatmul.mubr.f32.gmra.mxu0 %v225
        %v1694 = vpop.f32.mrf.mxu0
        %v1695 = vadd.f32 0.0, %v1694
        %v1696 = vpop.f32.mrf.mxu0
        %1697 = vmatprep.mubr.f32.mxu0 0.0
        %1698 = vmatmul.mubr.f32.gmra.mxu0 %v228
        %v1699 = vpop.f32.mrf.mxu0
        %v1700 = vadd.f32 0.0, %v1699
        %v1701 = vpop.f32.mrf.mxu0
        %1702 = vmatprep.mubr.f32.mxu0 0.0
        %1703 = vmatmul.mubr.f32.gmra.mxu0 %v231
        %v1704 = vpop.f32.mrf.mxu0
        %v1705 = vadd.f32 0.0, %v1704
        %v1706 = vpop.f32.mrf.mxu0
        %1707 = vmatprep.mubr.f32.mxu0 0.0
        %1708 = vmatmul.mubr.f32.gmra.mxu0 %v234
        %v1709 = vpop.f32.mrf.mxu0
        %v1710 = vadd.f32 0.0, %v1709
        %v1711 = vpop.f32.mrf.mxu0
        %1712 = vmatprep.mubr.f32.mxu0 0.0
        %1713 = vmatmul.mubr.f32.gmra.mxu0 %v237
        %v1714 = vpop.f32.mrf.mxu0
        %v1715 = vadd.f32 0.0, %v1714
        %v1716 = vpop.f32.mrf.mxu0
        %1717 = vmatprep.mubr.f32.mxu0 0.0
        %1718 = vmatmul.mubr.f32.gmra.mxu0 %v240
        %v1719 = vpop.f32.mrf.mxu0
        %v1720 = vadd.f32 0.0, %v1719
        %v1721 = vpop.f32.mrf.mxu0
        %1722 = vmatprep.mubr.f32.mxu0 0.0
        %1723 = vmatmul.mubr.f32.gmra.mxu0 %v243
        %v1724 = vpop.f32.mrf.mxu0
        %v1725 = vadd.f32 0.0, %v1724
        %v1726 = vpop.f32.mrf.mxu0
        %1727 = vmatprep.mubr.f32.mxu0 0.0
        %1728 = vmatmul.mubr.f32.gmra.mxu0 %v246
        %v1729 = vpop.f32.mrf.mxu0
        %v1730 = vadd.f32 0.0, %v1729
        %v1731 = vpop.f32.mrf.mxu0
        %1732 = vmatprep.mubr.f32.mxu0 0.0
        %1733 = vmatmul.mubr.f32.gmra.mxu0 %v249
        %v1734 = vpop.f32.mrf.mxu0
        %v1735 = vadd.f32 0.0, %v1734
        %v1736 = vpop.f32.mrf.mxu0
        %1737 = vdwg.mxu0
        %s1738 = scalar_lea.vmem %s157, 1064 [#allocation2]
        %1739 = vst.msk [vmem:[%s1738] sm:$0xff] %vm415, %v1645
        %1740 = vst.msk [vmem:[%s1738 + $0x8] sm:$0xff] %vm415, %v1650
        %1741 = vst.msk [vmem:[%s1738 + $0x10] sm:$0xff] %vm415, %v1655
        %1742 = vst.msk [vmem:[%s1738 + $0x18] sm:$0xff] %vm415, %v1660
        %1743 = vst.msk [vmem:[%s1738 + $0x20] sm:$0xff] %vm415, %v1665
        %1744 = vst.msk [vmem:[%s1738 + $0x28] sm:$0xff] %vm415, %v1670
        %1745 = vst.msk [vmem:[%s1738 + $0x30] sm:$0xff] %vm415, %v1675
        %1746 = vst.msk [vmem:[%s1738 + $0x38] sm:$0xff] %vm415, %v1680
        %1747 = vst.msk [vmem:[%s1738 + $0x40] sm:$0xff] %vm415, %v1685
        %1748 = vst.msk [vmem:[%s1738 + $0x48] sm:$0xff] %vm415, %v1690
        %1749 = vst.msk [vmem:[%s1738 + $0x50] sm:$0xff] %vm415, %v1695
        %1750 = vst.msk [vmem:[%s1738 + $0x58] sm:$0xff] %vm415, %v1700
        %1751 = vst.msk [vmem:[%s1738 + $0x60] sm:$0xff] %vm415, %v1705
        %1752 = vst.msk [vmem:[%s1738 + $0x68] sm:$0xff] %vm415, %v1710
        %1753 = vst.msk [vmem:[%s1738 + $0x70] sm:$0xff] %vm415, %v1715
        %1754 = vst.msk [vmem:[%s1738 + $0x78] sm:$0xff] %vm415, %v1720
        %1755 = vst.msk [vmem:[%s1738 + $0x80] sm:$0xff] %vm415, %v1725
        %1756 = vst.msk [vmem:[%s1738 + $0x88] sm:$0xff] %vm415, %v1730
        %1757 = vst.msk [vmem:[%s1738 + $0x90] sm:$0xff] %vm415, %v1735
        %s1758 = scalar_lea.vmem %s1, 320
        %v1759 = vld [vmem:[%s1758] sm:$0xff]
        %v1760 = vld [vmem:[%s1758 + $0x8] sm:$0xff]
        %v1761 = vld [vmem:[%s1758 + $0x10] sm:$0xff]
        %v1762 = vld [vmem:[%s1758 + $0x18] sm:$0xff]
        %v1763 = vld [vmem:[%s1758 + $0x20] sm:$0x1f]
        %v1765 = vsel %vm251, %v1763, 0
        %1767 = vmatprep.subr.mxu0 0.0
        %1768 = vmatpush1.msra.mxu0 0.0
        %1769 = vmatprep.subr.mxu0 0.0
        %1770 = vmatpush1.msra.mxu0 0.0
        %1771 = vmatprep.subr.mxu0 0.0
        %1772 = vmatpush1.msra.mxu0 0.0
        %1773 = vmatprep.subr.mxu0 0.0
        %1774 = vmatpush1.msra.mxu0 0.0
        %1775 = vmatprep.subr.mxu0 0.0
        %1776 = vmatpush1.msra.mxu0 0.0
        %1777 = vmatprep.subr.mxu0 0.0
        %1778 = vmatpush1.msra.mxu0 0.0
        %1779 = vmatprep.subr.mxu0 0.0
        %1780 = vmatpush1.msra.mxu0 0.0
        %1781 = vmatprep.subr.mxu0 0.0
        %1782 = vmatpush1.msra.mxu0 0.0
        %1783 = vmatprep.subr.mxu0 0.0
        %1784 = vmatpush1.msra.mxu0 0.0
        %1785 = vmatprep.subr.mxu0 0.0
        %1786 = vmatpush1.msra.mxu0 0.0
        %1787 = vmatprep.subr.mxu0 0.0
        %1788 = vmatpush1.msra.mxu0 0.0
        %1789 = vmatprep.subr.mxu0 0.0
        %1790 = vmatpush1.msra.mxu0 %v1765
        %1791 = vmatprep.subr.mxu0 0.0
        %1792 = vmatpush1.msra.mxu0 %v1762
        %1793 = vmatprep.subr.mxu0 0.0
        %1794 = vmatpush1.msra.mxu0 %v1761
        %1795 = vmatprep.subr.mxu0 0.0
        %1796 = vmatpush1.msra.mxu0 %v1760
        %1797 = vmatprep.subr.mxu0 0.0
        %1798 = vmatpush1.msra.mxu0 %v1759
        %1799 = vmatprep.subr.mxu0 0.0
        %1800 = vmatpush2.msra.mxu0 0.0
        %1801 = vmatprep.subr.mxu0 0.0
        %1802 = vmatpush2.msra.mxu0 0.0
        %1803 = vmatprep.subr.mxu0 0.0
        %1804 = vmatpush2.msra.mxu0 0.0
        %1805 = vmatprep.subr.mxu0 0.0
        %1806 = vmatpush2.msra.mxu0 0.0
        %1807 = vmatprep.subr.mxu0 0.0
        %1808 = vmatpush2.msra.mxu0 0.0
        %1809 = vmatprep.subr.mxu0 0.0
        %1810 = vmatpush2.msra.mxu0 0.0
        %1811 = vmatprep.subr.mxu0 0.0
        %1812 = vmatpush2.msra.mxu0 0.0
        %1813 = vmatprep.subr.mxu0 0.0
        %1814 = vmatpush2.msra.mxu0 0.0
        %1815 = vmatprep.subr.mxu0 0.0
        %1816 = vmatpush2.msra.mxu0 0.0
        %1817 = vmatprep.subr.mxu0 0.0
        %1818 = vmatpush2.msra.mxu0 0.0
        %1819 = vmatprep.subr.mxu0 0.0
        %1820 = vmatpush2.msra.mxu0 0.0
        %1821 = vmatprep.subr.mxu0 0.0
        %1822 = vmatpush2.msra.mxu0 0.0
        %1823 = vmatprep.subr.mxu0 0.0
        %1824 = vmatpush2.msra.mxu0 0.0
        %1825 = vmatprep.subr.mxu0 0.0
        %1826 = vmatpush2.msra.mxu0 0.0
        %1827 = vmatprep.subr.mxu0 0.0
        %1828 = vmatpush2.msra.mxu0 0.0
        %1829 = vmatprep.subr.mxu0 0.0
        %1830 = vmatpush2.msra.mxu0 0.0
        %1831 = vmatprep.mubr.f32.mxu0 0.0
        %1832 = vmatmul.mubr.f32.gmra.mxu0 %v195
        %v1833 = vpop.f32.mrf.mxu0
        %v1834 = vadd.f32 0.0, %v1833
        %v1835 = vpop.f32.mrf.mxu0
        %1836 = vmatprep.mubr.f32.mxu0 0.0
        %1837 = vmatmul.mubr.f32.gmra.mxu0 %v198
        %v1838 = vpop.f32.mrf.mxu0
        %v1839 = vadd.f32 0.0, %v1838
        %v1840 = vpop.f32.mrf.mxu0
        %1841 = vmatprep.mubr.f32.mxu0 0.0
        %1842 = vmatmul.mubr.f32.gmra.mxu0 %v201
        %v1843 = vpop.f32.mrf.mxu0
        %v1844 = vadd.f32 0.0, %v1843
        %v1845 = vpop.f32.mrf.mxu0
        %1846 = vmatprep.mubr.f32.mxu0 0.0
        %1847 = vmatmul.mubr.f32.gmra.mxu0 %v204
        %v1848 = vpop.f32.mrf.mxu0
        %v1849 = vadd.f32 0.0, %v1848
        %v1850 = vpop.f32.mrf.mxu0
        %1851 = vmatprep.mubr.f32.mxu0 0.0
        %1852 = vmatmul.mubr.f32.gmra.mxu0 %v207
        %v1853 = vpop.f32.mrf.mxu0
        %v1854 = vadd.f32 0.0, %v1853
        %v1855 = vpop.f32.mrf.mxu0
        %1856 = vmatprep.mubr.f32.mxu0 0.0
        %1857 = vmatmul.mubr.f32.gmra.mxu0 %v210
        %v1858 = vpop.f32.mrf.mxu0
        %v1859 = vadd.f32 0.0, %v1858
        %v1860 = vpop.f32.mrf.mxu0
        %1861 = vmatprep.mubr.f32.mxu0 0.0
        %1862 = vmatmul.mubr.f32.gmra.mxu0 %v213
        %v1863 = vpop.f32.mrf.mxu0
        %v1864 = vadd.f32 0.0, %v1863
        %v1865 = vpop.f32.mrf.mxu0
        %1866 = vmatprep.mubr.f32.mxu0 0.0
        %1867 = vmatmul.mubr.f32.gmra.mxu0 %v216
        %v1868 = vpop.f32.mrf.mxu0
        %v1869 = vadd.f32 0.0, %v1868
        %v1870 = vpop.f32.mrf.mxu0
        %1871 = vmatprep.mubr.f32.mxu0 0.0
        %1872 = vmatmul.mubr.f32.gmra.mxu0 %v219
        %v1873 = vpop.f32.mrf.mxu0
        %v1874 = vadd.f32 0.0, %v1873
        %v1875 = vpop.f32.mrf.mxu0
        %1876 = vmatprep.mubr.f32.mxu0 0.0
        %1877 = vmatmul.mubr.f32.gmra.mxu0 %v222
        %v1878 = vpop.f32.mrf.mxu0
        %v1879 = vadd.f32 0.0, %v1878
        %v1880 = vpop.f32.mrf.mxu0
        %1881 = vmatprep.mubr.f32.mxu0 0.0
        %1882 = vmatmul.mubr.f32.gmra.mxu0 %v225
        %v1883 = vpop.f32.mrf.mxu0
        %v1884 = vadd.f32 0.0, %v1883
        %v1885 = vpop.f32.mrf.mxu0
        %1886 = vmatprep.mubr.f32.mxu0 0.0
        %1887 = vmatmul.mubr.f32.gmra.mxu0 %v228
        %v1888 = vpop.f32.mrf.mxu0
        %v1889 = vadd.f32 0.0, %v1888
        %v1890 = vpop.f32.mrf.mxu0
        %1891 = vmatprep.mubr.f32.mxu0 0.0
        %1892 = vmatmul.mubr.f32.gmra.mxu0 %v231
        %v1893 = vpop.f32.mrf.mxu0
        %v1894 = vadd.f32 0.0, %v1893
        %v1895 = vpop.f32.mrf.mxu0
        %1896 = vmatprep.mubr.f32.mxu0 0.0
        %1897 = vmatmul.mubr.f32.gmra.mxu0 %v234
        %v1898 = vpop.f32.mrf.mxu0
        %v1899 = vadd.f32 0.0, %v1898
        %v1900 = vpop.f32.mrf.mxu0
        %1901 = vmatprep.mubr.f32.mxu0 0.0
        %1902 = vmatmul.mubr.f32.gmra.mxu0 %v237
        %v1903 = vpop.f32.mrf.mxu0
        %v1904 = vadd.f32 0.0, %v1903
        %v1905 = vpop.f32.mrf.mxu0
        %1906 = vmatprep.mubr.f32.mxu0 0.0
        %1907 = vmatmul.mubr.f32.gmra.mxu0 %v240
        %v1908 = vpop.f32.mrf.mxu0
        %v1909 = vadd.f32 0.0, %v1908
        %v1910 = vpop.f32.mrf.mxu0
        %1911 = vmatprep.mubr.f32.mxu0 0.0
        %1912 = vmatmul.mubr.f32.gmra.mxu0 %v243
        %v1913 = vpop.f32.mrf.mxu0
        %v1914 = vadd.f32 0.0, %v1913
        %v1915 = vpop.f32.mrf.mxu0
        %1916 = vmatprep.mubr.f32.mxu0 0.0
        %1917 = vmatmul.mubr.f32.gmra.mxu0 %v246
        %v1918 = vpop.f32.mrf.mxu0
        %v1919 = vadd.f32 0.0, %v1918
        %v1920 = vpop.f32.mrf.mxu0
        %1921 = vmatprep.mubr.f32.mxu0 0.0
        %1922 = vmatmul.mubr.f32.gmra.mxu0 %v249
        %v1923 = vpop.f32.mrf.mxu0
        %v1924 = vadd.f32 0.0, %v1923
        %v1925 = vpop.f32.mrf.mxu0
        %1926 = vdwg.mxu0
        %s1927 = scalar_lea.vmem %s157, 1216 [#allocation2]
        %1928 = vst.msk [vmem:[%s1927] sm:$0xff] %vm415, %v1834
        %1929 = vst.msk [vmem:[%s1927 + $0x8] sm:$0xff] %vm415, %v1839
        %1930 = vst.msk [vmem:[%s1927 + $0x10] sm:$0xff] %vm415, %v1844
        %1931 = vst.msk [vmem:[%s1927 + $0x18] sm:$0xff] %vm415, %v1849
        %1932 = vst.msk [vmem:[%s1927 + $0x20] sm:$0xff] %vm415, %v1854
        %1933 = vst.msk [vmem:[%s1927 + $0x28] sm:$0xff] %vm415, %v1859
        %1934 = vst.msk [vmem:[%s1927 + $0x30] sm:$0xff] %vm415, %v1864
        %1935 = vst.msk [vmem:[%s1927 + $0x38] sm:$0xff] %vm415, %v1869
        %1936 = vst.msk [vmem:[%s1927 + $0x40] sm:$0xff] %vm415, %v1874
        %1937 = vst.msk [vmem:[%s1927 + $0x48] sm:$0xff] %vm415, %v1879
        %1938 = vst.msk [vmem:[%s1927 + $0x50] sm:$0xff] %vm415, %v1884
        %1939 = vst.msk [vmem:[%s1927 + $0x58] sm:$0xff] %vm415, %v1889
        %1940 = vst.msk [vmem:[%s1927 + $0x60] sm:$0xff] %vm415, %v1894
        %1941 = vst.msk [vmem:[%s1927 + $0x68] sm:$0xff] %vm415, %v1899
        %1942 = vst.msk [vmem:[%s1927 + $0x70] sm:$0xff] %vm415, %v1904
        %1943 = vst.msk [vmem:[%s1927 + $0x78] sm:$0xff] %vm415, %v1909
        %1944 = vst.msk [vmem:[%s1927 + $0x80] sm:$0xff] %vm415, %v1914
        %1945 = vst.msk [vmem:[%s1927 + $0x88] sm:$0xff] %vm415, %v1919
        %1946 = vst.msk [vmem:[%s1927 + $0x90] sm:$0xff] %vm415, %v1924
        %s1947 = scalar_lea.vmem %s1, 360
        %v1948 = vld [vmem:[%s1947] sm:$0xff]
        %v1949 = vld [vmem:[%s1947 + $0x8] sm:$0xff]
        %v1950 = vld [vmem:[%s1947 + $0x10] sm:$0xff]
        %v1951 = vld [vmem:[%s1947 + $0x18] sm:$0xff]
        %v1952 = vld [vmem:[%s1947 + $0x20] sm:$0x1f]
        %v1954 = vsel %vm251, %v1952, 0
        %1956 = vmatprep.subr.mxu0 0.0
        %1957 = vmatpush1.msra.mxu0 0.0
        %1958 = vmatprep.subr.mxu0 0.0
        %1959 = vmatpush1.msra.mxu0 0.0
        %1960 = vmatprep.subr.mxu0 0.0
        %1961 = vmatpush1.msra.mxu0 0.0
        %1962 = vmatprep.subr.mxu0 0.0
        %1963 = vmatpush1.msra.mxu0 0.0
        %1964 = vmatprep.subr.mxu0 0.0
        %1965 = vmatpush1.msra.mxu0 0.0
        %1966 = vmatprep.subr.mxu0 0.0
        %1967 = vmatpush1.msra.mxu0 0.0
        %1968 = vmatprep.subr.mxu0 0.0
        %1969 = vmatpush1.msra.mxu0 0.0
        %1970 = vmatprep.subr.mxu0 0.0
        %1971 = vmatpush1.msra.mxu0 0.0
        %1972 = vmatprep.subr.mxu0 0.0
        %1973 = vmatpush1.msra.mxu0 0.0
        %1974 = vmatprep.subr.mxu0 0.0
        %1975 = vmatpush1.msra.mxu0 0.0
        %1976 = vmatprep.subr.mxu0 0.0
        %1977 = vmatpush1.msra.mxu0 0.0
        %1978 = vmatprep.subr.mxu0 0.0
        %1979 = vmatpush1.msra.mxu0 %v1954
        %1980 = vmatprep.subr.mxu0 0.0
        %1981 = vmatpush1.msra.mxu0 %v1951
        %1982 = vmatprep.subr.mxu0 0.0
        %1983 = vmatpush1.msra.mxu0 %v1950
        %1984 = vmatprep.subr.mxu0 0.0
        %1985 = vmatpush1.msra.mxu0 %v1949
        %1986 = vmatprep.subr.mxu0 0.0
        %1987 = vmatpush1.msra.mxu0 %v1948
        %1988 = vmatprep.subr.mxu0 0.0
        %1989 = vmatpush2.msra.mxu0 0.0
        %1990 = vmatprep.subr.mxu0 0.0
        %1991 = vmatpush2.msra.mxu0 0.0
        %1992 = vmatprep.subr.mxu0 0.0
        %1993 = vmatpush2.msra.mxu0 0.0
        %1994 = vmatprep.subr.mxu0 0.0
        %1995 = vmatpush2.msra.mxu0 0.0
        %1996 = vmatprep.subr.mxu0 0.0
        %1997 = vmatpush2.msra.mxu0 0.0
        %1998 = vmatprep.subr.mxu0 0.0
        %1999 = vmatpush2.msra.mxu0 0.0
        %2000 = vmatprep.subr.mxu0 0.0
        %2001 = vmatpush2.msra.mxu0 0.0
        %2002 = vmatprep.subr.mxu0 0.0
        %2003 = vmatpush2.msra.mxu0 0.0
        %2004 = vmatprep.subr.mxu0 0.0
        %2005 = vmatpush2.msra.mxu0 0.0
        %2006 = vmatprep.subr.mxu0 0.0
        %2007 = vmatpush2.msra.mxu0 0.0
        %2008 = vmatprep.subr.mxu0 0.0
        %2009 = vmatpush2.msra.mxu0 0.0
        %2010 = vmatprep.subr.mxu0 0.0
        %2011 = vmatpush2.msra.mxu0 0.0
        %2012 = vmatprep.subr.mxu0 0.0
        %2013 = vmatpush2.msra.mxu0 0.0
        %2014 = vmatprep.subr.mxu0 0.0
        %2015 = vmatpush2.msra.mxu0 0.0
        %2016 = vmatprep.subr.mxu0 0.0
        %2017 = vmatpush2.msra.mxu0 0.0
        %2018 = vmatprep.subr.mxu0 0.0
        %2019 = vmatpush2.msra.mxu0 0.0
        %2020 = vmatprep.mubr.f32.mxu0 0.0
        %2021 = vmatmul.mubr.f32.gmra.mxu0 %v195
        %v2022 = vpop.f32.mrf.mxu0
        %v2023 = vadd.f32 0.0, %v2022
        %v2024 = vpop.f32.mrf.mxu0
        %2025 = vmatprep.mubr.f32.mxu0 0.0
        %2026 = vmatmul.mubr.f32.gmra.mxu0 %v198
        %v2027 = vpop.f32.mrf.mxu0
        %v2028 = vadd.f32 0.0, %v2027
        %v2029 = vpop.f32.mrf.mxu0
        %2030 = vmatprep.mubr.f32.mxu0 0.0
        %2031 = vmatmul.mubr.f32.gmra.mxu0 %v201
        %v2032 = vpop.f32.mrf.mxu0
        %v2033 = vadd.f32 0.0, %v2032
        %v2034 = vpop.f32.mrf.mxu0
        %2035 = vmatprep.mubr.f32.mxu0 0.0
        %2036 = vmatmul.mubr.f32.gmra.mxu0 %v204
        %v2037 = vpop.f32.mrf.mxu0
        %v2038 = vadd.f32 0.0, %v2037
        %v2039 = vpop.f32.mrf.mxu0
        %2040 = vmatprep.mubr.f32.mxu0 0.0
        %2041 = vmatmul.mubr.f32.gmra.mxu0 %v207
        %v2042 = vpop.f32.mrf.mxu0
        %v2043 = vadd.f32 0.0, %v2042
        %v2044 = vpop.f32.mrf.mxu0
        %2045 = vmatprep.mubr.f32.mxu0 0.0
        %2046 = vmatmul.mubr.f32.gmra.mxu0 %v210
        %v2047 = vpop.f32.mrf.mxu0
        %v2048 = vadd.f32 0.0, %v2047
        %v2049 = vpop.f32.mrf.mxu0
        %2050 = vmatprep.mubr.f32.mxu0 0.0
        %2051 = vmatmul.mubr.f32.gmra.mxu0 %v213
        %v2052 = vpop.f32.mrf.mxu0
        %v2053 = vadd.f32 0.0, %v2052
        %v2054 = vpop.f32.mrf.mxu0
        %2055 = vmatprep.mubr.f32.mxu0 0.0
        %2056 = vmatmul.mubr.f32.gmra.mxu0 %v216
        %v2057 = vpop.f32.mrf.mxu0
        %v2058 = vadd.f32 0.0, %v2057
        %v2059 = vpop.f32.mrf.mxu0
        %2060 = vmatprep.mubr.f32.mxu0 0.0
        %2061 = vmatmul.mubr.f32.gmra.mxu0 %v219
        %v2062 = vpop.f32.mrf.mxu0
        %v2063 = vadd.f32 0.0, %v2062
        %v2064 = vpop.f32.mrf.mxu0
        %2065 = vmatprep.mubr.f32.mxu0 0.0
        %2066 = vmatmul.mubr.f32.gmra.mxu0 %v222
        %v2067 = vpop.f32.mrf.mxu0
        %v2068 = vadd.f32 0.0, %v2067
        %v2069 = vpop.f32.mrf.mxu0
        %2070 = vmatprep.mubr.f32.mxu0 0.0
        %2071 = vmatmul.mubr.f32.gmra.mxu0 %v225
        %v2072 = vpop.f32.mrf.mxu0
        %v2073 = vadd.f32 0.0, %v2072
        %v2074 = vpop.f32.mrf.mxu0
        %2075 = vmatprep.mubr.f32.mxu0 0.0
        %2076 = vmatmul.mubr.f32.gmra.mxu0 %v228
        %v2077 = vpop.f32.mrf.mxu0
        %v2078 = vadd.f32 0.0, %v2077
        %v2079 = vpop.f32.mrf.mxu0
        %2080 = vmatprep.mubr.f32.mxu0 0.0
        %2081 = vmatmul.mubr.f32.gmra.mxu0 %v231
        %v2082 = vpop.f32.mrf.mxu0
        %v2083 = vadd.f32 0.0, %v2082
        %v2084 = vpop.f32.mrf.mxu0
        %2085 = vmatprep.mubr.f32.mxu0 0.0
        %2086 = vmatmul.mubr.f32.gmra.mxu0 %v234
        %v2087 = vpop.f32.mrf.mxu0
        %v2088 = vadd.f32 0.0, %v2087
        %v2089 = vpop.f32.mrf.mxu0
        %2090 = vmatprep.mubr.f32.mxu0 0.0
        %2091 = vmatmul.mubr.f32.gmra.mxu0 %v237
        %v2092 = vpop.f32.mrf.mxu0
        %v2093 = vadd.f32 0.0, %v2092
        %v2094 = vpop.f32.mrf.mxu0
        %2095 = vmatprep.mubr.f32.mxu0 0.0
        %2096 = vmatmul.mubr.f32.gmra.mxu0 %v240
        %v2097 = vpop.f32.mrf.mxu0
        %v2098 = vadd.f32 0.0, %v2097
        %v2099 = vpop.f32.mrf.mxu0
        %2100 = vmatprep.mubr.f32.mxu0 0.0
        %2101 = vmatmul.mubr.f32.gmra.mxu0 %v243
        %v2102 = vpop.f32.mrf.mxu0
        %v2103 = vadd.f32 0.0, %v2102
        %v2104 = vpop.f32.mrf.mxu0
        %2105 = vmatprep.mubr.f32.mxu0 0.0
        %2106 = vmatmul.mubr.f32.gmra.mxu0 %v246
        %v2107 = vpop.f32.mrf.mxu0
        %v2108 = vadd.f32 0.0, %v2107
        %v2109 = vpop.f32.mrf.mxu0
        %2110 = vmatprep.mubr.f32.mxu0 0.0
        %2111 = vmatmul.mubr.f32.gmra.mxu0 %v249
        %v2112 = vpop.f32.mrf.mxu0
        %v2113 = vadd.f32 0.0, %v2112
        %v2114 = vpop.f32.mrf.mxu0
        %2115 = vdwg.mxu0
        %s2116 = scalar_lea.vmem %s157, 1368 [#allocation2]
        %2117 = vst.msk [vmem:[%s2116] sm:$0xff] %vm415, %v2023
        %2118 = vst.msk [vmem:[%s2116 + $0x8] sm:$0xff] %vm415, %v2028
        %2119 = vst.msk [vmem:[%s2116 + $0x10] sm:$0xff] %vm415, %v2033
        %2120 = vst.msk [vmem:[%s2116 + $0x18] sm:$0xff] %vm415, %v2038
        %2121 = vst.msk [vmem:[%s2116 + $0x20] sm:$0xff] %vm415, %v2043
        %2122 = vst.msk [vmem:[%s2116 + $0x28] sm:$0xff] %vm415, %v2048
        %2123 = vst.msk [vmem:[%s2116 + $0x30] sm:$0xff] %vm415, %v2053
        %2124 = vst.msk [vmem:[%s2116 + $0x38] sm:$0xff] %vm415, %v2058
        %2125 = vst.msk [vmem:[%s2116 + $0x40] sm:$0xff] %vm415, %v2063
        %2126 = vst.msk [vmem:[%s2116 + $0x48] sm:$0xff] %vm415, %v2068
        %2127 = vst.msk [vmem:[%s2116 + $0x50] sm:$0xff] %vm415, %v2073
        %2128 = vst.msk [vmem:[%s2116 + $0x58] sm:$0xff] %vm415, %v2078
        %2129 = vst.msk [vmem:[%s2116 + $0x60] sm:$0xff] %vm415, %v2083
        %2130 = vst.msk [vmem:[%s2116 + $0x68] sm:$0xff] %vm415, %v2088
        %2131 = vst.msk [vmem:[%s2116 + $0x70] sm:$0xff] %vm415, %v2093
        %2132 = vst.msk [vmem:[%s2116 + $0x78] sm:$0xff] %vm415, %v2098
        %2133 = vst.msk [vmem:[%s2116 + $0x80] sm:$0xff] %vm415, %v2103
        %2134 = vst.msk [vmem:[%s2116 + $0x88] sm:$0xff] %vm415, %v2108
        %2135 = vst.msk [vmem:[%s2116 + $0x90] sm:$0xff] %vm415, %v2113
        %s2136 = scalar_lea.vmem %s1, 400
        %v2137 = vld [vmem:[%s2136] sm:$0xff]
        %v2138 = vld [vmem:[%s2136 + $0x8] sm:$0xff]
        %v2139 = vld [vmem:[%s2136 + $0x10] sm:$0xff]
        %v2140 = vld [vmem:[%s2136 + $0x18] sm:$0xff]
        %v2141 = vld [vmem:[%s2136 + $0x20] sm:$0x1f]
        %v2143 = vsel %vm251, %v2141, 0
        %2145 = vmatprep.subr.mxu0 0.0
        %2146 = vmatpush1.msra.mxu0 0.0
        %2147 = vmatprep.subr.mxu0 0.0
        %2148 = vmatpush1.msra.mxu0 0.0
        %2149 = vmatprep.subr.mxu0 0.0
        %2150 = vmatpush1.msra.mxu0 0.0
        %2151 = vmatprep.subr.mxu0 0.0
        %2152 = vmatpush1.msra.mxu0 0.0
        %2153 = vmatprep.subr.mxu0 0.0
        %2154 = vmatpush1.msra.mxu0 0.0
        %2155 = vmatprep.subr.mxu0 0.0
        %2156 = vmatpush1.msra.mxu0 0.0
        %2157 = vmatprep.subr.mxu0 0.0
        %2158 = vmatpush1.msra.mxu0 0.0
        %2159 = vmatprep.subr.mxu0 0.0
        %2160 = vmatpush1.msra.mxu0 0.0
        %2161 = vmatprep.subr.mxu0 0.0
        %2162 = vmatpush1.msra.mxu0 0.0
        %2163 = vmatprep.subr.mxu0 0.0
        %2164 = vmatpush1.msra.mxu0 0.0
        %2165 = vmatprep.subr.mxu0 0.0
        %2166 = vmatpush1.msra.mxu0 0.0
        %2167 = vmatprep.subr.mxu0 0.0
        %2168 = vmatpush1.msra.mxu0 %v2143
        %2169 = vmatprep.subr.mxu0 0.0
        %2170 = vmatpush1.msra.mxu0 %v2140
        %2171 = vmatprep.subr.mxu0 0.0
        %2172 = vmatpush1.msra.mxu0 %v2139
        %2173 = vmatprep.subr.mxu0 0.0
        %2174 = vmatpush1.msra.mxu0 %v2138
        %2175 = vmatprep.subr.mxu0 0.0
        %2176 = vmatpush1.msra.mxu0 %v2137
        %2177 = vmatprep.subr.mxu0 0.0
        %2178 = vmatpush2.msra.mxu0 0.0
        %2179 = vmatprep.subr.mxu0 0.0
        %2180 = vmatpush2.msra.mxu0 0.0
        %2181 = vmatprep.subr.mxu0 0.0
        %2182 = vmatpush2.msra.mxu0 0.0
        %2183 = vmatprep.subr.mxu0 0.0
        %2184 = vmatpush2.msra.mxu0 0.0
        %2185 = vmatprep.subr.mxu0 0.0
        %2186 = vmatpush2.msra.mxu0 0.0
        %2187 = vmatprep.subr.mxu0 0.0
        %2188 = vmatpush2.msra.mxu0 0.0
        %2189 = vmatprep.subr.mxu0 0.0
        %2190 = vmatpush2.msra.mxu0 0.0
        %2191 = vmatprep.subr.mxu0 0.0
        %2192 = vmatpush2.msra.mxu0 0.0
        %2193 = vmatprep.subr.mxu0 0.0
        %2194 = vmatpush2.msra.mxu0 0.0
        %2195 = vmatprep.subr.mxu0 0.0
        %2196 = vmatpush2.msra.mxu0 0.0
        %2197 = vmatprep.subr.mxu0 0.0
        %2198 = vmatpush2.msra.mxu0 0.0
        %2199 = vmatprep.subr.mxu0 0.0
        %2200 = vmatpush2.msra.mxu0 0.0
        %2201 = vmatprep.subr.mxu0 0.0
        %2202 = vmatpush2.msra.mxu0 0.0
        %2203 = vmatprep.subr.mxu0 0.0
        %2204 = vmatpush2.msra.mxu0 0.0
        %2205 = vmatprep.subr.mxu0 0.0
        %2206 = vmatpush2.msra.mxu0 0.0
        %2207 = vmatprep.subr.mxu0 0.0
        %2208 = vmatpush2.msra.mxu0 0.0
        %2209 = vmatprep.mubr.f32.mxu0 0.0
        %2210 = vmatmul.mubr.f32.gmra.mxu0 %v195
        %v2211 = vpop.f32.mrf.mxu0
        %v2212 = vadd.f32 0.0, %v2211
        %v2213 = vpop.f32.mrf.mxu0
        %2214 = vmatprep.mubr.f32.mxu0 0.0
        %2215 = vmatmul.mubr.f32.gmra.mxu0 %v198
        %v2216 = vpop.f32.mrf.mxu0
        %v2217 = vadd.f32 0.0, %v2216
        %v2218 = vpop.f32.mrf.mxu0
        %2219 = vmatprep.mubr.f32.mxu0 0.0
        %2220 = vmatmul.mubr.f32.gmra.mxu0 %v201
        %v2221 = vpop.f32.mrf.mxu0
        %v2222 = vadd.f32 0.0, %v2221
        %v2223 = vpop.f32.mrf.mxu0
        %2224 = vmatprep.mubr.f32.mxu0 0.0
        %2225 = vmatmul.mubr.f32.gmra.mxu0 %v204
        %v2226 = vpop.f32.mrf.mxu0
        %v2227 = vadd.f32 0.0, %v2226
        %v2228 = vpop.f32.mrf.mxu0
        %2229 = vmatprep.mubr.f32.mxu0 0.0
        %2230 = vmatmul.mubr.f32.gmra.mxu0 %v207
        %v2231 = vpop.f32.mrf.mxu0
        %v2232 = vadd.f32 0.0, %v2231
        %v2233 = vpop.f32.mrf.mxu0
        %2234 = vmatprep.mubr.f32.mxu0 0.0
        %2235 = vmatmul.mubr.f32.gmra.mxu0 %v210
        %v2236 = vpop.f32.mrf.mxu0
        %v2237 = vadd.f32 0.0, %v2236
        %v2238 = vpop.f32.mrf.mxu0
        %2239 = vmatprep.mubr.f32.mxu0 0.0
        %2240 = vmatmul.mubr.f32.gmra.mxu0 %v213
        %v2241 = vpop.f32.mrf.mxu0
        %v2242 = vadd.f32 0.0, %v2241
        %v2243 = vpop.f32.mrf.mxu0
        %2244 = vmatprep.mubr.f32.mxu0 0.0
        %2245 = vmatmul.mubr.f32.gmra.mxu0 %v216
        %v2246 = vpop.f32.mrf.mxu0
        %v2247 = vadd.f32 0.0, %v2246
        %v2248 = vpop.f32.mrf.mxu0
        %2249 = vmatprep.mubr.f32.mxu0 0.0
        %2250 = vmatmul.mubr.f32.gmra.mxu0 %v219
        %v2251 = vpop.f32.mrf.mxu0
        %v2252 = vadd.f32 0.0, %v2251
        %v2253 = vpop.f32.mrf.mxu0
        %2254 = vmatprep.mubr.f32.mxu0 0.0
        %2255 = vmatmul.mubr.f32.gmra.mxu0 %v222
        %v2256 = vpop.f32.mrf.mxu0
        %v2257 = vadd.f32 0.0, %v2256
        %v2258 = vpop.f32.mrf.mxu0
        %2259 = vmatprep.mubr.f32.mxu0 0.0
        %2260 = vmatmul.mubr.f32.gmra.mxu0 %v225
        %v2261 = vpop.f32.mrf.mxu0
        %v2262 = vadd.f32 0.0, %v2261
        %v2263 = vpop.f32.mrf.mxu0
        %2264 = vmatprep.mubr.f32.mxu0 0.0
        %2265 = vmatmul.mubr.f32.gmra.mxu0 %v228
        %v2266 = vpop.f32.mrf.mxu0
        %v2267 = vadd.f32 0.0, %v2266
        %v2268 = vpop.f32.mrf.mxu0
        %2269 = vmatprep.mubr.f32.mxu0 0.0
        %2270 = vmatmul.mubr.f32.gmra.mxu0 %v231
        %v2271 = vpop.f32.mrf.mxu0
        %v2272 = vadd.f32 0.0, %v2271
        %v2273 = vpop.f32.mrf.mxu0
        %2274 = vmatprep.mubr.f32.mxu0 0.0
        %2275 = vmatmul.mubr.f32.gmra.mxu0 %v234
        %v2276 = vpop.f32.mrf.mxu0
        %v2277 = vadd.f32 0.0, %v2276
        %v2278 = vpop.f32.mrf.mxu0
        %2279 = vmatprep.mubr.f32.mxu0 0.0
        %2280 = vmatmul.mubr.f32.gmra.mxu0 %v237
        %v2281 = vpop.f32.mrf.mxu0
        %v2282 = vadd.f32 0.0, %v2281
        %v2283 = vpop.f32.mrf.mxu0
        %2284 = vmatprep.mubr.f32.mxu0 0.0
        %2285 = vmatmul.mubr.f32.gmra.mxu0 %v240
        %v2286 = vpop.f32.mrf.mxu0
        %v2287 = vadd.f32 0.0, %v2286
        %v2288 = vpop.f32.mrf.mxu0
        %2289 = vmatprep.mubr.f32.mxu0 0.0
        %2290 = vmatmul.mubr.f32.gmra.mxu0 %v243
        %v2291 = vpop.f32.mrf.mxu0
        %v2292 = vadd.f32 0.0, %v2291
        %v2293 = vpop.f32.mrf.mxu0
        %2294 = vmatprep.mubr.f32.mxu0 0.0
        %2295 = vmatmul.mubr.f32.gmra.mxu0 %v246
        %v2296 = vpop.f32.mrf.mxu0
        %v2297 = vadd.f32 0.0, %v2296
        %v2298 = vpop.f32.mrf.mxu0
        %2299 = vmatprep.mubr.f32.mxu0 0.0
        %2300 = vmatmul.mubr.f32.gmra.mxu0 %v249
        %v2301 = vpop.f32.mrf.mxu0
        %v2302 = vadd.f32 0.0, %v2301
        %v2303 = vpop.f32.mrf.mxu0
        %2304 = vdwg.mxu0
        %s2305 = scalar_lea.vmem %s157, 1520 [#allocation2]
        %2306 = vst.msk [vmem:[%s2305] sm:$0xff] %vm415, %v2212
        %2307 = vst.msk [vmem:[%s2305 + $0x8] sm:$0xff] %vm415, %v2217
        %2308 = vst.msk [vmem:[%s2305 + $0x10] sm:$0xff] %vm415, %v2222
        %2309 = vst.msk [vmem:[%s2305 + $0x18] sm:$0xff] %vm415, %v2227
        %2310 = vst.msk [vmem:[%s2305 + $0x20] sm:$0xff] %vm415, %v2232
        %2311 = vst.msk [vmem:[%s2305 + $0x28] sm:$0xff] %vm415, %v2237
        %2312 = vst.msk [vmem:[%s2305 + $0x30] sm:$0xff] %vm415, %v2242
        %2313 = vst.msk [vmem:[%s2305 + $0x38] sm:$0xff] %vm415, %v2247
        %2314 = vst.msk [vmem:[%s2305 + $0x40] sm:$0xff] %vm415, %v2252
        %2315 = vst.msk [vmem:[%s2305 + $0x48] sm:$0xff] %vm415, %v2257
        %2316 = vst.msk [vmem:[%s2305 + $0x50] sm:$0xff] %vm415, %v2262
        %2317 = vst.msk [vmem:[%s2305 + $0x58] sm:$0xff] %vm415, %v2267
        %2318 = vst.msk [vmem:[%s2305 + $0x60] sm:$0xff] %vm415, %v2272
        %2319 = vst.msk [vmem:[%s2305 + $0x68] sm:$0xff] %vm415, %v2277
        %2320 = vst.msk [vmem:[%s2305 + $0x70] sm:$0xff] %vm415, %v2282
        %2321 = vst.msk [vmem:[%s2305 + $0x78] sm:$0xff] %vm415, %v2287
        %2322 = vst.msk [vmem:[%s2305 + $0x80] sm:$0xff] %vm415, %v2292
        %2323 = vst.msk [vmem:[%s2305 + $0x88] sm:$0xff] %vm415, %v2297
        %2324 = vst.msk [vmem:[%s2305 + $0x90] sm:$0xff] %vm415, %v2302
        %s2325 = scalar_lea.vmem %s1, 440
        %v2326 = vld [vmem:[%s2325] sm:$0xff]
        %v2327 = vld [vmem:[%s2325 + $0x8] sm:$0xff]
        %v2328 = vld [vmem:[%s2325 + $0x10] sm:$0xff]
        %v2329 = vld [vmem:[%s2325 + $0x18] sm:$0xff]
        %v2330 = vld [vmem:[%s2325 + $0x20] sm:$0x1f]
        %v2332 = vsel %vm251, %v2330, 0
        %2334 = vmatprep.subr.mxu0 0.0
        %2335 = vmatpush1.msra.mxu0 0.0
        %2336 = vmatprep.subr.mxu0 0.0
        %2337 = vmatpush1.msra.mxu0 0.0
        %2338 = vmatprep.subr.mxu0 0.0
        %2339 = vmatpush1.msra.mxu0 0.0
        %2340 = vmatprep.subr.mxu0 0.0
        %2341 = vmatpush1.msra.mxu0 0.0
        %2342 = vmatprep.subr.mxu0 0.0
        %2343 = vmatpush1.msra.mxu0 0.0
        %2344 = vmatprep.subr.mxu0 0.0
        %2345 = vmatpush1.msra.mxu0 0.0
        %2346 = vmatprep.subr.mxu0 0.0
        %2347 = vmatpush1.msra.mxu0 0.0
        %2348 = vmatprep.subr.mxu0 0.0
        %2349 = vmatpush1.msra.mxu0 0.0
        %2350 = vmatprep.subr.mxu0 0.0
        %2351 = vmatpush1.msra.mxu0 0.0
        %2352 = vmatprep.subr.mxu0 0.0
        %2353 = vmatpush1.msra.mxu0 0.0
        %2354 = vmatprep.subr.mxu0 0.0
        %2355 = vmatpush1.msra.mxu0 0.0
        %2356 = vmatprep.subr.mxu0 0.0
        %2357 = vmatpush1.msra.mxu0 %v2332
        %2358 = vmatprep.subr.mxu0 0.0
        %2359 = vmatpush1.msra.mxu0 %v2329
        %2360 = vmatprep.subr.mxu0 0.0
        %2361 = vmatpush1.msra.mxu0 %v2328
        %2362 = vmatprep.subr.mxu0 0.0
        %2363 = vmatpush1.msra.mxu0 %v2327
        %2364 = vmatprep.subr.mxu0 0.0
        %2365 = vmatpush1.msra.mxu0 %v2326
        %2366 = vmatprep.subr.mxu0 0.0
        %2367 = vmatpush2.msra.mxu0 0.0
        %2368 = vmatprep.subr.mxu0 0.0
        %2369 = vmatpush2.msra.mxu0 0.0
        %2370 = vmatprep.subr.mxu0 0.0
        %2371 = vmatpush2.msra.mxu0 0.0
        %2372 = vmatprep.subr.mxu0 0.0
        %2373 = vmatpush2.msra.mxu0 0.0
        %2374 = vmatprep.subr.mxu0 0.0
        %2375 = vmatpush2.msra.mxu0 0.0
        %2376 = vmatprep.subr.mxu0 0.0
        %2377 = vmatpush2.msra.mxu0 0.0
        %2378 = vmatprep.subr.mxu0 0.0
        %2379 = vmatpush2.msra.mxu0 0.0
        %2380 = vmatprep.subr.mxu0 0.0
        %2381 = vmatpush2.msra.mxu0 0.0
        %2382 = vmatprep.subr.mxu0 0.0
        %2383 = vmatpush2.msra.mxu0 0.0
        %2384 = vmatprep.subr.mxu0 0.0
        %2385 = vmatpush2.msra.mxu0 0.0
        %2386 = vmatprep.subr.mxu0 0.0
        %2387 = vmatpush2.msra.mxu0 0.0
        %2388 = vmatprep.subr.mxu0 0.0
        %2389 = vmatpush2.msra.mxu0 0.0
        %2390 = vmatprep.subr.mxu0 0.0
        %2391 = vmatpush2.msra.mxu0 0.0
        %2392 = vmatprep.subr.mxu0 0.0
        %2393 = vmatpush2.msra.mxu0 0.0
        %2394 = vmatprep.subr.mxu0 0.0
        %2395 = vmatpush2.msra.mxu0 0.0
        %2396 = vmatprep.subr.mxu0 0.0
        %2397 = vmatpush2.msra.mxu0 0.0
        %2398 = vmatprep.mubr.f32.mxu0 0.0
        %2399 = vmatmul.mubr.f32.gmra.mxu0 %v195
        %v2400 = vpop.f32.mrf.mxu0
        %v2401 = vadd.f32 0.0, %v2400
        %v2402 = vpop.f32.mrf.mxu0
        %2403 = vmatprep.mubr.f32.mxu0 0.0
        %2404 = vmatmul.mubr.f32.gmra.mxu0 %v198
        %v2405 = vpop.f32.mrf.mxu0
        %v2406 = vadd.f32 0.0, %v2405
        %v2407 = vpop.f32.mrf.mxu0
        %2408 = vmatprep.mubr.f32.mxu0 0.0
        %2409 = vmatmul.mubr.f32.gmra.mxu0 %v201
        %v2410 = vpop.f32.mrf.mxu0
        %v2411 = vadd.f32 0.0, %v2410
        %v2412 = vpop.f32.mrf.mxu0
        %2413 = vmatprep.mubr.f32.mxu0 0.0
        %2414 = vmatmul.mubr.f32.gmra.mxu0 %v204
        %v2415 = vpop.f32.mrf.mxu0
        %v2416 = vadd.f32 0.0, %v2415
        %v2417 = vpop.f32.mrf.mxu0
        %2418 = vmatprep.mubr.f32.mxu0 0.0
        %2419 = vmatmul.mubr.f32.gmra.mxu0 %v207
        %v2420 = vpop.f32.mrf.mxu0
        %v2421 = vadd.f32 0.0, %v2420
        %v2422 = vpop.f32.mrf.mxu0
        %2423 = vmatprep.mubr.f32.mxu0 0.0
        %2424 = vmatmul.mubr.f32.gmra.mxu0 %v210
        %v2425 = vpop.f32.mrf.mxu0
        %v2426 = vadd.f32 0.0, %v2425
        %v2427 = vpop.f32.mrf.mxu0
        %2428 = vmatprep.mubr.f32.mxu0 0.0
        %2429 = vmatmul.mubr.f32.gmra.mxu0 %v213
        %v2430 = vpop.f32.mrf.mxu0
        %v2431 = vadd.f32 0.0, %v2430
        %v2432 = vpop.f32.mrf.mxu0
        %2433 = vmatprep.mubr.f32.mxu0 0.0
        %2434 = vmatmul.mubr.f32.gmra.mxu0 %v216
        %v2435 = vpop.f32.mrf.mxu0
        %v2436 = vadd.f32 0.0, %v2435
        %v2437 = vpop.f32.mrf.mxu0
        %2438 = vmatprep.mubr.f32.mxu0 0.0
        %2439 = vmatmul.mubr.f32.gmra.mxu0 %v219
        %v2440 = vpop.f32.mrf.mxu0
        %v2441 = vadd.f32 0.0, %v2440
        %v2442 = vpop.f32.mrf.mxu0
        %2443 = vmatprep.mubr.f32.mxu0 0.0
        %2444 = vmatmul.mubr.f32.gmra.mxu0 %v222
        %v2445 = vpop.f32.mrf.mxu0
        %v2446 = vadd.f32 0.0, %v2445
        %v2447 = vpop.f32.mrf.mxu0
        %2448 = vmatprep.mubr.f32.mxu0 0.0
        %2449 = vmatmul.mubr.f32.gmra.mxu0 %v225
        %v2450 = vpop.f32.mrf.mxu0
        %v2451 = vadd.f32 0.0, %v2450
        %v2452 = vpop.f32.mrf.mxu0
        %2453 = vmatprep.mubr.f32.mxu0 0.0
        %2454 = vmatmul.mubr.f32.gmra.mxu0 %v228
        %v2455 = vpop.f32.mrf.mxu0
        %v2456 = vadd.f32 0.0, %v2455
        %v2457 = vpop.f32.mrf.mxu0
        %2458 = vmatprep.mubr.f32.mxu0 0.0
        %2459 = vmatmul.mubr.f32.gmra.mxu0 %v231
        %v2460 = vpop.f32.mrf.mxu0
        %v2461 = vadd.f32 0.0, %v2460
        %v2462 = vpop.f32.mrf.mxu0
        %2463 = vmatprep.mubr.f32.mxu0 0.0
        %2464 = vmatmul.mubr.f32.gmra.mxu0 %v234
        %v2465 = vpop.f32.mrf.mxu0
        %v2466 = vadd.f32 0.0, %v2465
        %v2467 = vpop.f32.mrf.mxu0
        %2468 = vmatprep.mubr.f32.mxu0 0.0
        %2469 = vmatmul.mubr.f32.gmra.mxu0 %v237
        %v2470 = vpop.f32.mrf.mxu0
        %v2471 = vadd.f32 0.0, %v2470
        %v2472 = vpop.f32.mrf.mxu0
        %2473 = vmatprep.mubr.f32.mxu0 0.0
        %2474 = vmatmul.mubr.f32.gmra.mxu0 %v240
        %v2475 = vpop.f32.mrf.mxu0
        %v2476 = vadd.f32 0.0, %v2475
        %v2477 = vpop.f32.mrf.mxu0
        %2478 = vmatprep.mubr.f32.mxu0 0.0
        %2479 = vmatmul.mubr.f32.gmra.mxu0 %v243
        %v2480 = vpop.f32.mrf.mxu0
        %v2481 = vadd.f32 0.0, %v2480
        %v2482 = vpop.f32.mrf.mxu0
        %2483 = vmatprep.mubr.f32.mxu0 0.0
        %2484 = vmatmul.mubr.f32.gmra.mxu0 %v246
        %v2485 = vpop.f32.mrf.mxu0
        %v2486 = vadd.f32 0.0, %v2485
        %v2487 = vpop.f32.mrf.mxu0
        %2488 = vmatprep.mubr.f32.mxu0 0.0
        %2489 = vmatmul.mubr.f32.gmra.mxu0 %v249
        %v2490 = vpop.f32.mrf.mxu0
        %v2491 = vadd.f32 0.0, %v2490
        %v2492 = vpop.f32.mrf.mxu0
        %2493 = vdwg.mxu0
        %s2494 = scalar_lea.vmem %s157, 1672 [#allocation2]
        %2495 = vst.msk [vmem:[%s2494] sm:$0xff] %vm415, %v2401
        %2496 = vst.msk [vmem:[%s2494 + $0x8] sm:$0xff] %vm415, %v2406
        %2497 = vst.msk [vmem:[%s2494 + $0x10] sm:$0xff] %vm415, %v2411
        %2498 = vst.msk [vmem:[%s2494 + $0x18] sm:$0xff] %vm415, %v2416
        %2499 = vst.msk [vmem:[%s2494 + $0x20] sm:$0xff] %vm415, %v2421
        %2500 = vst.msk [vmem:[%s2494 + $0x28] sm:$0xff] %vm415, %v2426
        %2501 = vst.msk [vmem:[%s2494 + $0x30] sm:$0xff] %vm415, %v2431
        %2502 = vst.msk [vmem:[%s2494 + $0x38] sm:$0xff] %vm415, %v2436
        %2503 = vst.msk [vmem:[%s2494 + $0x40] sm:$0xff] %vm415, %v2441
        %2504 = vst.msk [vmem:[%s2494 + $0x48] sm:$0xff] %vm415, %v2446
        %2505 = vst.msk [vmem:[%s2494 + $0x50] sm:$0xff] %vm415, %v2451
        %2506 = vst.msk [vmem:[%s2494 + $0x58] sm:$0xff] %vm415, %v2456
        %2507 = vst.msk [vmem:[%s2494 + $0x60] sm:$0xff] %vm415, %v2461
        %2508 = vst.msk [vmem:[%s2494 + $0x68] sm:$0xff] %vm415, %v2466
        %2509 = vst.msk [vmem:[%s2494 + $0x70] sm:$0xff] %vm415, %v2471
        %2510 = vst.msk [vmem:[%s2494 + $0x78] sm:$0xff] %vm415, %v2476
        %2511 = vst.msk [vmem:[%s2494 + $0x80] sm:$0xff] %vm415, %v2481
        %2512 = vst.msk [vmem:[%s2494 + $0x88] sm:$0xff] %vm415, %v2486
        %2513 = vst.msk [vmem:[%s2494 + $0x90] sm:$0xff] %vm415, %v2491
        %s2514 = scalar_lea.vmem %s1, 480
        %v2515 = vld [vmem:[%s2514] sm:$0xff]
        %v2516 = vld [vmem:[%s2514 + $0x8] sm:$0xff]
        %v2517 = vld [vmem:[%s2514 + $0x10] sm:$0xff]
        %v2518 = vld [vmem:[%s2514 + $0x18] sm:$0xff]
        %v2519 = vld [vmem:[%s2514 + $0x20] sm:$0x1f]
        %v2521 = vsel %vm251, %v2519, 0
        %2523 = vmatprep.subr.mxu0 0.0
        %2524 = vmatpush1.msra.mxu0 0.0
        %2525 = vmatprep.subr.mxu0 0.0
        %2526 = vmatpush1.msra.mxu0 0.0
        %2527 = vmatprep.subr.mxu0 0.0
        %2528 = vmatpush1.msra.mxu0 0.0
        %2529 = vmatprep.subr.mxu0 0.0
        %2530 = vmatpush1.msra.mxu0 0.0
        %2531 = vmatprep.subr.mxu0 0.0
        %2532 = vmatpush1.msra.mxu0 0.0
        %2533 = vmatprep.subr.mxu0 0.0
        %2534 = vmatpush1.msra.mxu0 0.0
        %2535 = vmatprep.subr.mxu0 0.0
        %2536 = vmatpush1.msra.mxu0 0.0
        %2537 = vmatprep.subr.mxu0 0.0
        %2538 = vmatpush1.msra.mxu0 0.0
        %2539 = vmatprep.subr.mxu0 0.0
        %2540 = vmatpush1.msra.mxu0 0.0
        %2541 = vmatprep.subr.mxu0 0.0
        %2542 = vmatpush1.msra.mxu0 0.0
        %2543 = vmatprep.subr.mxu0 0.0
        %2544 = vmatpush1.msra.mxu0 0.0
        %2545 = vmatprep.subr.mxu0 0.0
        %2546 = vmatpush1.msra.mxu0 %v2521
        %2547 = vmatprep.subr.mxu0 0.0
        %2548 = vmatpush1.msra.mxu0 %v2518
        %2549 = vmatprep.subr.mxu0 0.0
        %2550 = vmatpush1.msra.mxu0 %v2517
        %2551 = vmatprep.subr.mxu0 0.0
        %2552 = vmatpush1.msra.mxu0 %v2516
        %2553 = vmatprep.subr.mxu0 0.0
        %2554 = vmatpush1.msra.mxu0 %v2515
        %2555 = vmatprep.subr.mxu0 0.0
        %2556 = vmatpush2.msra.mxu0 0.0
        %2557 = vmatprep.subr.mxu0 0.0
        %2558 = vmatpush2.msra.mxu0 0.0
        %2559 = vmatprep.subr.mxu0 0.0
        %2560 = vmatpush2.msra.mxu0 0.0
        %2561 = vmatprep.subr.mxu0 0.0
        %2562 = vmatpush2.msra.mxu0 0.0
        %2563 = vmatprep.subr.mxu0 0.0
        %2564 = vmatpush2.msra.mxu0 0.0
        %2565 = vmatprep.subr.mxu0 0.0
        %2566 = vmatpush2.msra.mxu0 0.0
        %2567 = vmatprep.subr.mxu0 0.0
        %2568 = vmatpush2.msra.mxu0 0.0
        %2569 = vmatprep.subr.mxu0 0.0
        %2570 = vmatpush2.msra.mxu0 0.0
        %2571 = vmatprep.subr.mxu0 0.0
        %2572 = vmatpush2.msra.mxu0 0.0
        %2573 = vmatprep.subr.mxu0 0.0
        %2574 = vmatpush2.msra.mxu0 0.0
        %2575 = vmatprep.subr.mxu0 0.0
        %2576 = vmatpush2.msra.mxu0 0.0
        %2577 = vmatprep.subr.mxu0 0.0
        %2578 = vmatpush2.msra.mxu0 0.0
        %2579 = vmatprep.subr.mxu0 0.0
        %2580 = vmatpush2.msra.mxu0 0.0
        %2581 = vmatprep.subr.mxu0 0.0
        %2582 = vmatpush2.msra.mxu0 0.0
        %2583 = vmatprep.subr.mxu0 0.0
        %2584 = vmatpush2.msra.mxu0 0.0
        %2585 = vmatprep.subr.mxu0 0.0
        %2586 = vmatpush2.msra.mxu0 0.0
        %2587 = vmatprep.mubr.f32.mxu0 0.0
        %2588 = vmatmul.mubr.f32.gmra.mxu0 %v195
        %v2589 = vpop.f32.mrf.mxu0
        %v2590 = vadd.f32 0.0, %v2589
        %v2591 = vpop.f32.mrf.mxu0
        %2592 = vmatprep.mubr.f32.mxu0 0.0
        %2593 = vmatmul.mubr.f32.gmra.mxu0 %v198
        %v2594 = vpop.f32.mrf.mxu0
        %v2595 = vadd.f32 0.0, %v2594
        %v2596 = vpop.f32.mrf.mxu0
        %2597 = vmatprep.mubr.f32.mxu0 0.0
        %2598 = vmatmul.mubr.f32.gmra.mxu0 %v201
        %v2599 = vpop.f32.mrf.mxu0
        %v2600 = vadd.f32 0.0, %v2599
        %v2601 = vpop.f32.mrf.mxu0
        %2602 = vmatprep.mubr.f32.mxu0 0.0
        %2603 = vmatmul.mubr.f32.gmra.mxu0 %v204
        %v2604 = vpop.f32.mrf.mxu0
        %v2605 = vadd.f32 0.0, %v2604
        %v2606 = vpop.f32.mrf.mxu0
        %2607 = vmatprep.mubr.f32.mxu0 0.0
        %2608 = vmatmul.mubr.f32.gmra.mxu0 %v207
        %v2609 = vpop.f32.mrf.mxu0
        %v2610 = vadd.f32 0.0, %v2609
        %v2611 = vpop.f32.mrf.mxu0
        %2612 = vmatprep.mubr.f32.mxu0 0.0
        %2613 = vmatmul.mubr.f32.gmra.mxu0 %v210
        %v2614 = vpop.f32.mrf.mxu0
        %v2615 = vadd.f32 0.0, %v2614
        %v2616 = vpop.f32.mrf.mxu0
        %2617 = vmatprep.mubr.f32.mxu0 0.0
        %2618 = vmatmul.mubr.f32.gmra.mxu0 %v213
        %v2619 = vpop.f32.mrf.mxu0
        %v2620 = vadd.f32 0.0, %v2619
        %v2621 = vpop.f32.mrf.mxu0
        %2622 = vmatprep.mubr.f32.mxu0 0.0
        %2623 = vmatmul.mubr.f32.gmra.mxu0 %v216
        %v2624 = vpop.f32.mrf.mxu0
        %v2625 = vadd.f32 0.0, %v2624
        %v2626 = vpop.f32.mrf.mxu0
        %2627 = vmatprep.mubr.f32.mxu0 0.0
        %2628 = vmatmul.mubr.f32.gmra.mxu0 %v219
        %v2629 = vpop.f32.mrf.mxu0
        %v2630 = vadd.f32 0.0, %v2629
        %v2631 = vpop.f32.mrf.mxu0
        %2632 = vmatprep.mubr.f32.mxu0 0.0
        %2633 = vmatmul.mubr.f32.gmra.mxu0 %v222
        %v2634 = vpop.f32.mrf.mxu0
        %v2635 = vadd.f32 0.0, %v2634
        %v2636 = vpop.f32.mrf.mxu0
        %2637 = vmatprep.mubr.f32.mxu0 0.0
        %2638 = vmatmul.mubr.f32.gmra.mxu0 %v225
        %v2639 = vpop.f32.mrf.mxu0
        %v2640 = vadd.f32 0.0, %v2639
        %v2641 = vpop.f32.mrf.mxu0
        %2642 = vmatprep.mubr.f32.mxu0 0.0
        %2643 = vmatmul.mubr.f32.gmra.mxu0 %v228
        %v2644 = vpop.f32.mrf.mxu0
        %v2645 = vadd.f32 0.0, %v2644
        %v2646 = vpop.f32.mrf.mxu0
        %2647 = vmatprep.mubr.f32.mxu0 0.0
        %2648 = vmatmul.mubr.f32.gmra.mxu0 %v231
        %v2649 = vpop.f32.mrf.mxu0
        %v2650 = vadd.f32 0.0, %v2649
        %v2651 = vpop.f32.mrf.mxu0
        %2652 = vmatprep.mubr.f32.mxu0 0.0
        %2653 = vmatmul.mubr.f32.gmra.mxu0 %v234
        %v2654 = vpop.f32.mrf.mxu0
        %v2655 = vadd.f32 0.0, %v2654
        %v2656 = vpop.f32.mrf.mxu0
        %2657 = vmatprep.mubr.f32.mxu0 0.0
        %2658 = vmatmul.mubr.f32.gmra.mxu0 %v237
        %v2659 = vpop.f32.mrf.mxu0
        %v2660 = vadd.f32 0.0, %v2659
        %v2661 = vpop.f32.mrf.mxu0
        %2662 = vmatprep.mubr.f32.mxu0 0.0
        %2663 = vmatmul.mubr.f32.gmra.mxu0 %v240
        %v2664 = vpop.f32.mrf.mxu0
        %v2665 = vadd.f32 0.0, %v2664
        %v2666 = vpop.f32.mrf.mxu0
        %2667 = vmatprep.mubr.f32.mxu0 0.0
        %2668 = vmatmul.mubr.f32.gmra.mxu0 %v243
        %v2669 = vpop.f32.mrf.mxu0
        %v2670 = vadd.f32 0.0, %v2669
        %v2671 = vpop.f32.mrf.mxu0
        %2672 = vmatprep.mubr.f32.mxu0 0.0
        %2673 = vmatmul.mubr.f32.gmra.mxu0 %v246
        %v2674 = vpop.f32.mrf.mxu0
        %v2675 = vadd.f32 0.0, %v2674
        %v2676 = vpop.f32.mrf.mxu0
        %2677 = vmatprep.mubr.f32.mxu0 0.0
        %2678 = vmatmul.mubr.f32.gmra.mxu0 %v249
        %v2679 = vpop.f32.mrf.mxu0
        %v2680 = vadd.f32 0.0, %v2679
        %v2681 = vpop.f32.mrf.mxu0
        %2682 = vdwg.mxu0
        %s2683 = scalar_lea.vmem %s157, 1824 [#allocation2]
        %2684 = vst.msk [vmem:[%s2683] sm:$0xff] %vm415, %v2590
        %2685 = vst.msk [vmem:[%s2683 + $0x8] sm:$0xff] %vm415, %v2595
        %2686 = vst.msk [vmem:[%s2683 + $0x10] sm:$0xff] %vm415, %v2600
        %2687 = vst.msk [vmem:[%s2683 + $0x18] sm:$0xff] %vm415, %v2605
        %2688 = vst.msk [vmem:[%s2683 + $0x20] sm:$0xff] %vm415, %v2610
        %2689 = vst.msk [vmem:[%s2683 + $0x28] sm:$0xff] %vm415, %v2615
        %2690 = vst.msk [vmem:[%s2683 + $0x30] sm:$0xff] %vm415, %v2620
        %2691 = vst.msk [vmem:[%s2683 + $0x38] sm:$0xff] %vm415, %v2625
        %2692 = vst.msk [vmem:[%s2683 + $0x40] sm:$0xff] %vm415, %v2630
        %2693 = vst.msk [vmem:[%s2683 + $0x48] sm:$0xff] %vm415, %v2635
        %2694 = vst.msk [vmem:[%s2683 + $0x50] sm:$0xff] %vm415, %v2640
        %2695 = vst.msk [vmem:[%s2683 + $0x58] sm:$0xff] %vm415, %v2645
        %2696 = vst.msk [vmem:[%s2683 + $0x60] sm:$0xff] %vm415, %v2650
        %2697 = vst.msk [vmem:[%s2683 + $0x68] sm:$0xff] %vm415, %v2655
        %2698 = vst.msk [vmem:[%s2683 + $0x70] sm:$0xff] %vm415, %v2660
        %2699 = vst.msk [vmem:[%s2683 + $0x78] sm:$0xff] %vm415, %v2665
        %2700 = vst.msk [vmem:[%s2683 + $0x80] sm:$0xff] %vm415, %v2670
        %2701 = vst.msk [vmem:[%s2683 + $0x88] sm:$0xff] %vm415, %v2675
        %2702 = vst.msk [vmem:[%s2683 + $0x90] sm:$0xff] %vm415, %v2680
        %s2703 = scalar_lea.vmem %s1, 520
        %v2704 = vld [vmem:[%s2703] sm:$0xff]
        %v2705 = vld [vmem:[%s2703 + $0x8] sm:$0xff]
        %v2706 = vld [vmem:[%s2703 + $0x10] sm:$0xff]
        %v2707 = vld [vmem:[%s2703 + $0x18] sm:$0xff]
        %v2708 = vld [vmem:[%s2703 + $0x20] sm:$0x1f]
        %v2710 = vsel %vm251, %v2708, 0
        %2712 = vmatprep.subr.mxu0 0.0
        %2713 = vmatpush1.msra.mxu0 0.0
        %2714 = vmatprep.subr.mxu0 0.0
        %2715 = vmatpush1.msra.mxu0 0.0
        %2716 = vmatprep.subr.mxu0 0.0
        %2717 = vmatpush1.msra.mxu0 0.0
        %2718 = vmatprep.subr.mxu0 0.0
        %2719 = vmatpush1.msra.mxu0 0.0
        %2720 = vmatprep.subr.mxu0 0.0
        %2721 = vmatpush1.msra.mxu0 0.0
        %2722 = vmatprep.subr.mxu0 0.0
        %2723 = vmatpush1.msra.mxu0 0.0
        %2724 = vmatprep.subr.mxu0 0.0
        %2725 = vmatpush1.msra.mxu0 0.0
        %2726 = vmatprep.subr.mxu0 0.0
        %2727 = vmatpush1.msra.mxu0 0.0
        %2728 = vmatprep.subr.mxu0 0.0
        %2729 = vmatpush1.msra.mxu0 0.0
        %2730 = vmatprep.subr.mxu0 0.0
        %2731 = vmatpush1.msra.mxu0 0.0
        %2732 = vmatprep.subr.mxu0 0.0
        %2733 = vmatpush1.msra.mxu0 0.0
        %2734 = vmatprep.subr.mxu0 0.0
        %2735 = vmatpush1.msra.mxu0 %v2710
        %2736 = vmatprep.subr.mxu0 0.0
        %2737 = vmatpush1.msra.mxu0 %v2707
        %2738 = vmatprep.subr.mxu0 0.0
        %2739 = vmatpush1.msra.mxu0 %v2706
        %2740 = vmatprep.subr.mxu0 0.0
        %2741 = vmatpush1.msra.mxu0 %v2705
        %2742 = vmatprep.subr.mxu0 0.0
        %2743 = vmatpush1.msra.mxu0 %v2704
        %2744 = vmatprep.subr.mxu0 0.0
        %2745 = vmatpush2.msra.mxu0 0.0
        %2746 = vmatprep.subr.mxu0 0.0
        %2747 = vmatpush2.msra.mxu0 0.0
        %2748 = vmatprep.subr.mxu0 0.0
        %2749 = vmatpush2.msra.mxu0 0.0
        %2750 = vmatprep.subr.mxu0 0.0
        %2751 = vmatpush2.msra.mxu0 0.0
        %2752 = vmatprep.subr.mxu0 0.0
        %2753 = vmatpush2.msra.mxu0 0.0
        %2754 = vmatprep.subr.mxu0 0.0
        %2755 = vmatpush2.msra.mxu0 0.0
        %2756 = vmatprep.subr.mxu0 0.0
        %2757 = vmatpush2.msra.mxu0 0.0
        %2758 = vmatprep.subr.mxu0 0.0
        %2759 = vmatpush2.msra.mxu0 0.0
        %2760 = vmatprep.subr.mxu0 0.0
        %2761 = vmatpush2.msra.mxu0 0.0
        %2762 = vmatprep.subr.mxu0 0.0
        %2763 = vmatpush2.msra.mxu0 0.0
        %2764 = vmatprep.subr.mxu0 0.0
        %2765 = vmatpush2.msra.mxu0 0.0
        %2766 = vmatprep.subr.mxu0 0.0
        %2767 = vmatpush2.msra.mxu0 0.0
        %2768 = vmatprep.subr.mxu0 0.0
        %2769 = vmatpush2.msra.mxu0 0.0
        %2770 = vmatprep.subr.mxu0 0.0
        %2771 = vmatpush2.msra.mxu0 0.0
        %2772 = vmatprep.subr.mxu0 0.0
        %2773 = vmatpush2.msra.mxu0 0.0
        %2774 = vmatprep.subr.mxu0 0.0
        %2775 = vmatpush2.msra.mxu0 0.0
        %2776 = vmatprep.mubr.f32.mxu0 0.0
        %2777 = vmatmul.mubr.f32.gmra.mxu0 %v195
        %v2778 = vpop.f32.mrf.mxu0
        %v2779 = vadd.f32 0.0, %v2778
        %v2780 = vpop.f32.mrf.mxu0
        %2781 = vmatprep.mubr.f32.mxu0 0.0
        %2782 = vmatmul.mubr.f32.gmra.mxu0 %v198
        %v2783 = vpop.f32.mrf.mxu0
        %v2784 = vadd.f32 0.0, %v2783
        %v2785 = vpop.f32.mrf.mxu0
        %2786 = vmatprep.mubr.f32.mxu0 0.0
        %2787 = vmatmul.mubr.f32.gmra.mxu0 %v201
        %v2788 = vpop.f32.mrf.mxu0
        %v2789 = vadd.f32 0.0, %v2788
        %v2790 = vpop.f32.mrf.mxu0
        %2791 = vmatprep.mubr.f32.mxu0 0.0
        %2792 = vmatmul.mubr.f32.gmra.mxu0 %v204
        %v2793 = vpop.f32.mrf.mxu0
        %v2794 = vadd.f32 0.0, %v2793
        %v2795 = vpop.f32.mrf.mxu0
        %2796 = vmatprep.mubr.f32.mxu0 0.0
        %2797 = vmatmul.mubr.f32.gmra.mxu0 %v207
        %v2798 = vpop.f32.mrf.mxu0
        %v2799 = vadd.f32 0.0, %v2798
        %v2800 = vpop.f32.mrf.mxu0
        %2801 = vmatprep.mubr.f32.mxu0 0.0
        %2802 = vmatmul.mubr.f32.gmra.mxu0 %v210
        %v2803 = vpop.f32.mrf.mxu0
        %v2804 = vadd.f32 0.0, %v2803
        %v2805 = vpop.f32.mrf.mxu0
        %2806 = vmatprep.mubr.f32.mxu0 0.0
        %2807 = vmatmul.mubr.f32.gmra.mxu0 %v213
        %v2808 = vpop.f32.mrf.mxu0
        %v2809 = vadd.f32 0.0, %v2808
        %v2810 = vpop.f32.mrf.mxu0
        %2811 = vmatprep.mubr.f32.mxu0 0.0
        %2812 = vmatmul.mubr.f32.gmra.mxu0 %v216
        %v2813 = vpop.f32.mrf.mxu0
        %v2814 = vadd.f32 0.0, %v2813
        %v2815 = vpop.f32.mrf.mxu0
        %2816 = vmatprep.mubr.f32.mxu0 0.0
        %2817 = vmatmul.mubr.f32.gmra.mxu0 %v219
        %v2818 = vpop.f32.mrf.mxu0
        %v2819 = vadd.f32 0.0, %v2818
        %v2820 = vpop.f32.mrf.mxu0
        %2821 = vmatprep.mubr.f32.mxu0 0.0
        %2822 = vmatmul.mubr.f32.gmra.mxu0 %v222
        %v2823 = vpop.f32.mrf.mxu0
        %v2824 = vadd.f32 0.0, %v2823
        %v2825 = vpop.f32.mrf.mxu0
        %2826 = vmatprep.mubr.f32.mxu0 0.0
        %2827 = vmatmul.mubr.f32.gmra.mxu0 %v225
        %v2828 = vpop.f32.mrf.mxu0
        %v2829 = vadd.f32 0.0, %v2828
        %v2830 = vpop.f32.mrf.mxu0
        %2831 = vmatprep.mubr.f32.mxu0 0.0
        %2832 = vmatmul.mubr.f32.gmra.mxu0 %v228
        %v2833 = vpop.f32.mrf.mxu0
        %v2834 = vadd.f32 0.0, %v2833
        %v2835 = vpop.f32.mrf.mxu0
        %2836 = vmatprep.mubr.f32.mxu0 0.0
        %2837 = vmatmul.mubr.f32.gmra.mxu0 %v231
        %v2838 = vpop.f32.mrf.mxu0
        %v2839 = vadd.f32 0.0, %v2838
        %v2840 = vpop.f32.mrf.mxu0
        %2841 = vmatprep.mubr.f32.mxu0 0.0
        %2842 = vmatmul.mubr.f32.gmra.mxu0 %v234
        %v2843 = vpop.f32.mrf.mxu0
        %v2844 = vadd.f32 0.0, %v2843
        %v2845 = vpop.f32.mrf.mxu0
        %2846 = vmatprep.mubr.f32.mxu0 0.0
        %2847 = vmatmul.mubr.f32.gmra.mxu0 %v237
        %v2848 = vpop.f32.mrf.mxu0
        %v2849 = vadd.f32 0.0, %v2848
        %v2850 = vpop.f32.mrf.mxu0
        %2851 = vmatprep.mubr.f32.mxu0 0.0
        %2852 = vmatmul.mubr.f32.gmra.mxu0 %v240
        %v2853 = vpop.f32.mrf.mxu0
        %v2854 = vadd.f32 0.0, %v2853
        %v2855 = vpop.f32.mrf.mxu0
        %2856 = vmatprep.mubr.f32.mxu0 0.0
        %2857 = vmatmul.mubr.f32.gmra.mxu0 %v243
        %v2858 = vpop.f32.mrf.mxu0
        %v2859 = vadd.f32 0.0, %v2858
        %v2860 = vpop.f32.mrf.mxu0
        %2861 = vmatprep.mubr.f32.mxu0 0.0
        %2862 = vmatmul.mubr.f32.gmra.mxu0 %v246
        %v2863 = vpop.f32.mrf.mxu0
        %v2864 = vadd.f32 0.0, %v2863
        %v2865 = vpop.f32.mrf.mxu0
        %2866 = vmatprep.mubr.f32.mxu0 0.0
        %2867 = vmatmul.mubr.f32.gmra.mxu0 %v249
        %v2868 = vpop.f32.mrf.mxu0
        %v2869 = vadd.f32 0.0, %v2868
        %v2870 = vpop.f32.mrf.mxu0
        %2871 = vdwg.mxu0
        %s2872 = scalar_lea.vmem %s157, 1976 [#allocation2]
        %2873 = vst.msk [vmem:[%s2872] sm:$0xff] %vm415, %v2779
        %2874 = vst.msk [vmem:[%s2872 + $0x8] sm:$0xff] %vm415, %v2784
        %2875 = vst.msk [vmem:[%s2872 + $0x10] sm:$0xff] %vm415, %v2789
        %2876 = vst.msk [vmem:[%s2872 + $0x18] sm:$0xff] %vm415, %v2794
        %2877 = vst.msk [vmem:[%s2872 + $0x20] sm:$0xff] %vm415, %v2799
        %2878 = vst.msk [vmem:[%s2872 + $0x28] sm:$0xff] %vm415, %v2804
        %2879 = vst.msk [vmem:[%s2872 + $0x30] sm:$0xff] %vm415, %v2809
        %2880 = vst.msk [vmem:[%s2872 + $0x38] sm:$0xff] %vm415, %v2814
        %2881 = vst.msk [vmem:[%s2872 + $0x40] sm:$0xff] %vm415, %v2819
        %2882 = vst.msk [vmem:[%s2872 + $0x48] sm:$0xff] %vm415, %v2824
        %2883 = vst.msk [vmem:[%s2872 + $0x50] sm:$0xff] %vm415, %v2829
        %2884 = vst.msk [vmem:[%s2872 + $0x58] sm:$0xff] %vm415, %v2834
        %2885 = vst.msk [vmem:[%s2872 + $0x60] sm:$0xff] %vm415, %v2839
        %2886 = vst.msk [vmem:[%s2872 + $0x68] sm:$0xff] %vm415, %v2844
        %2887 = vst.msk [vmem:[%s2872 + $0x70] sm:$0xff] %vm415, %v2849
        %2888 = vst.msk [vmem:[%s2872 + $0x78] sm:$0xff] %vm415, %v2854
        %2889 = vst.msk [vmem:[%s2872 + $0x80] sm:$0xff] %vm415, %v2859
        %2890 = vst.msk [vmem:[%s2872 + $0x88] sm:$0xff] %vm415, %v2864
        %2891 = vst.msk [vmem:[%s2872 + $0x90] sm:$0xff] %vm415, %v2869
        %s2892 = scalar_lea.vmem %s1, 560
        %v2893 = vld [vmem:[%s2892] sm:$0xff]
        %v2894 = vld [vmem:[%s2892 + $0x8] sm:$0xff]
        %v2895 = vld [vmem:[%s2892 + $0x10] sm:$0xff]
        %v2896 = vld [vmem:[%s2892 + $0x18] sm:$0xff]
        %v2897 = vld [vmem:[%s2892 + $0x20] sm:$0x1f]
        %v2899 = vsel %vm251, %v2897, 0
        %2901 = vmatprep.subr.mxu0 0.0
        %2902 = vmatpush1.msra.mxu0 0.0
        %2903 = vmatprep.subr.mxu0 0.0
        %2904 = vmatpush1.msra.mxu0 0.0
        %2905 = vmatprep.subr.mxu0 0.0
        %2906 = vmatpush1.msra.mxu0 0.0
        %2907 = vmatprep.subr.mxu0 0.0
        %2908 = vmatpush1.msra.mxu0 0.0
        %2909 = vmatprep.subr.mxu0 0.0
        %2910 = vmatpush1.msra.mxu0 0.0
        %2911 = vmatprep.subr.mxu0 0.0
        %2912 = vmatpush1.msra.mxu0 0.0
        %2913 = vmatprep.subr.mxu0 0.0
        %2914 = vmatpush1.msra.mxu0 0.0
        %2915 = vmatprep.subr.mxu0 0.0
        %2916 = vmatpush1.msra.mxu0 0.0
        %2917 = vmatprep.subr.mxu0 0.0
        %2918 = vmatpush1.msra.mxu0 0.0
        %2919 = vmatprep.subr.mxu0 0.0
        %2920 = vmatpush1.msra.mxu0 0.0
        %2921 = vmatprep.subr.mxu0 0.0
        %2922 = vmatpush1.msra.mxu0 0.0
        %2923 = vmatprep.subr.mxu0 0.0
        %2924 = vmatpush1.msra.mxu0 %v2899
        %2925 = vmatprep.subr.mxu0 0.0
        %2926 = vmatpush1.msra.mxu0 %v2896
        %2927 = vmatprep.subr.mxu0 0.0
        %2928 = vmatpush1.msra.mxu0 %v2895
        %2929 = vmatprep.subr.mxu0 0.0
        %2930 = vmatpush1.msra.mxu0 %v2894
        %2931 = vmatprep.subr.mxu0 0.0
        %2932 = vmatpush1.msra.mxu0 %v2893
        %2933 = vmatprep.subr.mxu0 0.0
        %2934 = vmatpush2.msra.mxu0 0.0
        %2935 = vmatprep.subr.mxu0 0.0
        %2936 = vmatpush2.msra.mxu0 0.0
        %2937 = vmatprep.subr.mxu0 0.0
        %2938 = vmatpush2.msra.mxu0 0.0
        %2939 = vmatprep.subr.mxu0 0.0
        %2940 = vmatpush2.msra.mxu0 0.0
        %2941 = vmatprep.subr.mxu0 0.0
        %2942 = vmatpush2.msra.mxu0 0.0
        %2943 = vmatprep.subr.mxu0 0.0
        %2944 = vmatpush2.msra.mxu0 0.0
        %2945 = vmatprep.subr.mxu0 0.0
        %2946 = vmatpush2.msra.mxu0 0.0
        %2947 = vmatprep.subr.mxu0 0.0
        %2948 = vmatpush2.msra.mxu0 0.0
        %2949 = vmatprep.subr.mxu0 0.0
        %2950 = vmatpush2.msra.mxu0 0.0
        %2951 = vmatprep.subr.mxu0 0.0
        %2952 = vmatpush2.msra.mxu0 0.0
        %2953 = vmatprep.subr.mxu0 0.0
        %2954 = vmatpush2.msra.mxu0 0.0
        %2955 = vmatprep.subr.mxu0 0.0
        %2956 = vmatpush2.msra.mxu0 0.0
        %2957 = vmatprep.subr.mxu0 0.0
        %2958 = vmatpush2.msra.mxu0 0.0
        %2959 = vmatprep.subr.mxu0 0.0
        %2960 = vmatpush2.msra.mxu0 0.0
        %2961 = vmatprep.subr.mxu0 0.0
        %2962 = vmatpush2.msra.mxu0 0.0
        %2963 = vmatprep.subr.mxu0 0.0
        %2964 = vmatpush2.msra.mxu0 0.0
        %2965 = vmatprep.mubr.f32.mxu0 0.0
        %2966 = vmatmul.mubr.f32.gmra.mxu0 %v195
        %v2967 = vpop.f32.mrf.mxu0
        %v2968 = vadd.f32 0.0, %v2967
        %v2969 = vpop.f32.mrf.mxu0
        %2970 = vmatprep.mubr.f32.mxu0 0.0
        %2971 = vmatmul.mubr.f32.gmra.mxu0 %v198
        %v2972 = vpop.f32.mrf.mxu0
        %v2973 = vadd.f32 0.0, %v2972
        %v2974 = vpop.f32.mrf.mxu0
        %2975 = vmatprep.mubr.f32.mxu0 0.0
        %2976 = vmatmul.mubr.f32.gmra.mxu0 %v201
        %v2977 = vpop.f32.mrf.mxu0
        %v2978 = vadd.f32 0.0, %v2977
        %v2979 = vpop.f32.mrf.mxu0
        %2980 = vmatprep.mubr.f32.mxu0 0.0
        %2981 = vmatmul.mubr.f32.gmra.mxu0 %v204
        %v2982 = vpop.f32.mrf.mxu0
        %v2983 = vadd.f32 0.0, %v2982
        %v2984 = vpop.f32.mrf.mxu0
        %2985 = vmatprep.mubr.f32.mxu0 0.0
        %2986 = vmatmul.mubr.f32.gmra.mxu0 %v207
        %v2987 = vpop.f32.mrf.mxu0
        %v2988 = vadd.f32 0.0, %v2987
        %v2989 = vpop.f32.mrf.mxu0
        %2990 = vmatprep.mubr.f32.mxu0 0.0
        %2991 = vmatmul.mubr.f32.gmra.mxu0 %v210
        %v2992 = vpop.f32.mrf.mxu0
        %v2993 = vadd.f32 0.0, %v2992
        %v2994 = vpop.f32.mrf.mxu0
        %2995 = vmatprep.mubr.f32.mxu0 0.0
        %2996 = vmatmul.mubr.f32.gmra.mxu0 %v213
        %v2997 = vpop.f32.mrf.mxu0
        %v2998 = vadd.f32 0.0, %v2997
        %v2999 = vpop.f32.mrf.mxu0
        %3000 = vmatprep.mubr.f32.mxu0 0.0
        %3001 = vmatmul.mubr.f32.gmra.mxu0 %v216
        %v3002 = vpop.f32.mrf.mxu0
        %v3003 = vadd.f32 0.0, %v3002
        %v3004 = vpop.f32.mrf.mxu0
        %3005 = vmatprep.mubr.f32.mxu0 0.0
        %3006 = vmatmul.mubr.f32.gmra.mxu0 %v219
        %v3007 = vpop.f32.mrf.mxu0
        %v3008 = vadd.f32 0.0, %v3007
        %v3009 = vpop.f32.mrf.mxu0
        %3010 = vmatprep.mubr.f32.mxu0 0.0
        %3011 = vmatmul.mubr.f32.gmra.mxu0 %v222
        %v3012 = vpop.f32.mrf.mxu0
        %v3013 = vadd.f32 0.0, %v3012
        %v3014 = vpop.f32.mrf.mxu0
        %3015 = vmatprep.mubr.f32.mxu0 0.0
        %3016 = vmatmul.mubr.f32.gmra.mxu0 %v225
        %v3017 = vpop.f32.mrf.mxu0
        %v3018 = vadd.f32 0.0, %v3017
        %v3019 = vpop.f32.mrf.mxu0
        %3020 = vmatprep.mubr.f32.mxu0 0.0
        %3021 = vmatmul.mubr.f32.gmra.mxu0 %v228
        %v3022 = vpop.f32.mrf.mxu0
        %v3023 = vadd.f32 0.0, %v3022
        %v3024 = vpop.f32.mrf.mxu0
        %3025 = vmatprep.mubr.f32.mxu0 0.0
        %3026 = vmatmul.mubr.f32.gmra.mxu0 %v231
        %v3027 = vpop.f32.mrf.mxu0
        %v3028 = vadd.f32 0.0, %v3027
        %v3029 = vpop.f32.mrf.mxu0
        %3030 = vmatprep.mubr.f32.mxu0 0.0
        %3031 = vmatmul.mubr.f32.gmra.mxu0 %v234
        %v3032 = vpop.f32.mrf.mxu0
        %v3033 = vadd.f32 0.0, %v3032
        %v3034 = vpop.f32.mrf.mxu0
        %3035 = vmatprep.mubr.f32.mxu0 0.0
        %3036 = vmatmul.mubr.f32.gmra.mxu0 %v237
        %v3037 = vpop.f32.mrf.mxu0
        %v3038 = vadd.f32 0.0, %v3037
        %v3039 = vpop.f32.mrf.mxu0
        %3040 = vmatprep.mubr.f32.mxu0 0.0
        %3041 = vmatmul.mubr.f32.gmra.mxu0 %v240
        %v3042 = vpop.f32.mrf.mxu0
        %v3043 = vadd.f32 0.0, %v3042
        %v3044 = vpop.f32.mrf.mxu0
        %3045 = vmatprep.mubr.f32.mxu0 0.0
        %3046 = vmatmul.mubr.f32.gmra.mxu0 %v243
        %v3047 = vpop.f32.mrf.mxu0
        %v3048 = vadd.f32 0.0, %v3047
        %v3049 = vpop.f32.mrf.mxu0
        %3050 = vmatprep.mubr.f32.mxu0 0.0
        %3051 = vmatmul.mubr.f32.gmra.mxu0 %v246
        %v3052 = vpop.f32.mrf.mxu0
        %v3053 = vadd.f32 0.0, %v3052
        %v3054 = vpop.f32.mrf.mxu0
        %3055 = vmatprep.mubr.f32.mxu0 0.0
        %3056 = vmatmul.mubr.f32.gmra.mxu0 %v249
        %v3057 = vpop.f32.mrf.mxu0
        %v3058 = vadd.f32 0.0, %v3057
        %v3059 = vpop.f32.mrf.mxu0
        %3060 = vdwg.mxu0
        %s3061 = scalar_lea.vmem %s157, 2128 [#allocation2]
        %3062 = vst.msk [vmem:[%s3061] sm:$0xff] %vm415, %v2968
        %3063 = vst.msk [vmem:[%s3061 + $0x8] sm:$0xff] %vm415, %v2973
        %3064 = vst.msk [vmem:[%s3061 + $0x10] sm:$0xff] %vm415, %v2978
        %3065 = vst.msk [vmem:[%s3061 + $0x18] sm:$0xff] %vm415, %v2983
        %3066 = vst.msk [vmem:[%s3061 + $0x20] sm:$0xff] %vm415, %v2988
        %3067 = vst.msk [vmem:[%s3061 + $0x28] sm:$0xff] %vm415, %v2993
        %3068 = vst.msk [vmem:[%s3061 + $0x30] sm:$0xff] %vm415, %v2998
        %3069 = vst.msk [vmem:[%s3061 + $0x38] sm:$0xff] %vm415, %v3003
        %3070 = vst.msk [vmem:[%s3061 + $0x40] sm:$0xff] %vm415, %v3008
        %3071 = vst.msk [vmem:[%s3061 + $0x48] sm:$0xff] %vm415, %v3013
        %3072 = vst.msk [vmem:[%s3061 + $0x50] sm:$0xff] %vm415, %v3018
        %3073 = vst.msk [vmem:[%s3061 + $0x58] sm:$0xff] %vm415, %v3023
        %3074 = vst.msk [vmem:[%s3061 + $0x60] sm:$0xff] %vm415, %v3028
        %3075 = vst.msk [vmem:[%s3061 + $0x68] sm:$0xff] %vm415, %v3033
        %3076 = vst.msk [vmem:[%s3061 + $0x70] sm:$0xff] %vm415, %v3038
        %3077 = vst.msk [vmem:[%s3061 + $0x78] sm:$0xff] %vm415, %v3043
        %3078 = vst.msk [vmem:[%s3061 + $0x80] sm:$0xff] %vm415, %v3048
        %3079 = vst.msk [vmem:[%s3061 + $0x88] sm:$0xff] %vm415, %v3053
        %3080 = vst.msk [vmem:[%s3061 + $0x90] sm:$0xff] %vm415, %v3058
        %s3081 = scalar_lea.vmem %s1, 600
        %v3082 = vld [vmem:[%s3081] sm:$0xff]
        %v3083 = vld [vmem:[%s3081 + $0x8] sm:$0xff]
        %v3084 = vld [vmem:[%s3081 + $0x10] sm:$0xff]
        %v3085 = vld [vmem:[%s3081 + $0x18] sm:$0xff]
        %v3086 = vld [vmem:[%s3081 + $0x20] sm:$0x1f]
        %v3088 = vsel %vm251, %v3086, 0
        %3090 = vmatprep.subr.mxu0 0.0
        %3091 = vmatpush1.msra.mxu0 0.0
        %3092 = vmatprep.subr.mxu0 0.0
        %3093 = vmatpush1.msra.mxu0 0.0
        %3094 = vmatprep.subr.mxu0 0.0
        %3095 = vmatpush1.msra.mxu0 0.0
        %3096 = vmatprep.subr.mxu0 0.0
        %3097 = vmatpush1.msra.mxu0 0.0
        %3098 = vmatprep.subr.mxu0 0.0
        %3099 = vmatpush1.msra.mxu0 0.0
        %3100 = vmatprep.subr.mxu0 0.0
        %3101 = vmatpush1.msra.mxu0 0.0
        %3102 = vmatprep.subr.mxu0 0.0
        %3103 = vmatpush1.msra.mxu0 0.0
        %3104 = vmatprep.subr.mxu0 0.0
        %3105 = vmatpush1.msra.mxu0 0.0
        %3106 = vmatprep.subr.mxu0 0.0
        %3107 = vmatpush1.msra.mxu0 0.0
        %3108 = vmatprep.subr.mxu0 0.0
        %3109 = vmatpush1.msra.mxu0 0.0
        %3110 = vmatprep.subr.mxu0 0.0
        %3111 = vmatpush1.msra.mxu0 0.0
        %3112 = vmatprep.subr.mxu0 0.0
        %3113 = vmatpush1.msra.mxu0 %v3088
        %3114 = vmatprep.subr.mxu0 0.0
        %3115 = vmatpush1.msra.mxu0 %v3085
        %3116 = vmatprep.subr.mxu0 0.0
        %3117 = vmatpush1.msra.mxu0 %v3084
        %3118 = vmatprep.subr.mxu0 0.0
        %3119 = vmatpush1.msra.mxu0 %v3083
        %3120 = vmatprep.subr.mxu0 0.0
        %3121 = vmatpush1.msra.mxu0 %v3082
        %3122 = vmatprep.subr.mxu0 0.0
        %3123 = vmatpush2.msra.mxu0 0.0
        %3124 = vmatprep.subr.mxu0 0.0
        %3125 = vmatpush2.msra.mxu0 0.0
        %3126 = vmatprep.subr.mxu0 0.0
        %3127 = vmatpush2.msra.mxu0 0.0
        %3128 = vmatprep.subr.mxu0 0.0
        %3129 = vmatpush2.msra.mxu0 0.0
        %3130 = vmatprep.subr.mxu0 0.0
        %3131 = vmatpush2.msra.mxu0 0.0
        %3132 = vmatprep.subr.mxu0 0.0
        %3133 = vmatpush2.msra.mxu0 0.0
        %3134 = vmatprep.subr.mxu0 0.0
        %3135 = vmatpush2.msra.mxu0 0.0
        %3136 = vmatprep.subr.mxu0 0.0
        %3137 = vmatpush2.msra.mxu0 0.0
        %3138 = vmatprep.subr.mxu0 0.0
        %3139 = vmatpush2.msra.mxu0 0.0
        %3140 = vmatprep.subr.mxu0 0.0
        %3141 = vmatpush2.msra.mxu0 0.0
        %3142 = vmatprep.subr.mxu0 0.0
        %3143 = vmatpush2.msra.mxu0 0.0
        %3144 = vmatprep.subr.mxu0 0.0
        %3145 = vmatpush2.msra.mxu0 0.0
        %3146 = vmatprep.subr.mxu0 0.0
        %3147 = vmatpush2.msra.mxu0 0.0
        %3148 = vmatprep.subr.mxu0 0.0
        %3149 = vmatpush2.msra.mxu0 0.0
        %3150 = vmatprep.subr.mxu0 0.0
        %3151 = vmatpush2.msra.mxu0 0.0
        %3152 = vmatprep.subr.mxu0 0.0
        %3153 = vmatpush2.msra.mxu0 0.0
        %3154 = vmatprep.mubr.f32.mxu0 0.0
        %3155 = vmatmul.mubr.f32.gmra.mxu0 %v195
        %v3156 = vpop.f32.mrf.mxu0
        %v3157 = vadd.f32 0.0, %v3156
        %v3158 = vpop.f32.mrf.mxu0
        %3159 = vmatprep.mubr.f32.mxu0 0.0
        %3160 = vmatmul.mubr.f32.gmra.mxu0 %v198
        %v3161 = vpop.f32.mrf.mxu0
        %v3162 = vadd.f32 0.0, %v3161
        %v3163 = vpop.f32.mrf.mxu0
        %3164 = vmatprep.mubr.f32.mxu0 0.0
        %3165 = vmatmul.mubr.f32.gmra.mxu0 %v201
        %v3166 = vpop.f32.mrf.mxu0
        %v3167 = vadd.f32 0.0, %v3166
        %v3168 = vpop.f32.mrf.mxu0
        %3169 = vmatprep.mubr.f32.mxu0 0.0
        %3170 = vmatmul.mubr.f32.gmra.mxu0 %v204
        %v3171 = vpop.f32.mrf.mxu0
        %v3172 = vadd.f32 0.0, %v3171
        %v3173 = vpop.f32.mrf.mxu0
        %3174 = vmatprep.mubr.f32.mxu0 0.0
        %3175 = vmatmul.mubr.f32.gmra.mxu0 %v207
        %v3176 = vpop.f32.mrf.mxu0
        %v3177 = vadd.f32 0.0, %v3176
        %v3178 = vpop.f32.mrf.mxu0
        %3179 = vmatprep.mubr.f32.mxu0 0.0
        %3180 = vmatmul.mubr.f32.gmra.mxu0 %v210
        %v3181 = vpop.f32.mrf.mxu0
        %v3182 = vadd.f32 0.0, %v3181
        %v3183 = vpop.f32.mrf.mxu0
        %3184 = vmatprep.mubr.f32.mxu0 0.0
        %3185 = vmatmul.mubr.f32.gmra.mxu0 %v213
        %v3186 = vpop.f32.mrf.mxu0
        %v3187 = vadd.f32 0.0, %v3186
        %v3188 = vpop.f32.mrf.mxu0
        %3189 = vmatprep.mubr.f32.mxu0 0.0
        %3190 = vmatmul.mubr.f32.gmra.mxu0 %v216
        %v3191 = vpop.f32.mrf.mxu0
        %v3192 = vadd.f32 0.0, %v3191
        %v3193 = vpop.f32.mrf.mxu0
        %3194 = vmatprep.mubr.f32.mxu0 0.0
        %3195 = vmatmul.mubr.f32.gmra.mxu0 %v219
        %v3196 = vpop.f32.mrf.mxu0
        %v3197 = vadd.f32 0.0, %v3196
        %v3198 = vpop.f32.mrf.mxu0
        %3199 = vmatprep.mubr.f32.mxu0 0.0
        %3200 = vmatmul.mubr.f32.gmra.mxu0 %v222
        %v3201 = vpop.f32.mrf.mxu0
        %v3202 = vadd.f32 0.0, %v3201
        %v3203 = vpop.f32.mrf.mxu0
        %3204 = vmatprep.mubr.f32.mxu0 0.0
        %3205 = vmatmul.mubr.f32.gmra.mxu0 %v225
        %v3206 = vpop.f32.mrf.mxu0
        %v3207 = vadd.f32 0.0, %v3206
        %v3208 = vpop.f32.mrf.mxu0
        %3209 = vmatprep.mubr.f32.mxu0 0.0
        %3210 = vmatmul.mubr.f32.gmra.mxu0 %v228
        %v3211 = vpop.f32.mrf.mxu0
        %v3212 = vadd.f32 0.0, %v3211
        %v3213 = vpop.f32.mrf.mxu0
        %3214 = vmatprep.mubr.f32.mxu0 0.0
        %3215 = vmatmul.mubr.f32.gmra.mxu0 %v231
        %v3216 = vpop.f32.mrf.mxu0
        %v3217 = vadd.f32 0.0, %v3216
        %v3218 = vpop.f32.mrf.mxu0
        %3219 = vmatprep.mubr.f32.mxu0 0.0
        %3220 = vmatmul.mubr.f32.gmra.mxu0 %v234
        %v3221 = vpop.f32.mrf.mxu0
        %v3222 = vadd.f32 0.0, %v3221
        %v3223 = vpop.f32.mrf.mxu0
        %3224 = vmatprep.mubr.f32.mxu0 0.0
        %3225 = vmatmul.mubr.f32.gmra.mxu0 %v237
        %v3226 = vpop.f32.mrf.mxu0
        %v3227 = vadd.f32 0.0, %v3226
        %v3228 = vpop.f32.mrf.mxu0
        %3229 = vmatprep.mubr.f32.mxu0 0.0
        %3230 = vmatmul.mubr.f32.gmra.mxu0 %v240
        %v3231 = vpop.f32.mrf.mxu0
        %v3232 = vadd.f32 0.0, %v3231
        %v3233 = vpop.f32.mrf.mxu0
        %3234 = vmatprep.mubr.f32.mxu0 0.0
        %3235 = vmatmul.mubr.f32.gmra.mxu0 %v243
        %v3236 = vpop.f32.mrf.mxu0
        %v3237 = vadd.f32 0.0, %v3236
        %v3238 = vpop.f32.mrf.mxu0
        %3239 = vmatprep.mubr.f32.mxu0 0.0
        %3240 = vmatmul.mubr.f32.gmra.mxu0 %v246
        %v3241 = vpop.f32.mrf.mxu0
        %v3242 = vadd.f32 0.0, %v3241
        %v3243 = vpop.f32.mrf.mxu0
        %3244 = vmatprep.mubr.f32.mxu0 0.0
        %3245 = vmatmul.mubr.f32.gmra.mxu0 %v249
        %v3246 = vpop.f32.mrf.mxu0
        %v3247 = vadd.f32 0.0, %v3246
        %v3248 = vpop.f32.mrf.mxu0
        %3249 = vdwg.mxu0
        %s3250 = scalar_lea.vmem %s157, 2280 [#allocation2]
        %3251 = vst.msk [vmem:[%s3250] sm:$0xff] %vm415, %v3157
        %3252 = vst.msk [vmem:[%s3250 + $0x8] sm:$0xff] %vm415, %v3162
        %3253 = vst.msk [vmem:[%s3250 + $0x10] sm:$0xff] %vm415, %v3167
        %3254 = vst.msk [vmem:[%s3250 + $0x18] sm:$0xff] %vm415, %v3172
        %3255 = vst.msk [vmem:[%s3250 + $0x20] sm:$0xff] %vm415, %v3177
        %3256 = vst.msk [vmem:[%s3250 + $0x28] sm:$0xff] %vm415, %v3182
        %3257 = vst.msk [vmem:[%s3250 + $0x30] sm:$0xff] %vm415, %v3187
        %3258 = vst.msk [vmem:[%s3250 + $0x38] sm:$0xff] %vm415, %v3192
        %3259 = vst.msk [vmem:[%s3250 + $0x40] sm:$0xff] %vm415, %v3197
        %3260 = vst.msk [vmem:[%s3250 + $0x48] sm:$0xff] %vm415, %v3202
        %3261 = vst.msk [vmem:[%s3250 + $0x50] sm:$0xff] %vm415, %v3207
        %3262 = vst.msk [vmem:[%s3250 + $0x58] sm:$0xff] %vm415, %v3212
        %3263 = vst.msk [vmem:[%s3250 + $0x60] sm:$0xff] %vm415, %v3217
        %3264 = vst.msk [vmem:[%s3250 + $0x68] sm:$0xff] %vm415, %v3222
        %3265 = vst.msk [vmem:[%s3250 + $0x70] sm:$0xff] %vm415, %v3227
        %3266 = vst.msk [vmem:[%s3250 + $0x78] sm:$0xff] %vm415, %v3232
        %3267 = vst.msk [vmem:[%s3250 + $0x80] sm:$0xff] %vm415, %v3237
        %3268 = vst.msk [vmem:[%s3250 + $0x88] sm:$0xff] %vm415, %v3242
        %3269 = vst.msk [vmem:[%s3250 + $0x90] sm:$0xff] %vm415, %v3247
        %s3270 = sand.u32 %s84, 1
        %s3271 = sand.u32 %s84, 1
        %s3272 = smul.addr %s3271, 2432
        %s3273 = scalar_lea.vmem [#allocation2], %s3272
        // Predicated region
        $region29: #{tpu_custom_call.1} parent=27 // pred_check
          %p3274 = pneg %p94
        $region30: #{tpu_custom_call.1} parent=27 // pred_check_branch
          %3276 = sbr.rel (%p3274) target = $region32
        $region31: #{tpu_custom_call.1} parent=27 // pred_region
          %s3277 = smul.u32 19, %s18
          %s3278 = smul.addr %s17, 608
          %s3279 = sadd.s32 %s3277, %s3278
          %s3280 = smul.addr %s3279, 8
          %s3281 = scalar_lea.vmem %s2, %s3280
          // Predicated region
          $region33: #{tpu_custom_call.1} parent=31 // pred_check
            _
          $region34: #{tpu_custom_call.1} parent=31 // pred_check_branch
            %3283 = sbr.rel (0) target = $region36
          $region35: #{tpu_custom_call.1} parent=31 // pred_region
            // Predicated region
            $region37: #{tpu_custom_call.1} parent=35 // pred_check
              _
            $region38: #{tpu_custom_call.1} parent=35 // pred_check_branch
              %3285 = sbr.rel (0) target = $region40
            $region39: #{tpu_custom_call.1} parent=35 // pred_region
              // Predicated region
              $region52: #{tpu_custom_call.1} parent=39 // pred_check
                _
              $region53: #{tpu_custom_call.1} parent=39 // pred_check_branch
                %3907 = sbr.rel (0) target = $region55
              $region54: #{tpu_custom_call.1} parent=39 // pred_region
                loop: start=0, step=1, limit=1
                $region56: #{tpu_custom_call.1} parent=54 // loop_pre_header
                  _
                $region57: #{tpu_custom_call.1} parent=54 // loop_header
                  %s3909 = sphi 0, %s3913
                  %p3910 = scmp.ge.s32.totalorder %s3909, 1
                  %s3914 = sphi %s3273, %s3273
                  %s3915 = sphi %s3281, %s3281
                $region58: #{tpu_custom_call.1} parent=54 // loop_header_branch
                  %3912 = sbr.rel (%p3910) target = $region62
                $region59: #{tpu_custom_call.1} parent=54 // loop_body
                  %v3916 = vld [vmem:[%s3914] sm:$0xff]
                  %3917 = vst [vmem:[%s3915] sm:$0xff] %v3916
                  %v3918 = vld [vmem:[%s3914 + $0x8] sm:$0xff]
                  %3919 = vst [vmem:[%s3915 + $0x8] sm:$0xff] %v3918
                  %v3920 = vld [vmem:[%s3914 + $0x10] sm:$0xff]
                  %3921 = vst [vmem:[%s3915 + $0x10] sm:$0xff] %v3920
                  %v3922 = vld [vmem:[%s3914 + $0x18] sm:$0xff]
                  %3923 = vst [vmem:[%s3915 + $0x18] sm:$0xff] %v3922
                  %v3924 = vld [vmem:[%s3914 + $0x20] sm:$0xff]
                  %3925 = vst [vmem:[%s3915 + $0x20] sm:$0xff] %v3924
                  %v3926 = vld [vmem:[%s3914 + $0x28] sm:$0xff]
                  %3927 = vst [vmem:[%s3915 + $0x28] sm:$0xff] %v3926
                  %v3928 = vld [vmem:[%s3914 + $0x30] sm:$0xff]
                  %3929 = vst [vmem:[%s3915 + $0x30] sm:$0xff] %v3928
                  %v3930 = vld [vmem:[%s3914 + $0x38] sm:$0xff]
                  %3931 = vst [vmem:[%s3915 + $0x38] sm:$0xff] %v3930
                  %v3932 = vld [vmem:[%s3914 + $0x40] sm:$0xff]
                  %3933 = vst [vmem:[%s3915 + $0x40] sm:$0xff] %v3932
                  %v3934 = vld [vmem:[%s3914 + $0x48] sm:$0xff]
                  %3935 = vst [vmem:[%s3915 + $0x48] sm:$0xff] %v3934
                  %v3936 = vld [vmem:[%s3914 + $0x50] sm:$0xff]
                  %3937 = vst [vmem:[%s3915 + $0x50] sm:$0xff] %v3936
                  %v3938 = vld [vmem:[%s3914 + $0x58] sm:$0xff]
                  %3939 = vst [vmem:[%s3915 + $0x58] sm:$0xff] %v3938
                  %v3940 = vld [vmem:[%s3914 + $0x60] sm:$0xff]
                  %3941 = vst [vmem:[%s3915 + $0x60] sm:$0xff] %v3940
                  %v3942 = vld [vmem:[%s3914 + $0x68] sm:$0xff]
                  %3943 = vst [vmem:[%s3915 + $0x68] sm:$0xff] %v3942
                  %v3944 = vld [vmem:[%s3914 + $0x70] sm:$0xff]
                  %3945 = vst [vmem:[%s3915 + $0x70] sm:$0xff] %v3944
                  %v3946 = vld [vmem:[%s3914 + $0x78] sm:$0xff]
                  %3947 = vst [vmem:[%s3915 + $0x78] sm:$0xff] %v3946
                  %v3948 = vld [vmem:[%s3914 + $0x80] sm:$0xff]
                  %3949 = vst [vmem:[%s3915 + $0x80] sm:$0xff] %v3948
                  %v3950 = vld [vmem:[%s3914 + $0x88] sm:$0xff]
                  %3951 = vst [vmem:[%s3915 + $0x88] sm:$0xff] %v3950
                  %v3952 = vld [vmem:[%s3914 + $0x90] sm:$0xff]
                  %3953 = vst [vmem:[%s3915 + $0x90] sm:$0xff] %v3952
                  %v3954 = vld [vmem:[%s3914 + $0x98] sm:$0xff]
                  %3955 = vst [vmem:[%s3915 + $0x130] sm:$0xff] %v3954
                  %v3956 = vld [vmem:[%s3914 + $0xa0] sm:$0xff]
                  %3957 = vst [vmem:[%s3915 + $0x138] sm:$0xff] %v3956
                  %v3958 = vld [vmem:[%s3914 + $0xa8] sm:$0xff]
                  %3959 = vst [vmem:[%s3915 + $0x140] sm:$0xff] %v3958
                  %v3960 = vld [vmem:[%s3914 + $0xb0] sm:$0xff]
                  %3961 = vst [vmem:[%s3915 + $0x148] sm:$0xff] %v3960
                  %v3962 = vld [vmem:[%s3914 + $0xb8] sm:$0xff]
                  %3963 = vst [vmem:[%s3915 + $0x150] sm:$0xff] %v3962
                  %v3964 = vld [vmem:[%s3914 + $0xc0] sm:$0xff]
                  %3965 = vst [vmem:[%s3915 + $0x158] sm:$0xff] %v3964
                  %v3966 = vld [vmem:[%s3914 + $0xc8] sm:$0xff]
                  %3967 = vst [vmem:[%s3915 + $0x160] sm:$0xff] %v3966
                  %v3968 = vld [vmem:[%s3914 + $0xd0] sm:$0xff]
                  %3969 = vst [vmem:[%s3915 + $0x168] sm:$0xff] %v3968
                  %v3970 = vld [vmem:[%s3914 + $0xd8] sm:$0xff]
                  %3971 = vst [vmem:[%s3915 + $0x170] sm:$0xff] %v3970
                  %v3972 = vld [vmem:[%s3914 + $0xe0] sm:$0xff]
                  %3973 = vst [vmem:[%s3915 + $0x178] sm:$0xff] %v3972
                  %v3974 = vld [vmem:[%s3914 + $0xe8] sm:$0xff]
                  %3975 = vst [vmem:[%s3915 + $0x180] sm:$0xff] %v3974
                  %v3976 = vld [vmem:[%s3914 + $0xf0] sm:$0xff]
                  %3977 = vst [vmem:[%s3915 + $0x188] sm:$0xff] %v3976
                  %v3978 = vld [vmem:[%s3914 + $0xf8] sm:$0xff]
                  %3979 = vst [vmem:[%s3915 + $0x190] sm:$0xff] %v3978
                  %v3980 = vld [vmem:[%s3914 + $0x100] sm:$0xff]
                  %3981 = vst [vmem:[%s3915 + $0x198] sm:$0xff] %v3980
                  %v3982 = vld [vmem:[%s3914 + $0x108] sm:$0xff]
                  %3983 = vst [vmem:[%s3915 + $0x1a0] sm:$0xff] %v3982
                  %v3984 = vld [vmem:[%s3914 + $0x110] sm:$0xff]
                  %3985 = vst [vmem:[%s3915 + $0x1a8] sm:$0xff] %v3984
                  %v3986 = vld [vmem:[%s3914 + $0x118] sm:$0xff]
                  %3987 = vst [vmem:[%s3915 + $0x1b0] sm:$0xff] %v3986
                  %v3988 = vld [vmem:[%s3914 + $0x120] sm:$0xff]
                  %3989 = vst [vmem:[%s3915 + $0x1b8] sm:$0xff] %v3988
                  %v3990 = vld [vmem:[%s3914 + $0x128] sm:$0xff]
                  %3991 = vst [vmem:[%s3915 + $0x1c0] sm:$0xff] %v3990
                  %v3992 = vld [vmem:[%s3914 + $0x130] sm:$0xff]
                  %3993 = vst [vmem:[%s3915 + $0x260] sm:$0xff] %v3992
                  %v3994 = vld [vmem:[%s3914 + $0x138] sm:$0xff]
                  %3995 = vst [vmem:[%s3915 + $0x268] sm:$0xff] %v3994
                  %v3996 = vld [vmem:[%s3914 + $0x140] sm:$0xff]
                  %3997 = vst [vmem:[%s3915 + $0x270] sm:$0xff] %v3996
                  %v3998 = vld [vmem:[%s3914 + $0x148] sm:$0xff]
                  %3999 = vst [vmem:[%s3915 + $0x278] sm:$0xff] %v3998
                  %v4000 = vld [vmem:[%s3914 + $0x150] sm:$0xff]
                  %4001 = vst [vmem:[%s3915 + $0x280] sm:$0xff] %v4000
                  %v4002 = vld [vmem:[%s3914 + $0x158] sm:$0xff]
                  %4003 = vst [vmem:[%s3915 + $0x288] sm:$0xff] %v4002
                  %v4004 = vld [vmem:[%s3914 + $0x160] sm:$0xff]
                  %4005 = vst [vmem:[%s3915 + $0x290] sm:$0xff] %v4004
                  %v4006 = vld [vmem:[%s3914 + $0x168] sm:$0xff]
                  %4007 = vst [vmem:[%s3915 + $0x298] sm:$0xff] %v4006
                  %v4008 = vld [vmem:[%s3914 + $0x170] sm:$0xff]
                  %4009 = vst [vmem:[%s3915 + $0x2a0] sm:$0xff] %v4008
                  %v4010 = vld [vmem:[%s3914 + $0x178] sm:$0xff]
                  %4011 = vst [vmem:[%s3915 + $0x2a8] sm:$0xff] %v4010
                  %v4012 = vld [vmem:[%s3914 + $0x180] sm:$0xff]
                  %4013 = vst [vmem:[%s3915 + $0x2b0] sm:$0xff] %v4012
                  %v4014 = vld [vmem:[%s3914 + $0x188] sm:$0xff]
                  %4015 = vst [vmem:[%s3915 + $0x2b8] sm:$0xff] %v4014
                  %v4016 = vld [vmem:[%s3914 + $0x190] sm:$0xff]
                  %4017 = vst [vmem:[%s3915 + $0x2c0] sm:$0xff] %v4016
                  %v4018 = vld [vmem:[%s3914 + $0x198] sm:$0xff]
                  %4019 = vst [vmem:[%s3915 + $0x2c8] sm:$0xff] %v4018
                  %v4020 = vld [vmem:[%s3914 + $0x1a0] sm:$0xff]
                  %4021 = vst [vmem:[%s3915 + $0x2d0] sm:$0xff] %v4020
                  %v4022 = vld [vmem:[%s3914 + $0x1a8] sm:$0xff]
                  %4023 = vst [vmem:[%s3915 + $0x2d8] sm:$0xff] %v4022
                  %v4024 = vld [vmem:[%s3914 + $0x1b0] sm:$0xff]
                  %4025 = vst [vmem:[%s3915 + $0x2e0] sm:$0xff] %v4024
                  %v4026 = vld [vmem:[%s3914 + $0x1b8] sm:$0xff]
                  %4027 = vst [vmem:[%s3915 + $0x2e8] sm:$0xff] %v4026
                  %v4028 = vld [vmem:[%s3914 + $0x1c0] sm:$0xff]
                  %4029 = vst [vmem:[%s3915 + $0x2f0] sm:$0xff] %v4028
                  %v4030 = vld [vmem:[%s3914 + $0x1c8] sm:$0xff]
                  %4031 = vst [vmem:[%s3915 + $0x390] sm:$0xff] %v4030
                  %v4032 = vld [vmem:[%s3914 + $0x1d0] sm:$0xff]
                  %4033 = vst [vmem:[%s3915 + $0x398] sm:$0xff] %v4032
                  %v4034 = vld [vmem:[%s3914 + $0x1d8] sm:$0xff]
                  %4035 = vst [vmem:[%s3915 + $0x3a0] sm:$0xff] %v4034
                  %v4036 = vld [vmem:[%s3914 + $0x1e0] sm:$0xff]
                  %4037 = vst [vmem:[%s3915 + $0x3a8] sm:$0xff] %v4036
                  %v4038 = vld [vmem:[%s3914 + $0x1e8] sm:$0xff]
                  %4039 = vst [vmem:[%s3915 + $0x3b0] sm:$0xff] %v4038
                  %v4040 = vld [vmem:[%s3914 + $0x1f0] sm:$0xff]
                  %4041 = vst [vmem:[%s3915 + $0x3b8] sm:$0xff] %v4040
                  %v4042 = vld [vmem:[%s3914 + $0x1f8] sm:$0xff]
                  %4043 = vst [vmem:[%s3915 + $0x3c0] sm:$0xff] %v4042
                  %v4044 = vld [vmem:[%s3914 + $0x200] sm:$0xff]
                  %4045 = vst [vmem:[%s3915 + $0x3c8] sm:$0xff] %v4044
                  %v4046 = vld [vmem:[%s3914 + $0x208] sm:$0xff]
                  %4047 = vst [vmem:[%s3915 + $0x3d0] sm:$0xff] %v4046
                  %v4048 = vld [vmem:[%s3914 + $0x210] sm:$0xff]
                  %4049 = vst [vmem:[%s3915 + $0x3d8] sm:$0xff] %v4048
                  %v4050 = vld [vmem:[%s3914 + $0x218] sm:$0xff]
                  %4051 = vst [vmem:[%s3915 + $0x3e0] sm:$0xff] %v4050
                  %v4052 = vld [vmem:[%s3914 + $0x220] sm:$0xff]
                  %4053 = vst [vmem:[%s3915 + $0x3e8] sm:$0xff] %v4052
                  %v4054 = vld [vmem:[%s3914 + $0x228] sm:$0xff]
                  %4055 = vst [vmem:[%s3915 + $0x3f0] sm:$0xff] %v4054
                  %v4056 = vld [vmem:[%s3914 + $0x230] sm:$0xff]
                  %4057 = vst [vmem:[%s3915 + $0x3f8] sm:$0xff] %v4056
                  %v4058 = vld [vmem:[%s3914 + $0x238] sm:$0xff]
                  %4059 = vst [vmem:[%s3915 + $0x400] sm:$0xff] %v4058
                  %v4060 = vld [vmem:[%s3914 + $0x240] sm:$0xff]
                  %4061 = vst [vmem:[%s3915 + $0x408] sm:$0xff] %v4060
                  %v4062 = vld [vmem:[%s3914 + $0x248] sm:$0xff]
                  %4063 = vst [vmem:[%s3915 + $0x410] sm:$0xff] %v4062
                  %v4064 = vld [vmem:[%s3914 + $0x250] sm:$0xff]
                  %4065 = vst [vmem:[%s3915 + $0x418] sm:$0xff] %v4064
                  %v4066 = vld [vmem:[%s3914 + $0x258] sm:$0xff]
                  %4067 = vst [vmem:[%s3915 + $0x420] sm:$0xff] %v4066
                  %v4068 = vld [vmem:[%s3914 + $0x260] sm:$0xff]
                  %4069 = vst [vmem:[%s3915 + $0x4c0] sm:$0xff] %v4068
                  %v4070 = vld [vmem:[%s3914 + $0x268] sm:$0xff]
                  %4071 = vst [vmem:[%s3915 + $0x4c8] sm:$0xff] %v4070
                  %v4072 = vld [vmem:[%s3914 + $0x270] sm:$0xff]
                  %4073 = vst [vmem:[%s3915 + $0x4d0] sm:$0xff] %v4072
                  %v4074 = vld [vmem:[%s3914 + $0x278] sm:$0xff]
                  %4075 = vst [vmem:[%s3915 + $0x4d8] sm:$0xff] %v4074
                  %v4076 = vld [vmem:[%s3914 + $0x280] sm:$0xff]
                  %4077 = vst [vmem:[%s3915 + $0x4e0] sm:$0xff] %v4076
                  %v4078 = vld [vmem:[%s3914 + $0x288] sm:$0xff]
                  %4079 = vst [vmem:[%s3915 + $0x4e8] sm:$0xff] %v4078
                  %v4080 = vld [vmem:[%s3914 + $0x290] sm:$0xff]
                  %4081 = vst [vmem:[%s3915 + $0x4f0] sm:$0xff] %v4080
                  %v4082 = vld [vmem:[%s3914 + $0x298] sm:$0xff]
                  %4083 = vst [vmem:[%s3915 + $0x4f8] sm:$0xff] %v4082
                  %v4084 = vld [vmem:[%s3914 + $0x2a0] sm:$0xff]
                  %4085 = vst [vmem:[%s3915 + $0x500] sm:$0xff] %v4084
                  %v4086 = vld [vmem:[%s3914 + $0x2a8] sm:$0xff]
                  %4087 = vst [vmem:[%s3915 + $0x508] sm:$0xff] %v4086
                  %v4088 = vld [vmem:[%s3914 + $0x2b0] sm:$0xff]
                  %4089 = vst [vmem:[%s3915 + $0x510] sm:$0xff] %v4088
                  %v4090 = vld [vmem:[%s3914 + $0x2b8] sm:$0xff]
                  %4091 = vst [vmem:[%s3915 + $0x518] sm:$0xff] %v4090
                  %v4092 = vld [vmem:[%s3914 + $0x2c0] sm:$0xff]
                  %4093 = vst [vmem:[%s3915 + $0x520] sm:$0xff] %v4092
                  %v4094 = vld [vmem:[%s3914 + $0x2c8] sm:$0xff]
                  %4095 = vst [vmem:[%s3915 + $0x528] sm:$0xff] %v4094
                  %v4096 = vld [vmem:[%s3914 + $0x2d0] sm:$0xff]
                  %4097 = vst [vmem:[%s3915 + $0x530] sm:$0xff] %v4096
                  %v4098 = vld [vmem:[%s3914 + $0x2d8] sm:$0xff]
                  %4099 = vst [vmem:[%s3915 + $0x538] sm:$0xff] %v4098
                  %v4100 = vld [vmem:[%s3914 + $0x2e0] sm:$0xff]
                  %4101 = vst [vmem:[%s3915 + $0x540] sm:$0xff] %v4100
                  %v4102 = vld [vmem:[%s3914 + $0x2e8] sm:$0xff]
                  %4103 = vst [vmem:[%s3915 + $0x548] sm:$0xff] %v4102
                  %v4104 = vld [vmem:[%s3914 + $0x2f0] sm:$0xff]
                  %4105 = vst [vmem:[%s3915 + $0x550] sm:$0xff] %v4104
                  %v4106 = vld [vmem:[%s3914 + $0x2f8] sm:$0xff]
                  %4107 = vst [vmem:[%s3915 + $0x5f0] sm:$0xff] %v4106
                  %v4108 = vld [vmem:[%s3914 + $0x300] sm:$0xff]
                  %4109 = vst [vmem:[%s3915 + $0x5f8] sm:$0xff] %v4108
                  %v4110 = vld [vmem:[%s3914 + $0x308] sm:$0xff]
                  %4111 = vst [vmem:[%s3915 + $0x600] sm:$0xff] %v4110
                  %v4112 = vld [vmem:[%s3914 + $0x310] sm:$0xff]
                  %4113 = vst [vmem:[%s3915 + $0x608] sm:$0xff] %v4112
                  %v4114 = vld [vmem:[%s3914 + $0x318] sm:$0xff]
                  %4115 = vst [vmem:[%s3915 + $0x610] sm:$0xff] %v4114
                  %v4116 = vld [vmem:[%s3914 + $0x320] sm:$0xff]
                  %4117 = vst [vmem:[%s3915 + $0x618] sm:$0xff] %v4116
                  %v4118 = vld [vmem:[%s3914 + $0x328] sm:$0xff]
                  %4119 = vst [vmem:[%s3915 + $0x620] sm:$0xff] %v4118
                  %v4120 = vld [vmem:[%s3914 + $0x330] sm:$0xff]
                  %4121 = vst [vmem:[%s3915 + $0x628] sm:$0xff] %v4120
                  %v4122 = vld [vmem:[%s3914 + $0x338] sm:$0xff]
                  %4123 = vst [vmem:[%s3915 + $0x630] sm:$0xff] %v4122
                  %v4124 = vld [vmem:[%s3914 + $0x340] sm:$0xff]
                  %4125 = vst [vmem:[%s3915 + $0x638] sm:$0xff] %v4124
                  %v4126 = vld [vmem:[%s3914 + $0x348] sm:$0xff]
                  %4127 = vst [vmem:[%s3915 + $0x640] sm:$0xff] %v4126
                  %v4128 = vld [vmem:[%s3914 + $0x350] sm:$0xff]
                  %4129 = vst [vmem:[%s3915 + $0x648] sm:$0xff] %v4128
                  %v4130 = vld [vmem:[%s3914 + $0x358] sm:$0xff]
                  %4131 = vst [vmem:[%s3915 + $0x650] sm:$0xff] %v4130
                  %v4132 = vld [vmem:[%s3914 + $0x360] sm:$0xff]
                  %4133 = vst [vmem:[%s3915 + $0x658] sm:$0xff] %v4132
                  %v4134 = vld [vmem:[%s3914 + $0x368] sm:$0xff]
                  %4135 = vst [vmem:[%s3915 + $0x660] sm:$0xff] %v4134
                  %v4136 = vld [vmem:[%s3914 + $0x370] sm:$0xff]
                  %4137 = vst [vmem:[%s3915 + $0x668] sm:$0xff] %v4136
                  %v4138 = vld [vmem:[%s3914 + $0x378] sm:$0xff]
                  %4139 = vst [vmem:[%s3915 + $0x670] sm:$0xff] %v4138
                  %v4140 = vld [vmem:[%s3914 + $0x380] sm:$0xff]
                  %4141 = vst [vmem:[%s3915 + $0x678] sm:$0xff] %v4140
                  %v4142 = vld [vmem:[%s3914 + $0x388] sm:$0xff]
                  %4143 = vst [vmem:[%s3915 + $0x680] sm:$0xff] %v4142
                  %v4144 = vld [vmem:[%s3914 + $0x390] sm:$0xff]
                  %4145 = vst [vmem:[%s3915 + $0x720] sm:$0xff] %v4144
                  %v4146 = vld [vmem:[%s3914 + $0x398] sm:$0xff]
                  %4147 = vst [vmem:[%s3915 + $0x728] sm:$0xff] %v4146
                  %v4148 = vld [vmem:[%s3914 + $0x3a0] sm:$0xff]
                  %4149 = vst [vmem:[%s3915 + $0x730] sm:$0xff] %v4148
                  %v4150 = vld [vmem:[%s3914 + $0x3a8] sm:$0xff]
                  %4151 = vst [vmem:[%s3915 + $0x738] sm:$0xff] %v4150
                  %v4152 = vld [vmem:[%s3914 + $0x3b0] sm:$0xff]
                  %4153 = vst [vmem:[%s3915 + $0x740] sm:$0xff] %v4152
                  %v4154 = vld [vmem:[%s3914 + $0x3b8] sm:$0xff]
                  %4155 = vst [vmem:[%s3915 + $0x748] sm:$0xff] %v4154
                  %v4156 = vld [vmem:[%s3914 + $0x3c0] sm:$0xff]
                  %4157 = vst [vmem:[%s3915 + $0x750] sm:$0xff] %v4156
                  %v4158 = vld [vmem:[%s3914 + $0x3c8] sm:$0xff]
                  %4159 = vst [vmem:[%s3915 + $0x758] sm:$0xff] %v4158
                  %v4160 = vld [vmem:[%s3914 + $0x3d0] sm:$0xff]
                  %4161 = vst [vmem:[%s3915 + $0x760] sm:$0xff] %v4160
                  %v4162 = vld [vmem:[%s3914 + $0x3d8] sm:$0xff]
                  %4163 = vst [vmem:[%s3915 + $0x768] sm:$0xff] %v4162
                  %v4164 = vld [vmem:[%s3914 + $0x3e0] sm:$0xff]
                  %4165 = vst [vmem:[%s3915 + $0x770] sm:$0xff] %v4164
                  %v4166 = vld [vmem:[%s3914 + $0x3e8] sm:$0xff]
                  %4167 = vst [vmem:[%s3915 + $0x778] sm:$0xff] %v4166
                  %v4168 = vld [vmem:[%s3914 + $0x3f0] sm:$0xff]
                  %4169 = vst [vmem:[%s3915 + $0x780] sm:$0xff] %v4168
                  %v4170 = vld [vmem:[%s3914 + $0x3f8] sm:$0xff]
                  %4171 = vst [vmem:[%s3915 + $0x788] sm:$0xff] %v4170
                  %v4172 = vld [vmem:[%s3914 + $0x400] sm:$0xff]
                  %4173 = vst [vmem:[%s3915 + $0x790] sm:$0xff] %v4172
                  %v4174 = vld [vmem:[%s3914 + $0x408] sm:$0xff]
                  %4175 = vst [vmem:[%s3915 + $0x798] sm:$0xff] %v4174
                  %v4176 = vld [vmem:[%s3914 + $0x410] sm:$0xff]
                  %4177 = vst [vmem:[%s3915 + $0x7a0] sm:$0xff] %v4176
                  %v4178 = vld [vmem:[%s3914 + $0x418] sm:$0xff]
                  %4179 = vst [vmem:[%s3915 + $0x7a8] sm:$0xff] %v4178
                  %v4180 = vld [vmem:[%s3914 + $0x420] sm:$0xff]
                  %4181 = vst [vmem:[%s3915 + $0x7b0] sm:$0xff] %v4180
                  %v4182 = vld [vmem:[%s3914 + $0x428] sm:$0xff]
                  %4183 = vst [vmem:[%s3915 + $0x850] sm:$0xff] %v4182
                  %v4184 = vld [vmem:[%s3914 + $0x430] sm:$0xff]
                  %4185 = vst [vmem:[%s3915 + $0x858] sm:$0xff] %v4184
                  %v4186 = vld [vmem:[%s3914 + $0x438] sm:$0xff]
                  %4187 = vst [vmem:[%s3915 + $0x860] sm:$0xff] %v4186
                  %v4188 = vld [vmem:[%s3914 + $0x440] sm:$0xff]
                  %4189 = vst [vmem:[%s3915 + $0x868] sm:$0xff] %v4188
                  %v4190 = vld [vmem:[%s3914 + $0x448] sm:$0xff]
                  %4191 = vst [vmem:[%s3915 + $0x870] sm:$0xff] %v4190
                  %v4192 = vld [vmem:[%s3914 + $0x450] sm:$0xff]
                  %4193 = vst [vmem:[%s3915 + $0x878] sm:$0xff] %v4192
                  %v4194 = vld [vmem:[%s3914 + $0x458] sm:$0xff]
                  %4195 = vst [vmem:[%s3915 + $0x880] sm:$0xff] %v4194
                  %v4196 = vld [vmem:[%s3914 + $0x460] sm:$0xff]
                  %4197 = vst [vmem:[%s3915 + $0x888] sm:$0xff] %v4196
                  %v4198 = vld [vmem:[%s3914 + $0x468] sm:$0xff]
                  %4199 = vst [vmem:[%s3915 + $0x890] sm:$0xff] %v4198
                  %v4200 = vld [vmem:[%s3914 + $0x470] sm:$0xff]
                  %4201 = vst [vmem:[%s3915 + $0x898] sm:$0xff] %v4200
                  %v4202 = vld [vmem:[%s3914 + $0x478] sm:$0xff]
                  %4203 = vst [vmem:[%s3915 + $0x8a0] sm:$0xff] %v4202
                  %v4204 = vld [vmem:[%s3914 + $0x480] sm:$0xff]
                  %4205 = vst [vmem:[%s3915 + $0x8a8] sm:$0xff] %v4204
                  %v4206 = vld [vmem:[%s3914 + $0x488] sm:$0xff]
                  %4207 = vst [vmem:[%s3915 + $0x8b0] sm:$0xff] %v4206
                  %v4208 = vld [vmem:[%s3914 + $0x490] sm:$0xff]
                  %4209 = vst [vmem:[%s3915 + $0x8b8] sm:$0xff] %v4208
                  %v4210 = vld [vmem:[%s3914 + $0x498] sm:$0xff]
                  %4211 = vst [vmem:[%s3915 + $0x8c0] sm:$0xff] %v4210
                  %v4212 = vld [vmem:[%s3914 + $0x4a0] sm:$0xff]
                  %4213 = vst [vmem:[%s3915 + $0x8c8] sm:$0xff] %v4212
                  %v4214 = vld [vmem:[%s3914 + $0x4a8] sm:$0xff]
                  %4215 = vst [vmem:[%s3915 + $0x8d0] sm:$0xff] %v4214
                  %v4216 = vld [vmem:[%s3914 + $0x4b0] sm:$0xff]
                  %4217 = vst [vmem:[%s3915 + $0x8d8] sm:$0xff] %v4216
                  %v4218 = vld [vmem:[%s3914 + $0x4b8] sm:$0xff]
                  %4219 = vst [vmem:[%s3915 + $0x8e0] sm:$0xff] %v4218
                  %v4220 = vld [vmem:[%s3914 + $0x4c0] sm:$0xff]
                  %4221 = vst [vmem:[%s3915 + $0x980] sm:$0xff] %v4220
                  %v4222 = vld [vmem:[%s3914 + $0x4c8] sm:$0xff]
                  %4223 = vst [vmem:[%s3915 + $0x988] sm:$0xff] %v4222
                  %v4224 = vld [vmem:[%s3914 + $0x4d0] sm:$0xff]
                  %4225 = vst [vmem:[%s3915 + $0x990] sm:$0xff] %v4224
                  %v4226 = vld [vmem:[%s3914 + $0x4d8] sm:$0xff]
                  %4227 = vst [vmem:[%s3915 + $0x998] sm:$0xff] %v4226
                  %v4228 = vld [vmem:[%s3914 + $0x4e0] sm:$0xff]
                  %4229 = vst [vmem:[%s3915 + $0x9a0] sm:$0xff] %v4228
                  %v4230 = vld [vmem:[%s3914 + $0x4e8] sm:$0xff]
                  %4231 = vst [vmem:[%s3915 + $0x9a8] sm:$0xff] %v4230
                  %v4232 = vld [vmem:[%s3914 + $0x4f0] sm:$0xff]
                  %4233 = vst [vmem:[%s3915 + $0x9b0] sm:$0xff] %v4232
                  %v4234 = vld [vmem:[%s3914 + $0x4f8] sm:$0xff]
                  %4235 = vst [vmem:[%s3915 + $0x9b8] sm:$0xff] %v4234
                  %v4236 = vld [vmem:[%s3914 + $0x500] sm:$0xff]
                  %4237 = vst [vmem:[%s3915 + $0x9c0] sm:$0xff] %v4236
                  %v4238 = vld [vmem:[%s3914 + $0x508] sm:$0xff]
                  %4239 = vst [vmem:[%s3915 + $0x9c8] sm:$0xff] %v4238
                  %v4240 = vld [vmem:[%s3914 + $0x510] sm:$0xff]
                  %4241 = vst [vmem:[%s3915 + $0x9d0] sm:$0xff] %v4240
                  %v4242 = vld [vmem:[%s3914 + $0x518] sm:$0xff]
                  %4243 = vst [vmem:[%s3915 + $0x9d8] sm:$0xff] %v4242
                  %v4244 = vld [vmem:[%s3914 + $0x520] sm:$0xff]
                  %4245 = vst [vmem:[%s3915 + $0x9e0] sm:$0xff] %v4244
                  %v4246 = vld [vmem:[%s3914 + $0x528] sm:$0xff]
                  %4247 = vst [vmem:[%s3915 + $0x9e8] sm:$0xff] %v4246
                  %v4248 = vld [vmem:[%s3914 + $0x530] sm:$0xff]
                  %4249 = vst [vmem:[%s3915 + $0x9f0] sm:$0xff] %v4248
                  %v4250 = vld [vmem:[%s3914 + $0x538] sm:$0xff]
                  %4251 = vst [vmem:[%s3915 + $0x9f8] sm:$0xff] %v4250
                  %v4252 = vld [vmem:[%s3914 + $0x540] sm:$0xff]
                  %4253 = vst [vmem:[%s3915 + $0xa00] sm:$0xff] %v4252
                  %v4254 = vld [vmem:[%s3914 + $0x548] sm:$0xff]
                  %4255 = vst [vmem:[%s3915 + $0xa08] sm:$0xff] %v4254
                  %v4256 = vld [vmem:[%s3914 + $0x550] sm:$0xff]
                  %4257 = vst [vmem:[%s3915 + $0xa10] sm:$0xff] %v4256
                  %v4258 = vld [vmem:[%s3914 + $0x558] sm:$0xff]
                  %4259 = vst [vmem:[%s3915 + $0xab0] sm:$0xff] %v4258
                  %v4260 = vld [vmem:[%s3914 + $0x560] sm:$0xff]
                  %4261 = vst [vmem:[%s3915 + $0xab8] sm:$0xff] %v4260
                  %v4262 = vld [vmem:[%s3914 + $0x568] sm:$0xff]
                  %4263 = vst [vmem:[%s3915 + $0xac0] sm:$0xff] %v4262
                  %v4264 = vld [vmem:[%s3914 + $0x570] sm:$0xff]
                  %4265 = vst [vmem:[%s3915 + $0xac8] sm:$0xff] %v4264
                  %v4266 = vld [vmem:[%s3914 + $0x578] sm:$0xff]
                  %4267 = vst [vmem:[%s3915 + $0xad0] sm:$0xff] %v4266
                  %v4268 = vld [vmem:[%s3914 + $0x580] sm:$0xff]
                  %4269 = vst [vmem:[%s3915 + $0xad8] sm:$0xff] %v4268
                  %v4270 = vld [vmem:[%s3914 + $0x588] sm:$0xff]
                  %4271 = vst [vmem:[%s3915 + $0xae0] sm:$0xff] %v4270
                  %v4272 = vld [vmem:[%s3914 + $0x590] sm:$0xff]
                  %4273 = vst [vmem:[%s3915 + $0xae8] sm:$0xff] %v4272
                  %v4274 = vld [vmem:[%s3914 + $0x598] sm:$0xff]
                  %4275 = vst [vmem:[%s3915 + $0xaf0] sm:$0xff] %v4274
                  %v4276 = vld [vmem:[%s3914 + $0x5a0] sm:$0xff]
                  %4277 = vst [vmem:[%s3915 + $0xaf8] sm:$0xff] %v4276
                  %v4278 = vld [vmem:[%s3914 + $0x5a8] sm:$0xff]
                  %4279 = vst [vmem:[%s3915 + $0xb00] sm:$0xff] %v4278
                  %v4280 = vld [vmem:[%s3914 + $0x5b0] sm:$0xff]
                  %4281 = vst [vmem:[%s3915 + $0xb08] sm:$0xff] %v4280
                  %v4282 = vld [vmem:[%s3914 + $0x5b8] sm:$0xff]
                  %4283 = vst [vmem:[%s3915 + $0xb10] sm:$0xff] %v4282
                  %v4284 = vld [vmem:[%s3914 + $0x5c0] sm:$0xff]
                  %4285 = vst [vmem:[%s3915 + $0xb18] sm:$0xff] %v4284
                  %v4286 = vld [vmem:[%s3914 + $0x5c8] sm:$0xff]
                  %4287 = vst [vmem:[%s3915 + $0xb20] sm:$0xff] %v4286
                  %v4288 = vld [vmem:[%s3914 + $0x5d0] sm:$0xff]
                  %4289 = vst [vmem:[%s3915 + $0xb28] sm:$0xff] %v4288
                  %v4290 = vld [vmem:[%s3914 + $0x5d8] sm:$0xff]
                  %4291 = vst [vmem:[%s3915 + $0xb30] sm:$0xff] %v4290
                  %v4292 = vld [vmem:[%s3914 + $0x5e0] sm:$0xff]
                  %4293 = vst [vmem:[%s3915 + $0xb38] sm:$0xff] %v4292
                  %v4294 = vld [vmem:[%s3914 + $0x5e8] sm:$0xff]
                  %4295 = vst [vmem:[%s3915 + $0xb40] sm:$0xff] %v4294
                  %v4296 = vld [vmem:[%s3914 + $0x5f0] sm:$0xff]
                  %4297 = vst [vmem:[%s3915 + $0xbe0] sm:$0xff] %v4296
                  %v4298 = vld [vmem:[%s3914 + $0x5f8] sm:$0xff]
                  %4299 = vst [vmem:[%s3915 + $0xbe8] sm:$0xff] %v4298
                  %v4300 = vld [vmem:[%s3914 + $0x600] sm:$0xff]
                  %4301 = vst [vmem:[%s3915 + $0xbf0] sm:$0xff] %v4300
                  %v4302 = vld [vmem:[%s3914 + $0x608] sm:$0xff]
                  %4303 = vst [vmem:[%s3915 + $0xbf8] sm:$0xff] %v4302
                  %v4304 = vld [vmem:[%s3914 + $0x610] sm:$0xff]
                  %4305 = vst [vmem:[%s3915 + $0xc00] sm:$0xff] %v4304
                  %v4306 = vld [vmem:[%s3914 + $0x618] sm:$0xff]
                  %4307 = vst [vmem:[%s3915 + $0xc08] sm:$0xff] %v4306
                  %v4308 = vld [vmem:[%s3914 + $0x620] sm:$0xff]
                  %4309 = vst [vmem:[%s3915 + $0xc10] sm:$0xff] %v4308
                  %v4310 = vld [vmem:[%s3914 + $0x628] sm:$0xff]
                  %4311 = vst [vmem:[%s3915 + $0xc18] sm:$0xff] %v4310
                  %v4312 = vld [vmem:[%s3914 + $0x630] sm:$0xff]
                  %4313 = vst [vmem:[%s3915 + $0xc20] sm:$0xff] %v4312
                  %v4314 = vld [vmem:[%s3914 + $0x638] sm:$0xff]
                  %4315 = vst [vmem:[%s3915 + $0xc28] sm:$0xff] %v4314
                  %v4316 = vld [vmem:[%s3914 + $0x640] sm:$0xff]
                  %4317 = vst [vmem:[%s3915 + $0xc30] sm:$0xff] %v4316
                  %v4318 = vld [vmem:[%s3914 + $0x648] sm:$0xff]
                  %4319 = vst [vmem:[%s3915 + $0xc38] sm:$0xff] %v4318
                  %v4320 = vld [vmem:[%s3914 + $0x650] sm:$0xff]
                  %4321 = vst [vmem:[%s3915 + $0xc40] sm:$0xff] %v4320
                  %v4322 = vld [vmem:[%s3914 + $0x658] sm:$0xff]
                  %4323 = vst [vmem:[%s3915 + $0xc48] sm:$0xff] %v4322
                  %v4324 = vld [vmem:[%s3914 + $0x660] sm:$0xff]
                  %4325 = vst [vmem:[%s3915 + $0xc50] sm:$0xff] %v4324
                  %v4326 = vld [vmem:[%s3914 + $0x668] sm:$0xff]
                  %4327 = vst [vmem:[%s3915 + $0xc58] sm:$0xff] %v4326
                  %v4328 = vld [vmem:[%s3914 + $0x670] sm:$0xff]
                  %4329 = vst [vmem:[%s3915 + $0xc60] sm:$0xff] %v4328
                  %v4330 = vld [vmem:[%s3914 + $0x678] sm:$0xff]
                  %4331 = vst [vmem:[%s3915 + $0xc68] sm:$0xff] %v4330
                  %v4332 = vld [vmem:[%s3914 + $0x680] sm:$0xff]
                  %4333 = vst [vmem:[%s3915 + $0xc70] sm:$0xff] %v4332
                  %v4334 = vld [vmem:[%s3914 + $0x688] sm:$0xff]
                  %4335 = vst [vmem:[%s3915 + $0xd10] sm:$0xff] %v4334
                  %v4336 = vld [vmem:[%s3914 + $0x690] sm:$0xff]
                  %4337 = vst [vmem:[%s3915 + $0xd18] sm:$0xff] %v4336
                  %v4338 = vld [vmem:[%s3914 + $0x698] sm:$0xff]
                  %4339 = vst [vmem:[%s3915 + $0xd20] sm:$0xff] %v4338
                  %v4340 = vld [vmem:[%s3914 + $0x6a0] sm:$0xff]
                  %4341 = vst [vmem:[%s3915 + $0xd28] sm:$0xff] %v4340
                  %v4342 = vld [vmem:[%s3914 + $0x6a8] sm:$0xff]
                  %4343 = vst [vmem:[%s3915 + $0xd30] sm:$0xff] %v4342
                  %v4344 = vld [vmem:[%s3914 + $0x6b0] sm:$0xff]
                  %4345 = vst [vmem:[%s3915 + $0xd38] sm:$0xff] %v4344
                  %v4346 = vld [vmem:[%s3914 + $0x6b8] sm:$0xff]
                  %4347 = vst [vmem:[%s3915 + $0xd40] sm:$0xff] %v4346
                  %v4348 = vld [vmem:[%s3914 + $0x6c0] sm:$0xff]
                  %4349 = vst [vmem:[%s3915 + $0xd48] sm:$0xff] %v4348
                  %v4350 = vld [vmem:[%s3914 + $0x6c8] sm:$0xff]
                  %4351 = vst [vmem:[%s3915 + $0xd50] sm:$0xff] %v4350
                  %v4352 = vld [vmem:[%s3914 + $0x6d0] sm:$0xff]
                  %4353 = vst [vmem:[%s3915 + $0xd58] sm:$0xff] %v4352
                  %v4354 = vld [vmem:[%s3914 + $0x6d8] sm:$0xff]
                  %4355 = vst [vmem:[%s3915 + $0xd60] sm:$0xff] %v4354
                  %v4356 = vld [vmem:[%s3914 + $0x6e0] sm:$0xff]
                  %4357 = vst [vmem:[%s3915 + $0xd68] sm:$0xff] %v4356
                  %v4358 = vld [vmem:[%s3914 + $0x6e8] sm:$0xff]
                  %4359 = vst [vmem:[%s3915 + $0xd70] sm:$0xff] %v4358
                  %v4360 = vld [vmem:[%s3914 + $0x6f0] sm:$0xff]
                  %4361 = vst [vmem:[%s3915 + $0xd78] sm:$0xff] %v4360
                  %v4362 = vld [vmem:[%s3914 + $0x6f8] sm:$0xff]
                  %4363 = vst [vmem:[%s3915 + $0xd80] sm:$0xff] %v4362
                  %v4364 = vld [vmem:[%s3914 + $0x700] sm:$0xff]
                  %4365 = vst [vmem:[%s3915 + $0xd88] sm:$0xff] %v4364
                  %v4366 = vld [vmem:[%s3914 + $0x708] sm:$0xff]
                  %4367 = vst [vmem:[%s3915 + $0xd90] sm:$0xff] %v4366
                  %v4368 = vld [vmem:[%s3914 + $0x710] sm:$0xff]
                  %4369 = vst [vmem:[%s3915 + $0xd98] sm:$0xff] %v4368
                  %v4370 = vld [vmem:[%s3914 + $0x718] sm:$0xff]
                  %4371 = vst [vmem:[%s3915 + $0xda0] sm:$0xff] %v4370
                  %v4372 = vld [vmem:[%s3914 + $0x720] sm:$0xff]
                  %4373 = vst [vmem:[%s3915 + $0xe40] sm:$0xff] %v4372
                  %v4374 = vld [vmem:[%s3914 + $0x728] sm:$0xff]
                  %4375 = vst [vmem:[%s3915 + $0xe48] sm:$0xff] %v4374
                  %v4376 = vld [vmem:[%s3914 + $0x730] sm:$0xff]
                  %4377 = vst [vmem:[%s3915 + $0xe50] sm:$0xff] %v4376
                  %v4378 = vld [vmem:[%s3914 + $0x738] sm:$0xff]
                  %4379 = vst [vmem:[%s3915 + $0xe58] sm:$0xff] %v4378
                  %v4380 = vld [vmem:[%s3914 + $0x740] sm:$0xff]
                  %4381 = vst [vmem:[%s3915 + $0xe60] sm:$0xff] %v4380
                  %v4382 = vld [vmem:[%s3914 + $0x748] sm:$0xff]
                  %4383 = vst [vmem:[%s3915 + $0xe68] sm:$0xff] %v4382
                  %v4384 = vld [vmem:[%s3914 + $0x750] sm:$0xff]
                  %4385 = vst [vmem:[%s3915 + $0xe70] sm:$0xff] %v4384
                  %v4386 = vld [vmem:[%s3914 + $0x758] sm:$0xff]
                  %4387 = vst [vmem:[%s3915 + $0xe78] sm:$0xff] %v4386
                  %v4388 = vld [vmem:[%s3914 + $0x760] sm:$0xff]
                  %4389 = vst [vmem:[%s3915 + $0xe80] sm:$0xff] %v4388
                  %v4390 = vld [vmem:[%s3914 + $0x768] sm:$0xff]
                  %4391 = vst [vmem:[%s3915 + $0xe88] sm:$0xff] %v4390
                  %v4392 = vld [vmem:[%s3914 + $0x770] sm:$0xff]
                  %4393 = vst [vmem:[%s3915 + $0xe90] sm:$0xff] %v4392
                  %v4394 = vld [vmem:[%s3914 + $0x778] sm:$0xff]
                  %4395 = vst [vmem:[%s3915 + $0xe98] sm:$0xff] %v4394
                  %v4396 = vld [vmem:[%s3914 + $0x780] sm:$0xff]
                  %4397 = vst [vmem:[%s3915 + $0xea0] sm:$0xff] %v4396
                  %v4398 = vld [vmem:[%s3914 + $0x788] sm:$0xff]
                  %4399 = vst [vmem:[%s3915 + $0xea8] sm:$0xff] %v4398
                  %v4400 = vld [vmem:[%s3914 + $0x790] sm:$0xff]
                  %4401 = vst [vmem:[%s3915 + $0xeb0] sm:$0xff] %v4400
                  %v4402 = vld [vmem:[%s3914 + $0x798] sm:$0xff]
                  %4403 = vst [vmem:[%s3915 + $0xeb8] sm:$0xff] %v4402
                  %v4404 = vld [vmem:[%s3914 + $0x7a0] sm:$0xff]
                  %4405 = vst [vmem:[%s3915 + $0xec0] sm:$0xff] %v4404
                  %v4406 = vld [vmem:[%s3914 + $0x7a8] sm:$0xff]
                  %4407 = vst [vmem:[%s3915 + $0xec8] sm:$0xff] %v4406
                  %v4408 = vld [vmem:[%s3914 + $0x7b0] sm:$0xff]
                  %4409 = vst [vmem:[%s3915 + $0xed0] sm:$0xff] %v4408
                  %v4410 = vld [vmem:[%s3914 + $0x7b8] sm:$0xff]
                  %4411 = vst [vmem:[%s3915 + $0xf70] sm:$0xff] %v4410
                  %v4412 = vld [vmem:[%s3914 + $0x7c0] sm:$0xff]
                  %4413 = vst [vmem:[%s3915 + $0xf78] sm:$0xff] %v4412
                  %v4414 = vld [vmem:[%s3914 + $0x7c8] sm:$0xff]
                  %4415 = vst [vmem:[%s3915 + $0xf80] sm:$0xff] %v4414
                  %v4416 = vld [vmem:[%s3914 + $0x7d0] sm:$0xff]
                  %4417 = vst [vmem:[%s3915 + $0xf88] sm:$0xff] %v4416
                  %v4418 = vld [vmem:[%s3914 + $0x7d8] sm:$0xff]
                  %4419 = vst [vmem:[%s3915 + $0xf90] sm:$0xff] %v4418
                  %v4420 = vld [vmem:[%s3914 + $0x7e0] sm:$0xff]
                  %4421 = vst [vmem:[%s3915 + $0xf98] sm:$0xff] %v4420
                  %v4422 = vld [vmem:[%s3914 + $0x7e8] sm:$0xff]
                  %4423 = vst [vmem:[%s3915 + $0xfa0] sm:$0xff] %v4422
                  %v4424 = vld [vmem:[%s3914 + $0x7f0] sm:$0xff]
                  %4425 = vst [vmem:[%s3915 + $0xfa8] sm:$0xff] %v4424
                  %v4426 = vld [vmem:[%s3914 + $0x7f8] sm:$0xff]
                  %4427 = vst [vmem:[%s3915 + $0xfb0] sm:$0xff] %v4426
                  %v4428 = vld [vmem:[%s3914 + $0x800] sm:$0xff]
                  %4429 = vst [vmem:[%s3915 + $0xfb8] sm:$0xff] %v4428
                  %v4430 = vld [vmem:[%s3914 + $0x808] sm:$0xff]
                  %4431 = vst [vmem:[%s3915 + $0xfc0] sm:$0xff] %v4430
                  %v4432 = vld [vmem:[%s3914 + $0x810] sm:$0xff]
                  %4433 = vst [vmem:[%s3915 + $0xfc8] sm:$0xff] %v4432
                  %v4434 = vld [vmem:[%s3914 + $0x818] sm:$0xff]
                  %4435 = vst [vmem:[%s3915 + $0xfd0] sm:$0xff] %v4434
                  %v4436 = vld [vmem:[%s3914 + $0x820] sm:$0xff]
                  %4437 = vst [vmem:[%s3915 + $0xfd8] sm:$0xff] %v4436
                  %v4438 = vld [vmem:[%s3914 + $0x828] sm:$0xff]
                  %4439 = vst [vmem:[%s3915 + $0xfe0] sm:$0xff] %v4438
                  %v4440 = vld [vmem:[%s3914 + $0x830] sm:$0xff]
                  %4441 = vst [vmem:[%s3915 + $0xfe8] sm:$0xff] %v4440
                  %v4442 = vld [vmem:[%s3914 + $0x838] sm:$0xff]
                  %4443 = vst [vmem:[%s3915 + $0xff0] sm:$0xff] %v4442
                  %v4444 = vld [vmem:[%s3914 + $0x840] sm:$0xff]
                  %4445 = vst [vmem:[%s3915 + $0xff8] sm:$0xff] %v4444
                  %v4446 = vld [vmem:[%s3914 + $0x848] sm:$0xff]
                  %4447 = vst [vmem:[%s3915 + $0x1000] sm:$0xff] %v4446
                  %v4448 = vld [vmem:[%s3914 + $0x850] sm:$0xff]
                  %4449 = vst [vmem:[%s3915 + $0x10a0] sm:$0xff] %v4448
                  %v4450 = vld [vmem:[%s3914 + $0x858] sm:$0xff]
                  %4451 = vst [vmem:[%s3915 + $0x10a8] sm:$0xff] %v4450
                  %v4452 = vld [vmem:[%s3914 + $0x860] sm:$0xff]
                  %4453 = vst [vmem:[%s3915 + $0x10b0] sm:$0xff] %v4452
                  %v4454 = vld [vmem:[%s3914 + $0x868] sm:$0xff]
                  %4455 = vst [vmem:[%s3915 + $0x10b8] sm:$0xff] %v4454
                  %v4456 = vld [vmem:[%s3914 + $0x870] sm:$0xff]
                  %4457 = vst [vmem:[%s3915 + $0x10c0] sm:$0xff] %v4456
                  %v4458 = vld [vmem:[%s3914 + $0x878] sm:$0xff]
                  %4459 = vst [vmem:[%s3915 + $0x10c8] sm:$0xff] %v4458
                  %v4460 = vld [vmem:[%s3914 + $0x880] sm:$0xff]
                  %4461 = vst [vmem:[%s3915 + $0x10d0] sm:$0xff] %v4460
                  %v4462 = vld [vmem:[%s3914 + $0x888] sm:$0xff]
                  %4463 = vst [vmem:[%s3915 + $0x10d8] sm:$0xff] %v4462
                  %v4464 = vld [vmem:[%s3914 + $0x890] sm:$0xff]
                  %4465 = vst [vmem:[%s3915 + $0x10e0] sm:$0xff] %v4464
                  %v4466 = vld [vmem:[%s3914 + $0x898] sm:$0xff]
                  %4467 = vst [vmem:[%s3915 + $0x10e8] sm:$0xff] %v4466
                  %v4468 = vld [vmem:[%s3914 + $0x8a0] sm:$0xff]
                  %4469 = vst [vmem:[%s3915 + $0x10f0] sm:$0xff] %v4468
                  %v4470 = vld [vmem:[%s3914 + $0x8a8] sm:$0xff]
                  %4471 = vst [vmem:[%s3915 + $0x10f8] sm:$0xff] %v4470
                  %v4472 = vld [vmem:[%s3914 + $0x8b0] sm:$0xff]
                  %4473 = vst [vmem:[%s3915 + $0x1100] sm:$0xff] %v4472
                  %v4474 = vld [vmem:[%s3914 + $0x8b8] sm:$0xff]
                  %4475 = vst [vmem:[%s3915 + $0x1108] sm:$0xff] %v4474
                  %v4476 = vld [vmem:[%s3914 + $0x8c0] sm:$0xff]
                  %4477 = vst [vmem:[%s3915 + $0x1110] sm:$0xff] %v4476
                  %v4478 = vld [vmem:[%s3914 + $0x8c8] sm:$0xff]
                  %4479 = vst [vmem:[%s3915 + $0x1118] sm:$0xff] %v4478
                  %v4480 = vld [vmem:[%s3914 + $0x8d0] sm:$0xff]
                  %4481 = vst [vmem:[%s3915 + $0x1120] sm:$0xff] %v4480
                  %v4482 = vld [vmem:[%s3914 + $0x8d8] sm:$0xff]
                  %4483 = vst [vmem:[%s3915 + $0x1128] sm:$0xff] %v4482
                  %v4484 = vld [vmem:[%s3914 + $0x8e0] sm:$0xff]
                  %4485 = vst [vmem:[%s3915 + $0x1130] sm:$0xff] %v4484
                  %v4486 = vld [vmem:[%s3914 + $0x8e8] sm:$0xff]
                  %4487 = vst [vmem:[%s3915 + $0x11d0] sm:$0xff] %v4486
                  %v4488 = vld [vmem:[%s3914 + $0x8f0] sm:$0xff]
                  %4489 = vst [vmem:[%s3915 + $0x11d8] sm:$0xff] %v4488
                  %v4490 = vld [vmem:[%s3914 + $0x8f8] sm:$0xff]
                  %4491 = vst [vmem:[%s3915 + $0x11e0] sm:$0xff] %v4490
                  %v4492 = vld [vmem:[%s3914 + $0x900] sm:$0xff]
                  %4493 = vst [vmem:[%s3915 + $0x11e8] sm:$0xff] %v4492
                  %v4494 = vld [vmem:[%s3914 + $0x908] sm:$0xff]
                  %4495 = vst [vmem:[%s3915 + $0x11f0] sm:$0xff] %v4494
                  %v4496 = vld [vmem:[%s3914 + $0x910] sm:$0xff]
                  %4497 = vst [vmem:[%s3915 + $0x11f8] sm:$0xff] %v4496
                  %v4498 = vld [vmem:[%s3914 + $0x918] sm:$0xff]
                  %4499 = vst [vmem:[%s3915 + $0x1200] sm:$0xff] %v4498
                  %v4500 = vld [vmem:[%s3914 + $0x920] sm:$0xff]
                  %4501 = vst [vmem:[%s3915 + $0x1208] sm:$0xff] %v4500
                  %v4502 = vld [vmem:[%s3914 + $0x928] sm:$0xff]
                  %4503 = vst [vmem:[%s3915 + $0x1210] sm:$0xff] %v4502
                  %v4504 = vld [vmem:[%s3914 + $0x930] sm:$0xff]
                  %4505 = vst [vmem:[%s3915 + $0x1218] sm:$0xff] %v4504
                  %v4506 = vld [vmem:[%s3914 + $0x938] sm:$0xff]
                  %4507 = vst [vmem:[%s3915 + $0x1220] sm:$0xff] %v4506
                  %v4508 = vld [vmem:[%s3914 + $0x940] sm:$0xff]
                  %4509 = vst [vmem:[%s3915 + $0x1228] sm:$0xff] %v4508
                  %v4510 = vld [vmem:[%s3914 + $0x948] sm:$0xff]
                  %4511 = vst [vmem:[%s3915 + $0x1230] sm:$0xff] %v4510
                  %v4512 = vld [vmem:[%s3914 + $0x950] sm:$0xff]
                  %4513 = vst [vmem:[%s3915 + $0x1238] sm:$0xff] %v4512
                  %v4514 = vld [vmem:[%s3914 + $0x958] sm:$0xff]
                  %4515 = vst [vmem:[%s3915 + $0x1240] sm:$0xff] %v4514
                  %v4516 = vld [vmem:[%s3914 + $0x960] sm:$0xff]
                  %4517 = vst [vmem:[%s3915 + $0x1248] sm:$0xff] %v4516
                  %v4518 = vld [vmem:[%s3914 + $0x968] sm:$0xff]
                  %4519 = vst [vmem:[%s3915 + $0x1250] sm:$0xff] %v4518
                  %v4520 = vld [vmem:[%s3914 + $0x970] sm:$0xff]
                  %4521 = vst [vmem:[%s3915 + $0x1258] sm:$0xff] %v4520
                  %v4522 = vld [vmem:[%s3914 + $0x978] sm:$0xff]
                  %4523 = vst [vmem:[%s3915 + $0x1260] sm:$0xff] %v4522
                $region60: #{tpu_custom_call.1} parent=54 // loop_footer
                  %s3913 = sadd.s32 1, %s3909
                $region61: #{tpu_custom_call.1} parent=54 // loop_footer_branch
                  %3908 = sbr.rel target = $region57
                $region62: #{tpu_custom_call.1} parent=54 // loop_exit
                  _
              $region55: #{tpu_custom_call.1} parent=39 // pred_fallthru
                _
              // Predicated region
              $region63: #{tpu_custom_call.1} parent=39 // pred_check
                _
              $region64: #{tpu_custom_call.1} parent=39 // pred_check_branch
                %4525 = sbr.rel target = $region66
              $region65: #{tpu_custom_call.1} parent=39 // pred_region
                _
              $region66: #{tpu_custom_call.1} parent=39 // pred_fallthru
                _
            $region40: #{tpu_custom_call.1} parent=35 // pred_fallthru
              _
            // Predicated region
            $region41: #{tpu_custom_call.1} parent=35 // pred_check
              _
            $region42: #{tpu_custom_call.1} parent=35 // pred_check_branch
              %3287 = sbr.rel target = $region44
            $region43: #{tpu_custom_call.1} parent=35 // pred_region
              %s3289 = ssub.s32 256, 1
              loop: start=0, step=1, limit=1
              $region45: #{tpu_custom_call.1} parent=43 // loop_pre_header
                _
              $region46: #{tpu_custom_call.1} parent=43 // loop_header
                %s3291 = sphi 0, %s3295
                %p3292 = scmp.ge.s32.totalorder %s3291, 1
                %s3296 = sphi %s3273, %s3273
                %s3297 = sphi %s3281, %s3281
              $region47: #{tpu_custom_call.1} parent=43 // loop_header_branch
                %3294 = sbr.rel (%p3292) target = $region51
              $region48: #{tpu_custom_call.1} parent=43 // loop_body
                %v3298 = vld [vmem:[%s3296] sm:%s3289]
                %3299 = vst [vmem:[%s3297] sm:%s3289] %v3298
                %v3300 = vld [vmem:[%s3296 + $0x8] sm:%s3289]
                %3301 = vst [vmem:[%s3297 + $0x8] sm:%s3289] %v3300
                %v3302 = vld [vmem:[%s3296 + $0x10] sm:%s3289]
                %3303 = vst [vmem:[%s3297 + $0x10] sm:%s3289] %v3302
                %v3304 = vld [vmem:[%s3296 + $0x18] sm:%s3289]
                %3305 = vst [vmem:[%s3297 + $0x18] sm:%s3289] %v3304
                %v3306 = vld [vmem:[%s3296 + $0x20] sm:%s3289]
                %3307 = vst [vmem:[%s3297 + $0x20] sm:%s3289] %v3306
                %v3308 = vld [vmem:[%s3296 + $0x28] sm:%s3289]
                %3309 = vst [vmem:[%s3297 + $0x28] sm:%s3289] %v3308
                %v3310 = vld [vmem:[%s3296 + $0x30] sm:%s3289]
                %3311 = vst [vmem:[%s3297 + $0x30] sm:%s3289] %v3310
                %v3312 = vld [vmem:[%s3296 + $0x38] sm:%s3289]
                %3313 = vst [vmem:[%s3297 + $0x38] sm:%s3289] %v3312
                %v3314 = vld [vmem:[%s3296 + $0x40] sm:%s3289]
                %3315 = vst [vmem:[%s3297 + $0x40] sm:%s3289] %v3314
                %v3316 = vld [vmem:[%s3296 + $0x48] sm:%s3289]
                %3317 = vst [vmem:[%s3297 + $0x48] sm:%s3289] %v3316
                %v3318 = vld [vmem:[%s3296 + $0x50] sm:%s3289]
                %3319 = vst [vmem:[%s3297 + $0x50] sm:%s3289] %v3318
                %v3320 = vld [vmem:[%s3296 + $0x58] sm:%s3289]
                %3321 = vst [vmem:[%s3297 + $0x58] sm:%s3289] %v3320
                %v3322 = vld [vmem:[%s3296 + $0x60] sm:%s3289]
                %3323 = vst [vmem:[%s3297 + $0x60] sm:%s3289] %v3322
                %v3324 = vld [vmem:[%s3296 + $0x68] sm:%s3289]
                %3325 = vst [vmem:[%s3297 + $0x68] sm:%s3289] %v3324
                %v3326 = vld [vmem:[%s3296 + $0x70] sm:%s3289]
                %3327 = vst [vmem:[%s3297 + $0x70] sm:%s3289] %v3326
                %v3328 = vld [vmem:[%s3296 + $0x78] sm:%s3289]
                %3329 = vst [vmem:[%s3297 + $0x78] sm:%s3289] %v3328
                %v3330 = vld [vmem:[%s3296 + $0x80] sm:%s3289]
                %3331 = vst [vmem:[%s3297 + $0x80] sm:%s3289] %v3330
                %v3332 = vld [vmem:[%s3296 + $0x88] sm:%s3289]
                %3333 = vst [vmem:[%s3297 + $0x88] sm:%s3289] %v3332
                %v3334 = vld [vmem:[%s3296 + $0x90] sm:%s3289]
                %3335 = vst [vmem:[%s3297 + $0x90] sm:%s3289] %v3334
                %v3336 = vld [vmem:[%s3296 + $0x98] sm:%s3289]
                %3337 = vst [vmem:[%s3297 + $0x130] sm:%s3289] %v3336
                %v3338 = vld [vmem:[%s3296 + $0xa0] sm:%s3289]
                %3339 = vst [vmem:[%s3297 + $0x138] sm:%s3289] %v3338
                %v3340 = vld [vmem:[%s3296 + $0xa8] sm:%s3289]
                %3341 = vst [vmem:[%s3297 + $0x140] sm:%s3289] %v3340
                %v3342 = vld [vmem:[%s3296 + $0xb0] sm:%s3289]
                %3343 = vst [vmem:[%s3297 + $0x148] sm:%s3289] %v3342
                %v3344 = vld [vmem:[%s3296 + $0xb8] sm:%s3289]
                %3345 = vst [vmem:[%s3297 + $0x150] sm:%s3289] %v3344
                %v3346 = vld [vmem:[%s3296 + $0xc0] sm:%s3289]
                %3347 = vst [vmem:[%s3297 + $0x158] sm:%s3289] %v3346
                %v3348 = vld [vmem:[%s3296 + $0xc8] sm:%s3289]
                %3349 = vst [vmem:[%s3297 + $0x160] sm:%s3289] %v3348
                %v3350 = vld [vmem:[%s3296 + $0xd0] sm:%s3289]
                %3351 = vst [vmem:[%s3297 + $0x168] sm:%s3289] %v3350
                %v3352 = vld [vmem:[%s3296 + $0xd8] sm:%s3289]
                %3353 = vst [vmem:[%s3297 + $0x170] sm:%s3289] %v3352
                %v3354 = vld [vmem:[%s3296 + $0xe0] sm:%s3289]
                %3355 = vst [vmem:[%s3297 + $0x178] sm:%s3289] %v3354
                %v3356 = vld [vmem:[%s3296 + $0xe8] sm:%s3289]
                %3357 = vst [vmem:[%s3297 + $0x180] sm:%s3289] %v3356
                %v3358 = vld [vmem:[%s3296 + $0xf0] sm:%s3289]
                %3359 = vst [vmem:[%s3297 + $0x188] sm:%s3289] %v3358
                %v3360 = vld [vmem:[%s3296 + $0xf8] sm:%s3289]
                %3361 = vst [vmem:[%s3297 + $0x190] sm:%s3289] %v3360
                %v3362 = vld [vmem:[%s3296 + $0x100] sm:%s3289]
                %3363 = vst [vmem:[%s3297 + $0x198] sm:%s3289] %v3362
                %v3364 = vld [vmem:[%s3296 + $0x108] sm:%s3289]
                %3365 = vst [vmem:[%s3297 + $0x1a0] sm:%s3289] %v3364
                %v3366 = vld [vmem:[%s3296 + $0x110] sm:%s3289]
                %3367 = vst [vmem:[%s3297 + $0x1a8] sm:%s3289] %v3366
                %v3368 = vld [vmem:[%s3296 + $0x118] sm:%s3289]
                %3369 = vst [vmem:[%s3297 + $0x1b0] sm:%s3289] %v3368
                %v3370 = vld [vmem:[%s3296 + $0x120] sm:%s3289]
                %3371 = vst [vmem:[%s3297 + $0x1b8] sm:%s3289] %v3370
                %v3372 = vld [vmem:[%s3296 + $0x128] sm:%s3289]
                %3373 = vst [vmem:[%s3297 + $0x1c0] sm:%s3289] %v3372
                %v3374 = vld [vmem:[%s3296 + $0x130] sm:%s3289]
                %3375 = vst [vmem:[%s3297 + $0x260] sm:%s3289] %v3374
                %v3376 = vld [vmem:[%s3296 + $0x138] sm:%s3289]
                %3377 = vst [vmem:[%s3297 + $0x268] sm:%s3289] %v3376
                %v3378 = vld [vmem:[%s3296 + $0x140] sm:%s3289]
                %3379 = vst [vmem:[%s3297 + $0x270] sm:%s3289] %v3378
                %v3380 = vld [vmem:[%s3296 + $0x148] sm:%s3289]
                %3381 = vst [vmem:[%s3297 + $0x278] sm:%s3289] %v3380
                %v3382 = vld [vmem:[%s3296 + $0x150] sm:%s3289]
                %3383 = vst [vmem:[%s3297 + $0x280] sm:%s3289] %v3382
                %v3384 = vld [vmem:[%s3296 + $0x158] sm:%s3289]
                %3385 = vst [vmem:[%s3297 + $0x288] sm:%s3289] %v3384
                %v3386 = vld [vmem:[%s3296 + $0x160] sm:%s3289]
                %3387 = vst [vmem:[%s3297 + $0x290] sm:%s3289] %v3386
                %v3388 = vld [vmem:[%s3296 + $0x168] sm:%s3289]
                %3389 = vst [vmem:[%s3297 + $0x298] sm:%s3289] %v3388
                %v3390 = vld [vmem:[%s3296 + $0x170] sm:%s3289]
                %3391 = vst [vmem:[%s3297 + $0x2a0] sm:%s3289] %v3390
                %v3392 = vld [vmem:[%s3296 + $0x178] sm:%s3289]
                %3393 = vst [vmem:[%s3297 + $0x2a8] sm:%s3289] %v3392
                %v3394 = vld [vmem:[%s3296 + $0x180] sm:%s3289]
                %3395 = vst [vmem:[%s3297 + $0x2b0] sm:%s3289] %v3394
                %v3396 = vld [vmem:[%s3296 + $0x188] sm:%s3289]
                %3397 = vst [vmem:[%s3297 + $0x2b8] sm:%s3289] %v3396
                %v3398 = vld [vmem:[%s3296 + $0x190] sm:%s3289]
                %3399 = vst [vmem:[%s3297 + $0x2c0] sm:%s3289] %v3398
                %v3400 = vld [vmem:[%s3296 + $0x198] sm:%s3289]
                %3401 = vst [vmem:[%s3297 + $0x2c8] sm:%s3289] %v3400
                %v3402 = vld [vmem:[%s3296 + $0x1a0] sm:%s3289]
                %3403 = vst [vmem:[%s3297 + $0x2d0] sm:%s3289] %v3402
                %v3404 = vld [vmem:[%s3296 + $0x1a8] sm:%s3289]
                %3405 = vst [vmem:[%s3297 + $0x2d8] sm:%s3289] %v3404
                %v3406 = vld [vmem:[%s3296 + $0x1b0] sm:%s3289]
                %3407 = vst [vmem:[%s3297 + $0x2e0] sm:%s3289] %v3406
                %v3408 = vld [vmem:[%s3296 + $0x1b8] sm:%s3289]
                %3409 = vst [vmem:[%s3297 + $0x2e8] sm:%s3289] %v3408
                %v3410 = vld [vmem:[%s3296 + $0x1c0] sm:%s3289]
                %3411 = vst [vmem:[%s3297 + $0x2f0] sm:%s3289] %v3410
                %v3412 = vld [vmem:[%s3296 + $0x1c8] sm:%s3289]
                %3413 = vst [vmem:[%s3297 + $0x390] sm:%s3289] %v3412
                %v3414 = vld [vmem:[%s3296 + $0x1d0] sm:%s3289]
                %3415 = vst [vmem:[%s3297 + $0x398] sm:%s3289] %v3414
                %v3416 = vld [vmem:[%s3296 + $0x1d8] sm:%s3289]
                %3417 = vst [vmem:[%s3297 + $0x3a0] sm:%s3289] %v3416
                %v3418 = vld [vmem:[%s3296 + $0x1e0] sm:%s3289]
                %3419 = vst [vmem:[%s3297 + $0x3a8] sm:%s3289] %v3418
                %v3420 = vld [vmem:[%s3296 + $0x1e8] sm:%s3289]
                %3421 = vst [vmem:[%s3297 + $0x3b0] sm:%s3289] %v3420
                %v3422 = vld [vmem:[%s3296 + $0x1f0] sm:%s3289]
                %3423 = vst [vmem:[%s3297 + $0x3b8] sm:%s3289] %v3422
                %v3424 = vld [vmem:[%s3296 + $0x1f8] sm:%s3289]
                %3425 = vst [vmem:[%s3297 + $0x3c0] sm:%s3289] %v3424
                %v3426 = vld [vmem:[%s3296 + $0x200] sm:%s3289]
                %3427 = vst [vmem:[%s3297 + $0x3c8] sm:%s3289] %v3426
                %v3428 = vld [vmem:[%s3296 + $0x208] sm:%s3289]
                %3429 = vst [vmem:[%s3297 + $0x3d0] sm:%s3289] %v3428
                %v3430 = vld [vmem:[%s3296 + $0x210] sm:%s3289]
                %3431 = vst [vmem:[%s3297 + $0x3d8] sm:%s3289] %v3430
                %v3432 = vld [vmem:[%s3296 + $0x218] sm:%s3289]
                %3433 = vst [vmem:[%s3297 + $0x3e0] sm:%s3289] %v3432
                %v3434 = vld [vmem:[%s3296 + $0x220] sm:%s3289]
                %3435 = vst [vmem:[%s3297 + $0x3e8] sm:%s3289] %v3434
                %v3436 = vld [vmem:[%s3296 + $0x228] sm:%s3289]
                %3437 = vst [vmem:[%s3297 + $0x3f0] sm:%s3289] %v3436
                %v3438 = vld [vmem:[%s3296 + $0x230] sm:%s3289]
                %3439 = vst [vmem:[%s3297 + $0x3f8] sm:%s3289] %v3438
                %v3440 = vld [vmem:[%s3296 + $0x238] sm:%s3289]
                %3441 = vst [vmem:[%s3297 + $0x400] sm:%s3289] %v3440
                %v3442 = vld [vmem:[%s3296 + $0x240] sm:%s3289]
                %3443 = vst [vmem:[%s3297 + $0x408] sm:%s3289] %v3442
                %v3444 = vld [vmem:[%s3296 + $0x248] sm:%s3289]
                %3445 = vst [vmem:[%s3297 + $0x410] sm:%s3289] %v3444
                %v3446 = vld [vmem:[%s3296 + $0x250] sm:%s3289]
                %3447 = vst [vmem:[%s3297 + $0x418] sm:%s3289] %v3446
                %v3448 = vld [vmem:[%s3296 + $0x258] sm:%s3289]
                %3449 = vst [vmem:[%s3297 + $0x420] sm:%s3289] %v3448
                %v3450 = vld [vmem:[%s3296 + $0x260] sm:%s3289]
                %3451 = vst [vmem:[%s3297 + $0x4c0] sm:%s3289] %v3450
                %v3452 = vld [vmem:[%s3296 + $0x268] sm:%s3289]
                %3453 = vst [vmem:[%s3297 + $0x4c8] sm:%s3289] %v3452
                %v3454 = vld [vmem:[%s3296 + $0x270] sm:%s3289]
                %3455 = vst [vmem:[%s3297 + $0x4d0] sm:%s3289] %v3454
                %v3456 = vld [vmem:[%s3296 + $0x278] sm:%s3289]
                %3457 = vst [vmem:[%s3297 + $0x4d8] sm:%s3289] %v3456
                %v3458 = vld [vmem:[%s3296 + $0x280] sm:%s3289]
                %3459 = vst [vmem:[%s3297 + $0x4e0] sm:%s3289] %v3458
                %v3460 = vld [vmem:[%s3296 + $0x288] sm:%s3289]
                %3461 = vst [vmem:[%s3297 + $0x4e8] sm:%s3289] %v3460
                %v3462 = vld [vmem:[%s3296 + $0x290] sm:%s3289]
                %3463 = vst [vmem:[%s3297 + $0x4f0] sm:%s3289] %v3462
                %v3464 = vld [vmem:[%s3296 + $0x298] sm:%s3289]
                %3465 = vst [vmem:[%s3297 + $0x4f8] sm:%s3289] %v3464
                %v3466 = vld [vmem:[%s3296 + $0x2a0] sm:%s3289]
                %3467 = vst [vmem:[%s3297 + $0x500] sm:%s3289] %v3466
                %v3468 = vld [vmem:[%s3296 + $0x2a8] sm:%s3289]
                %3469 = vst [vmem:[%s3297 + $0x508] sm:%s3289] %v3468
                %v3470 = vld [vmem:[%s3296 + $0x2b0] sm:%s3289]
                %3471 = vst [vmem:[%s3297 + $0x510] sm:%s3289] %v3470
                %v3472 = vld [vmem:[%s3296 + $0x2b8] sm:%s3289]
                %3473 = vst [vmem:[%s3297 + $0x518] sm:%s3289] %v3472
                %v3474 = vld [vmem:[%s3296 + $0x2c0] sm:%s3289]
                %3475 = vst [vmem:[%s3297 + $0x520] sm:%s3289] %v3474
                %v3476 = vld [vmem:[%s3296 + $0x2c8] sm:%s3289]
                %3477 = vst [vmem:[%s3297 + $0x528] sm:%s3289] %v3476
                %v3478 = vld [vmem:[%s3296 + $0x2d0] sm:%s3289]
                %3479 = vst [vmem:[%s3297 + $0x530] sm:%s3289] %v3478
                %v3480 = vld [vmem:[%s3296 + $0x2d8] sm:%s3289]
                %3481 = vst [vmem:[%s3297 + $0x538] sm:%s3289] %v3480
                %v3482 = vld [vmem:[%s3296 + $0x2e0] sm:%s3289]
                %3483 = vst [vmem:[%s3297 + $0x540] sm:%s3289] %v3482
                %v3484 = vld [vmem:[%s3296 + $0x2e8] sm:%s3289]
                %3485 = vst [vmem:[%s3297 + $0x548] sm:%s3289] %v3484
                %v3486 = vld [vmem:[%s3296 + $0x2f0] sm:%s3289]
                %3487 = vst [vmem:[%s3297 + $0x550] sm:%s3289] %v3486
                %v3488 = vld [vmem:[%s3296 + $0x2f8] sm:%s3289]
                %3489 = vst [vmem:[%s3297 + $0x5f0] sm:%s3289] %v3488
                %v3490 = vld [vmem:[%s3296 + $0x300] sm:%s3289]
                %3491 = vst [vmem:[%s3297 + $0x5f8] sm:%s3289] %v3490
                %v3492 = vld [vmem:[%s3296 + $0x308] sm:%s3289]
                %3493 = vst [vmem:[%s3297 + $0x600] sm:%s3289] %v3492
                %v3494 = vld [vmem:[%s3296 + $0x310] sm:%s3289]
                %3495 = vst [vmem:[%s3297 + $0x608] sm:%s3289] %v3494
                %v3496 = vld [vmem:[%s3296 + $0x318] sm:%s3289]
                %3497 = vst [vmem:[%s3297 + $0x610] sm:%s3289] %v3496
                %v3498 = vld [vmem:[%s3296 + $0x320] sm:%s3289]
                %3499 = vst [vmem:[%s3297 + $0x618] sm:%s3289] %v3498
                %v3500 = vld [vmem:[%s3296 + $0x328] sm:%s3289]
                %3501 = vst [vmem:[%s3297 + $0x620] sm:%s3289] %v3500
                %v3502 = vld [vmem:[%s3296 + $0x330] sm:%s3289]
                %3503 = vst [vmem:[%s3297 + $0x628] sm:%s3289] %v3502
                %v3504 = vld [vmem:[%s3296 + $0x338] sm:%s3289]
                %3505 = vst [vmem:[%s3297 + $0x630] sm:%s3289] %v3504
                %v3506 = vld [vmem:[%s3296 + $0x340] sm:%s3289]
                %3507 = vst [vmem:[%s3297 + $0x638] sm:%s3289] %v3506
                %v3508 = vld [vmem:[%s3296 + $0x348] sm:%s3289]
                %3509 = vst [vmem:[%s3297 + $0x640] sm:%s3289] %v3508
                %v3510 = vld [vmem:[%s3296 + $0x350] sm:%s3289]
                %3511 = vst [vmem:[%s3297 + $0x648] sm:%s3289] %v3510
                %v3512 = vld [vmem:[%s3296 + $0x358] sm:%s3289]
                %3513 = vst [vmem:[%s3297 + $0x650] sm:%s3289] %v3512
                %v3514 = vld [vmem:[%s3296 + $0x360] sm:%s3289]
                %3515 = vst [vmem:[%s3297 + $0x658] sm:%s3289] %v3514
                %v3516 = vld [vmem:[%s3296 + $0x368] sm:%s3289]
                %3517 = vst [vmem:[%s3297 + $0x660] sm:%s3289] %v3516
                %v3518 = vld [vmem:[%s3296 + $0x370] sm:%s3289]
                %3519 = vst [vmem:[%s3297 + $0x668] sm:%s3289] %v3518
                %v3520 = vld [vmem:[%s3296 + $0x378] sm:%s3289]
                %3521 = vst [vmem:[%s3297 + $0x670] sm:%s3289] %v3520
                %v3522 = vld [vmem:[%s3296 + $0x380] sm:%s3289]
                %3523 = vst [vmem:[%s3297 + $0x678] sm:%s3289] %v3522
                %v3524 = vld [vmem:[%s3296 + $0x388] sm:%s3289]
                %3525 = vst [vmem:[%s3297 + $0x680] sm:%s3289] %v3524
                %v3526 = vld [vmem:[%s3296 + $0x390] sm:%s3289]
                %3527 = vst [vmem:[%s3297 + $0x720] sm:%s3289] %v3526
                %v3528 = vld [vmem:[%s3296 + $0x398] sm:%s3289]
                %3529 = vst [vmem:[%s3297 + $0x728] sm:%s3289] %v3528
                %v3530 = vld [vmem:[%s3296 + $0x3a0] sm:%s3289]
                %3531 = vst [vmem:[%s3297 + $0x730] sm:%s3289] %v3530
                %v3532 = vld [vmem:[%s3296 + $0x3a8] sm:%s3289]
                %3533 = vst [vmem:[%s3297 + $0x738] sm:%s3289] %v3532
                %v3534 = vld [vmem:[%s3296 + $0x3b0] sm:%s3289]
                %3535 = vst [vmem:[%s3297 + $0x740] sm:%s3289] %v3534
                %v3536 = vld [vmem:[%s3296 + $0x3b8] sm:%s3289]
                %3537 = vst [vmem:[%s3297 + $0x748] sm:%s3289] %v3536
                %v3538 = vld [vmem:[%s3296 + $0x3c0] sm:%s3289]
                %3539 = vst [vmem:[%s3297 + $0x750] sm:%s3289] %v3538
                %v3540 = vld [vmem:[%s3296 + $0x3c8] sm:%s3289]
                %3541 = vst [vmem:[%s3297 + $0x758] sm:%s3289] %v3540
                %v3542 = vld [vmem:[%s3296 + $0x3d0] sm:%s3289]
                %3543 = vst [vmem:[%s3297 + $0x760] sm:%s3289] %v3542
                %v3544 = vld [vmem:[%s3296 + $0x3d8] sm:%s3289]
                %3545 = vst [vmem:[%s3297 + $0x768] sm:%s3289] %v3544
                %v3546 = vld [vmem:[%s3296 + $0x3e0] sm:%s3289]
                %3547 = vst [vmem:[%s3297 + $0x770] sm:%s3289] %v3546
                %v3548 = vld [vmem:[%s3296 + $0x3e8] sm:%s3289]
                %3549 = vst [vmem:[%s3297 + $0x778] sm:%s3289] %v3548
                %v3550 = vld [vmem:[%s3296 + $0x3f0] sm:%s3289]
                %3551 = vst [vmem:[%s3297 + $0x780] sm:%s3289] %v3550
                %v3552 = vld [vmem:[%s3296 + $0x3f8] sm:%s3289]
                %3553 = vst [vmem:[%s3297 + $0x788] sm:%s3289] %v3552
                %v3554 = vld [vmem:[%s3296 + $0x400] sm:%s3289]
                %3555 = vst [vmem:[%s3297 + $0x790] sm:%s3289] %v3554
                %v3556 = vld [vmem:[%s3296 + $0x408] sm:%s3289]
                %3557 = vst [vmem:[%s3297 + $0x798] sm:%s3289] %v3556
                %v3558 = vld [vmem:[%s3296 + $0x410] sm:%s3289]
                %3559 = vst [vmem:[%s3297 + $0x7a0] sm:%s3289] %v3558
                %v3560 = vld [vmem:[%s3296 + $0x418] sm:%s3289]
                %3561 = vst [vmem:[%s3297 + $0x7a8] sm:%s3289] %v3560
                %v3562 = vld [vmem:[%s3296 + $0x420] sm:%s3289]
                %3563 = vst [vmem:[%s3297 + $0x7b0] sm:%s3289] %v3562
                %v3564 = vld [vmem:[%s3296 + $0x428] sm:%s3289]
                %3565 = vst [vmem:[%s3297 + $0x850] sm:%s3289] %v3564
                %v3566 = vld [vmem:[%s3296 + $0x430] sm:%s3289]
                %3567 = vst [vmem:[%s3297 + $0x858] sm:%s3289] %v3566
                %v3568 = vld [vmem:[%s3296 + $0x438] sm:%s3289]
                %3569 = vst [vmem:[%s3297 + $0x860] sm:%s3289] %v3568
                %v3570 = vld [vmem:[%s3296 + $0x440] sm:%s3289]
                %3571 = vst [vmem:[%s3297 + $0x868] sm:%s3289] %v3570
                %v3572 = vld [vmem:[%s3296 + $0x448] sm:%s3289]
                %3573 = vst [vmem:[%s3297 + $0x870] sm:%s3289] %v3572
                %v3574 = vld [vmem:[%s3296 + $0x450] sm:%s3289]
                %3575 = vst [vmem:[%s3297 + $0x878] sm:%s3289] %v3574
                %v3576 = vld [vmem:[%s3296 + $0x458] sm:%s3289]
                %3577 = vst [vmem:[%s3297 + $0x880] sm:%s3289] %v3576
                %v3578 = vld [vmem:[%s3296 + $0x460] sm:%s3289]
                %3579 = vst [vmem:[%s3297 + $0x888] sm:%s3289] %v3578
                %v3580 = vld [vmem:[%s3296 + $0x468] sm:%s3289]
                %3581 = vst [vmem:[%s3297 + $0x890] sm:%s3289] %v3580
                %v3582 = vld [vmem:[%s3296 + $0x470] sm:%s3289]
                %3583 = vst [vmem:[%s3297 + $0x898] sm:%s3289] %v3582
                %v3584 = vld [vmem:[%s3296 + $0x478] sm:%s3289]
                %3585 = vst [vmem:[%s3297 + $0x8a0] sm:%s3289] %v3584
                %v3586 = vld [vmem:[%s3296 + $0x480] sm:%s3289]
                %3587 = vst [vmem:[%s3297 + $0x8a8] sm:%s3289] %v3586
                %v3588 = vld [vmem:[%s3296 + $0x488] sm:%s3289]
                %3589 = vst [vmem:[%s3297 + $0x8b0] sm:%s3289] %v3588
                %v3590 = vld [vmem:[%s3296 + $0x490] sm:%s3289]
                %3591 = vst [vmem:[%s3297 + $0x8b8] sm:%s3289] %v3590
                %v3592 = vld [vmem:[%s3296 + $0x498] sm:%s3289]
                %3593 = vst [vmem:[%s3297 + $0x8c0] sm:%s3289] %v3592
                %v3594 = vld [vmem:[%s3296 + $0x4a0] sm:%s3289]
                %3595 = vst [vmem:[%s3297 + $0x8c8] sm:%s3289] %v3594
                %v3596 = vld [vmem:[%s3296 + $0x4a8] sm:%s3289]
                %3597 = vst [vmem:[%s3297 + $0x8d0] sm:%s3289] %v3596
                %v3598 = vld [vmem:[%s3296 + $0x4b0] sm:%s3289]
                %3599 = vst [vmem:[%s3297 + $0x8d8] sm:%s3289] %v3598
                %v3600 = vld [vmem:[%s3296 + $0x4b8] sm:%s3289]
                %3601 = vst [vmem:[%s3297 + $0x8e0] sm:%s3289] %v3600
                %v3602 = vld [vmem:[%s3296 + $0x4c0] sm:%s3289]
                %3603 = vst [vmem:[%s3297 + $0x980] sm:%s3289] %v3602
                %v3604 = vld [vmem:[%s3296 + $0x4c8] sm:%s3289]
                %3605 = vst [vmem:[%s3297 + $0x988] sm:%s3289] %v3604
                %v3606 = vld [vmem:[%s3296 + $0x4d0] sm:%s3289]
                %3607 = vst [vmem:[%s3297 + $0x990] sm:%s3289] %v3606
                %v3608 = vld [vmem:[%s3296 + $0x4d8] sm:%s3289]
                %3609 = vst [vmem:[%s3297 + $0x998] sm:%s3289] %v3608
                %v3610 = vld [vmem:[%s3296 + $0x4e0] sm:%s3289]
                %3611 = vst [vmem:[%s3297 + $0x9a0] sm:%s3289] %v3610
                %v3612 = vld [vmem:[%s3296 + $0x4e8] sm:%s3289]
                %3613 = vst [vmem:[%s3297 + $0x9a8] sm:%s3289] %v3612
                %v3614 = vld [vmem:[%s3296 + $0x4f0] sm:%s3289]
                %3615 = vst [vmem:[%s3297 + $0x9b0] sm:%s3289] %v3614
                %v3616 = vld [vmem:[%s3296 + $0x4f8] sm:%s3289]
                %3617 = vst [vmem:[%s3297 + $0x9b8] sm:%s3289] %v3616
                %v3618 = vld [vmem:[%s3296 + $0x500] sm:%s3289]
                %3619 = vst [vmem:[%s3297 + $0x9c0] sm:%s3289] %v3618
                %v3620 = vld [vmem:[%s3296 + $0x508] sm:%s3289]
                %3621 = vst [vmem:[%s3297 + $0x9c8] sm:%s3289] %v3620
                %v3622 = vld [vmem:[%s3296 + $0x510] sm:%s3289]
                %3623 = vst [vmem:[%s3297 + $0x9d0] sm:%s3289] %v3622
                %v3624 = vld [vmem:[%s3296 + $0x518] sm:%s3289]
                %3625 = vst [vmem:[%s3297 + $0x9d8] sm:%s3289] %v3624
                %v3626 = vld [vmem:[%s3296 + $0x520] sm:%s3289]
                %3627 = vst [vmem:[%s3297 + $0x9e0] sm:%s3289] %v3626
                %v3628 = vld [vmem:[%s3296 + $0x528] sm:%s3289]
                %3629 = vst [vmem:[%s3297 + $0x9e8] sm:%s3289] %v3628
                %v3630 = vld [vmem:[%s3296 + $0x530] sm:%s3289]
                %3631 = vst [vmem:[%s3297 + $0x9f0] sm:%s3289] %v3630
                %v3632 = vld [vmem:[%s3296 + $0x538] sm:%s3289]
                %3633 = vst [vmem:[%s3297 + $0x9f8] sm:%s3289] %v3632
                %v3634 = vld [vmem:[%s3296 + $0x540] sm:%s3289]
                %3635 = vst [vmem:[%s3297 + $0xa00] sm:%s3289] %v3634
                %v3636 = vld [vmem:[%s3296 + $0x548] sm:%s3289]
                %3637 = vst [vmem:[%s3297 + $0xa08] sm:%s3289] %v3636
                %v3638 = vld [vmem:[%s3296 + $0x550] sm:%s3289]
                %3639 = vst [vmem:[%s3297 + $0xa10] sm:%s3289] %v3638
                %v3640 = vld [vmem:[%s3296 + $0x558] sm:%s3289]
                %3641 = vst [vmem:[%s3297 + $0xab0] sm:%s3289] %v3640
                %v3642 = vld [vmem:[%s3296 + $0x560] sm:%s3289]
                %3643 = vst [vmem:[%s3297 + $0xab8] sm:%s3289] %v3642
                %v3644 = vld [vmem:[%s3296 + $0x568] sm:%s3289]
                %3645 = vst [vmem:[%s3297 + $0xac0] sm:%s3289] %v3644
                %v3646 = vld [vmem:[%s3296 + $0x570] sm:%s3289]
                %3647 = vst [vmem:[%s3297 + $0xac8] sm:%s3289] %v3646
                %v3648 = vld [vmem:[%s3296 + $0x578] sm:%s3289]
                %3649 = vst [vmem:[%s3297 + $0xad0] sm:%s3289] %v3648
                %v3650 = vld [vmem:[%s3296 + $0x580] sm:%s3289]
                %3651 = vst [vmem:[%s3297 + $0xad8] sm:%s3289] %v3650
                %v3652 = vld [vmem:[%s3296 + $0x588] sm:%s3289]
                %3653 = vst [vmem:[%s3297 + $0xae0] sm:%s3289] %v3652
                %v3654 = vld [vmem:[%s3296 + $0x590] sm:%s3289]
                %3655 = vst [vmem:[%s3297 + $0xae8] sm:%s3289] %v3654
                %v3656 = vld [vmem:[%s3296 + $0x598] sm:%s3289]
                %3657 = vst [vmem:[%s3297 + $0xaf0] sm:%s3289] %v3656
                %v3658 = vld [vmem:[%s3296 + $0x5a0] sm:%s3289]
                %3659 = vst [vmem:[%s3297 + $0xaf8] sm:%s3289] %v3658
                %v3660 = vld [vmem:[%s3296 + $0x5a8] sm:%s3289]
                %3661 = vst [vmem:[%s3297 + $0xb00] sm:%s3289] %v3660
                %v3662 = vld [vmem:[%s3296 + $0x5b0] sm:%s3289]
                %3663 = vst [vmem:[%s3297 + $0xb08] sm:%s3289] %v3662
                %v3664 = vld [vmem:[%s3296 + $0x5b8] sm:%s3289]
                %3665 = vst [vmem:[%s3297 + $0xb10] sm:%s3289] %v3664
                %v3666 = vld [vmem:[%s3296 + $0x5c0] sm:%s3289]
                %3667 = vst [vmem:[%s3297 + $0xb18] sm:%s3289] %v3666
                %v3668 = vld [vmem:[%s3296 + $0x5c8] sm:%s3289]
                %3669 = vst [vmem:[%s3297 + $0xb20] sm:%s3289] %v3668
                %v3670 = vld [vmem:[%s3296 + $0x5d0] sm:%s3289]
                %3671 = vst [vmem:[%s3297 + $0xb28] sm:%s3289] %v3670
                %v3672 = vld [vmem:[%s3296 + $0x5d8] sm:%s3289]
                %3673 = vst [vmem:[%s3297 + $0xb30] sm:%s3289] %v3672
                %v3674 = vld [vmem:[%s3296 + $0x5e0] sm:%s3289]
                %3675 = vst [vmem:[%s3297 + $0xb38] sm:%s3289] %v3674
                %v3676 = vld [vmem:[%s3296 + $0x5e8] sm:%s3289]
                %3677 = vst [vmem:[%s3297 + $0xb40] sm:%s3289] %v3676
                %v3678 = vld [vmem:[%s3296 + $0x5f0] sm:%s3289]
                %3679 = vst [vmem:[%s3297 + $0xbe0] sm:%s3289] %v3678
                %v3680 = vld [vmem:[%s3296 + $0x5f8] sm:%s3289]
                %3681 = vst [vmem:[%s3297 + $0xbe8] sm:%s3289] %v3680
                %v3682 = vld [vmem:[%s3296 + $0x600] sm:%s3289]
                %3683 = vst [vmem:[%s3297 + $0xbf0] sm:%s3289] %v3682
                %v3684 = vld [vmem:[%s3296 + $0x608] sm:%s3289]
                %3685 = vst [vmem:[%s3297 + $0xbf8] sm:%s3289] %v3684
                %v3686 = vld [vmem:[%s3296 + $0x610] sm:%s3289]
                %3687 = vst [vmem:[%s3297 + $0xc00] sm:%s3289] %v3686
                %v3688 = vld [vmem:[%s3296 + $0x618] sm:%s3289]
                %3689 = vst [vmem:[%s3297 + $0xc08] sm:%s3289] %v3688
                %v3690 = vld [vmem:[%s3296 + $0x620] sm:%s3289]
                %3691 = vst [vmem:[%s3297 + $0xc10] sm:%s3289] %v3690
                %v3692 = vld [vmem:[%s3296 + $0x628] sm:%s3289]
                %3693 = vst [vmem:[%s3297 + $0xc18] sm:%s3289] %v3692
                %v3694 = vld [vmem:[%s3296 + $0x630] sm:%s3289]
                %3695 = vst [vmem:[%s3297 + $0xc20] sm:%s3289] %v3694
                %v3696 = vld [vmem:[%s3296 + $0x638] sm:%s3289]
                %3697 = vst [vmem:[%s3297 + $0xc28] sm:%s3289] %v3696
                %v3698 = vld [vmem:[%s3296 + $0x640] sm:%s3289]
                %3699 = vst [vmem:[%s3297 + $0xc30] sm:%s3289] %v3698
                %v3700 = vld [vmem:[%s3296 + $0x648] sm:%s3289]
                %3701 = vst [vmem:[%s3297 + $0xc38] sm:%s3289] %v3700
                %v3702 = vld [vmem:[%s3296 + $0x650] sm:%s3289]
                %3703 = vst [vmem:[%s3297 + $0xc40] sm:%s3289] %v3702
                %v3704 = vld [vmem:[%s3296 + $0x658] sm:%s3289]
                %3705 = vst [vmem:[%s3297 + $0xc48] sm:%s3289] %v3704
                %v3706 = vld [vmem:[%s3296 + $0x660] sm:%s3289]
                %3707 = vst [vmem:[%s3297 + $0xc50] sm:%s3289] %v3706
                %v3708 = vld [vmem:[%s3296 + $0x668] sm:%s3289]
                %3709 = vst [vmem:[%s3297 + $0xc58] sm:%s3289] %v3708
                %v3710 = vld [vmem:[%s3296 + $0x670] sm:%s3289]
                %3711 = vst [vmem:[%s3297 + $0xc60] sm:%s3289] %v3710
                %v3712 = vld [vmem:[%s3296 + $0x678] sm:%s3289]
                %3713 = vst [vmem:[%s3297 + $0xc68] sm:%s3289] %v3712
                %v3714 = vld [vmem:[%s3296 + $0x680] sm:%s3289]
                %3715 = vst [vmem:[%s3297 + $0xc70] sm:%s3289] %v3714
                %v3716 = vld [vmem:[%s3296 + $0x688] sm:%s3289]
                %3717 = vst [vmem:[%s3297 + $0xd10] sm:%s3289] %v3716
                %v3718 = vld [vmem:[%s3296 + $0x690] sm:%s3289]
                %3719 = vst [vmem:[%s3297 + $0xd18] sm:%s3289] %v3718
                %v3720 = vld [vmem:[%s3296 + $0x698] sm:%s3289]
                %3721 = vst [vmem:[%s3297 + $0xd20] sm:%s3289] %v3720
                %v3722 = vld [vmem:[%s3296 + $0x6a0] sm:%s3289]
                %3723 = vst [vmem:[%s3297 + $0xd28] sm:%s3289] %v3722
                %v3724 = vld [vmem:[%s3296 + $0x6a8] sm:%s3289]
                %3725 = vst [vmem:[%s3297 + $0xd30] sm:%s3289] %v3724
                %v3726 = vld [vmem:[%s3296 + $0x6b0] sm:%s3289]
                %3727 = vst [vmem:[%s3297 + $0xd38] sm:%s3289] %v3726
                %v3728 = vld [vmem:[%s3296 + $0x6b8] sm:%s3289]
                %3729 = vst [vmem:[%s3297 + $0xd40] sm:%s3289] %v3728
                %v3730 = vld [vmem:[%s3296 + $0x6c0] sm:%s3289]
                %3731 = vst [vmem:[%s3297 + $0xd48] sm:%s3289] %v3730
                %v3732 = vld [vmem:[%s3296 + $0x6c8] sm:%s3289]
                %3733 = vst [vmem:[%s3297 + $0xd50] sm:%s3289] %v3732
                %v3734 = vld [vmem:[%s3296 + $0x6d0] sm:%s3289]
                %3735 = vst [vmem:[%s3297 + $0xd58] sm:%s3289] %v3734
                %v3736 = vld [vmem:[%s3296 + $0x6d8] sm:%s3289]
                %3737 = vst [vmem:[%s3297 + $0xd60] sm:%s3289] %v3736
                %v3738 = vld [vmem:[%s3296 + $0x6e0] sm:%s3289]
                %3739 = vst [vmem:[%s3297 + $0xd68] sm:%s3289] %v3738
                %v3740 = vld [vmem:[%s3296 + $0x6e8] sm:%s3289]
                %3741 = vst [vmem:[%s3297 + $0xd70] sm:%s3289] %v3740
                %v3742 = vld [vmem:[%s3296 + $0x6f0] sm:%s3289]
                %3743 = vst [vmem:[%s3297 + $0xd78] sm:%s3289] %v3742
                %v3744 = vld [vmem:[%s3296 + $0x6f8] sm:%s3289]
                %3745 = vst [vmem:[%s3297 + $0xd80] sm:%s3289] %v3744
                %v3746 = vld [vmem:[%s3296 + $0x700] sm:%s3289]
                %3747 = vst [vmem:[%s3297 + $0xd88] sm:%s3289] %v3746
                %v3748 = vld [vmem:[%s3296 + $0x708] sm:%s3289]
                %3749 = vst [vmem:[%s3297 + $0xd90] sm:%s3289] %v3748
                %v3750 = vld [vmem:[%s3296 + $0x710] sm:%s3289]
                %3751 = vst [vmem:[%s3297 + $0xd98] sm:%s3289] %v3750
                %v3752 = vld [vmem:[%s3296 + $0x718] sm:%s3289]
                %3753 = vst [vmem:[%s3297 + $0xda0] sm:%s3289] %v3752
                %v3754 = vld [vmem:[%s3296 + $0x720] sm:%s3289]
                %3755 = vst [vmem:[%s3297 + $0xe40] sm:%s3289] %v3754
                %v3756 = vld [vmem:[%s3296 + $0x728] sm:%s3289]
                %3757 = vst [vmem:[%s3297 + $0xe48] sm:%s3289] %v3756
                %v3758 = vld [vmem:[%s3296 + $0x730] sm:%s3289]
                %3759 = vst [vmem:[%s3297 + $0xe50] sm:%s3289] %v3758
                %v3760 = vld [vmem:[%s3296 + $0x738] sm:%s3289]
                %3761 = vst [vmem:[%s3297 + $0xe58] sm:%s3289] %v3760
                %v3762 = vld [vmem:[%s3296 + $0x740] sm:%s3289]
                %3763 = vst [vmem:[%s3297 + $0xe60] sm:%s3289] %v3762
                %v3764 = vld [vmem:[%s3296 + $0x748] sm:%s3289]
                %3765 = vst [vmem:[%s3297 + $0xe68] sm:%s3289] %v3764
                %v3766 = vld [vmem:[%s3296 + $0x750] sm:%s3289]
                %3767 = vst [vmem:[%s3297 + $0xe70] sm:%s3289] %v3766
                %v3768 = vld [vmem:[%s3296 + $0x758] sm:%s3289]
                %3769 = vst [vmem:[%s3297 + $0xe78] sm:%s3289] %v3768
                %v3770 = vld [vmem:[%s3296 + $0x760] sm:%s3289]
                %3771 = vst [vmem:[%s3297 + $0xe80] sm:%s3289] %v3770
                %v3772 = vld [vmem:[%s3296 + $0x768] sm:%s3289]
                %3773 = vst [vmem:[%s3297 + $0xe88] sm:%s3289] %v3772
                %v3774 = vld [vmem:[%s3296 + $0x770] sm:%s3289]
                %3775 = vst [vmem:[%s3297 + $0xe90] sm:%s3289] %v3774
                %v3776 = vld [vmem:[%s3296 + $0x778] sm:%s3289]
                %3777 = vst [vmem:[%s3297 + $0xe98] sm:%s3289] %v3776
                %v3778 = vld [vmem:[%s3296 + $0x780] sm:%s3289]
                %3779 = vst [vmem:[%s3297 + $0xea0] sm:%s3289] %v3778
                %v3780 = vld [vmem:[%s3296 + $0x788] sm:%s3289]
                %3781 = vst [vmem:[%s3297 + $0xea8] sm:%s3289] %v3780
                %v3782 = vld [vmem:[%s3296 + $0x790] sm:%s3289]
                %3783 = vst [vmem:[%s3297 + $0xeb0] sm:%s3289] %v3782
                %v3784 = vld [vmem:[%s3296 + $0x798] sm:%s3289]
                %3785 = vst [vmem:[%s3297 + $0xeb8] sm:%s3289] %v3784
                %v3786 = vld [vmem:[%s3296 + $0x7a0] sm:%s3289]
                %3787 = vst [vmem:[%s3297 + $0xec0] sm:%s3289] %v3786
                %v3788 = vld [vmem:[%s3296 + $0x7a8] sm:%s3289]
                %3789 = vst [vmem:[%s3297 + $0xec8] sm:%s3289] %v3788
                %v3790 = vld [vmem:[%s3296 + $0x7b0] sm:%s3289]
                %3791 = vst [vmem:[%s3297 + $0xed0] sm:%s3289] %v3790
                %v3792 = vld [vmem:[%s3296 + $0x7b8] sm:%s3289]
                %3793 = vst [vmem:[%s3297 + $0xf70] sm:%s3289] %v3792
                %v3794 = vld [vmem:[%s3296 + $0x7c0] sm:%s3289]
                %3795 = vst [vmem:[%s3297 + $0xf78] sm:%s3289] %v3794
                %v3796 = vld [vmem:[%s3296 + $0x7c8] sm:%s3289]
                %3797 = vst [vmem:[%s3297 + $0xf80] sm:%s3289] %v3796
                %v3798 = vld [vmem:[%s3296 + $0x7d0] sm:%s3289]
                %3799 = vst [vmem:[%s3297 + $0xf88] sm:%s3289] %v3798
                %v3800 = vld [vmem:[%s3296 + $0x7d8] sm:%s3289]
                %3801 = vst [vmem:[%s3297 + $0xf90] sm:%s3289] %v3800
                %v3802 = vld [vmem:[%s3296 + $0x7e0] sm:%s3289]
                %3803 = vst [vmem:[%s3297 + $0xf98] sm:%s3289] %v3802
                %v3804 = vld [vmem:[%s3296 + $0x7e8] sm:%s3289]
                %3805 = vst [vmem:[%s3297 + $0xfa0] sm:%s3289] %v3804
                %v3806 = vld [vmem:[%s3296 + $0x7f0] sm:%s3289]
                %3807 = vst [vmem:[%s3297 + $0xfa8] sm:%s3289] %v3806
                %v3808 = vld [vmem:[%s3296 + $0x7f8] sm:%s3289]
                %3809 = vst [vmem:[%s3297 + $0xfb0] sm:%s3289] %v3808
                %v3810 = vld [vmem:[%s3296 + $0x800] sm:%s3289]
                %3811 = vst [vmem:[%s3297 + $0xfb8] sm:%s3289] %v3810
                %v3812 = vld [vmem:[%s3296 + $0x808] sm:%s3289]
                %3813 = vst [vmem:[%s3297 + $0xfc0] sm:%s3289] %v3812
                %v3814 = vld [vmem:[%s3296 + $0x810] sm:%s3289]
                %3815 = vst [vmem:[%s3297 + $0xfc8] sm:%s3289] %v3814
                %v3816 = vld [vmem:[%s3296 + $0x818] sm:%s3289]
                %3817 = vst [vmem:[%s3297 + $0xfd0] sm:%s3289] %v3816
                %v3818 = vld [vmem:[%s3296 + $0x820] sm:%s3289]
                %3819 = vst [vmem:[%s3297 + $0xfd8] sm:%s3289] %v3818
                %v3820 = vld [vmem:[%s3296 + $0x828] sm:%s3289]
                %3821 = vst [vmem:[%s3297 + $0xfe0] sm:%s3289] %v3820
                %v3822 = vld [vmem:[%s3296 + $0x830] sm:%s3289]
                %3823 = vst [vmem:[%s3297 + $0xfe8] sm:%s3289] %v3822
                %v3824 = vld [vmem:[%s3296 + $0x838] sm:%s3289]
                %3825 = vst [vmem:[%s3297 + $0xff0] sm:%s3289] %v3824
                %v3826 = vld [vmem:[%s3296 + $0x840] sm:%s3289]
                %3827 = vst [vmem:[%s3297 + $0xff8] sm:%s3289] %v3826
                %v3828 = vld [vmem:[%s3296 + $0x848] sm:%s3289]
                %3829 = vst [vmem:[%s3297 + $0x1000] sm:%s3289] %v3828
                %v3830 = vld [vmem:[%s3296 + $0x850] sm:%s3289]
                %3831 = vst [vmem:[%s3297 + $0x10a0] sm:%s3289] %v3830
                %v3832 = vld [vmem:[%s3296 + $0x858] sm:%s3289]
                %3833 = vst [vmem:[%s3297 + $0x10a8] sm:%s3289] %v3832
                %v3834 = vld [vmem:[%s3296 + $0x860] sm:%s3289]
                %3835 = vst [vmem:[%s3297 + $0x10b0] sm:%s3289] %v3834
                %v3836 = vld [vmem:[%s3296 + $0x868] sm:%s3289]
                %3837 = vst [vmem:[%s3297 + $0x10b8] sm:%s3289] %v3836
                %v3838 = vld [vmem:[%s3296 + $0x870] sm:%s3289]
                %3839 = vst [vmem:[%s3297 + $0x10c0] sm:%s3289] %v3838
                %v3840 = vld [vmem:[%s3296 + $0x878] sm:%s3289]
                %3841 = vst [vmem:[%s3297 + $0x10c8] sm:%s3289] %v3840
                %v3842 = vld [vmem:[%s3296 + $0x880] sm:%s3289]
                %3843 = vst [vmem:[%s3297 + $0x10d0] sm:%s3289] %v3842
                %v3844 = vld [vmem:[%s3296 + $0x888] sm:%s3289]
                %3845 = vst [vmem:[%s3297 + $0x10d8] sm:%s3289] %v3844
                %v3846 = vld [vmem:[%s3296 + $0x890] sm:%s3289]
                %3847 = vst [vmem:[%s3297 + $0x10e0] sm:%s3289] %v3846
                %v3848 = vld [vmem:[%s3296 + $0x898] sm:%s3289]
                %3849 = vst [vmem:[%s3297 + $0x10e8] sm:%s3289] %v3848
                %v3850 = vld [vmem:[%s3296 + $0x8a0] sm:%s3289]
                %3851 = vst [vmem:[%s3297 + $0x10f0] sm:%s3289] %v3850
                %v3852 = vld [vmem:[%s3296 + $0x8a8] sm:%s3289]
                %3853 = vst [vmem:[%s3297 + $0x10f8] sm:%s3289] %v3852
                %v3854 = vld [vmem:[%s3296 + $0x8b0] sm:%s3289]
                %3855 = vst [vmem:[%s3297 + $0x1100] sm:%s3289] %v3854
                %v3856 = vld [vmem:[%s3296 + $0x8b8] sm:%s3289]
                %3857 = vst [vmem:[%s3297 + $0x1108] sm:%s3289] %v3856
                %v3858 = vld [vmem:[%s3296 + $0x8c0] sm:%s3289]
                %3859 = vst [vmem:[%s3297 + $0x1110] sm:%s3289] %v3858
                %v3860 = vld [vmem:[%s3296 + $0x8c8] sm:%s3289]
                %3861 = vst [vmem:[%s3297 + $0x1118] sm:%s3289] %v3860
                %v3862 = vld [vmem:[%s3296 + $0x8d0] sm:%s3289]
                %3863 = vst [vmem:[%s3297 + $0x1120] sm:%s3289] %v3862
                %v3864 = vld [vmem:[%s3296 + $0x8d8] sm:%s3289]
                %3865 = vst [vmem:[%s3297 + $0x1128] sm:%s3289] %v3864
                %v3866 = vld [vmem:[%s3296 + $0x8e0] sm:%s3289]
                %3867 = vst [vmem:[%s3297 + $0x1130] sm:%s3289] %v3866
                %v3868 = vld [vmem:[%s3296 + $0x8e8] sm:%s3289]
                %3869 = vst [vmem:[%s3297 + $0x11d0] sm:%s3289] %v3868
                %v3870 = vld [vmem:[%s3296 + $0x8f0] sm:%s3289]
                %3871 = vst [vmem:[%s3297 + $0x11d8] sm:%s3289] %v3870
                %v3872 = vld [vmem:[%s3296 + $0x8f8] sm:%s3289]
                %3873 = vst [vmem:[%s3297 + $0x11e0] sm:%s3289] %v3872
                %v3874 = vld [vmem:[%s3296 + $0x900] sm:%s3289]
                %3875 = vst [vmem:[%s3297 + $0x11e8] sm:%s3289] %v3874
                %v3876 = vld [vmem:[%s3296 + $0x908] sm:%s3289]
                %3877 = vst [vmem:[%s3297 + $0x11f0] sm:%s3289] %v3876
                %v3878 = vld [vmem:[%s3296 + $0x910] sm:%s3289]
                %3879 = vst [vmem:[%s3297 + $0x11f8] sm:%s3289] %v3878
                %v3880 = vld [vmem:[%s3296 + $0x918] sm:%s3289]
                %3881 = vst [vmem:[%s3297 + $0x1200] sm:%s3289] %v3880
                %v3882 = vld [vmem:[%s3296 + $0x920] sm:%s3289]
                %3883 = vst [vmem:[%s3297 + $0x1208] sm:%s3289] %v3882
                %v3884 = vld [vmem:[%s3296 + $0x928] sm:%s3289]
                %3885 = vst [vmem:[%s3297 + $0x1210] sm:%s3289] %v3884
                %v3886 = vld [vmem:[%s3296 + $0x930] sm:%s3289]
                %3887 = vst [vmem:[%s3297 + $0x1218] sm:%s3289] %v3886
                %v3888 = vld [vmem:[%s3296 + $0x938] sm:%s3289]
                %3889 = vst [vmem:[%s3297 + $0x1220] sm:%s3289] %v3888
                %v3890 = vld [vmem:[%s3296 + $0x940] sm:%s3289]
                %3891 = vst [vmem:[%s3297 + $0x1228] sm:%s3289] %v3890
                %v3892 = vld [vmem:[%s3296 + $0x948] sm:%s3289]
                %3893 = vst [vmem:[%s3297 + $0x1230] sm:%s3289] %v3892
                %v3894 = vld [vmem:[%s3296 + $0x950] sm:%s3289]
                %3895 = vst [vmem:[%s3297 + $0x1238] sm:%s3289] %v3894
                %v3896 = vld [vmem:[%s3296 + $0x958] sm:%s3289]
                %3897 = vst [vmem:[%s3297 + $0x1240] sm:%s3289] %v3896
                %v3898 = vld [vmem:[%s3296 + $0x960] sm:%s3289]
                %3899 = vst [vmem:[%s3297 + $0x1248] sm:%s3289] %v3898
                %v3900 = vld [vmem:[%s3296 + $0x968] sm:%s3289]
                %3901 = vst [vmem:[%s3297 + $0x1250] sm:%s3289] %v3900
                %v3902 = vld [vmem:[%s3296 + $0x970] sm:%s3289]
                %3903 = vst [vmem:[%s3297 + $0x1258] sm:%s3289] %v3902
                %v3904 = vld [vmem:[%s3296 + $0x978] sm:%s3289]
                %3905 = vst [vmem:[%s3297 + $0x1260] sm:%s3289] %v3904
              $region49: #{tpu_custom_call.1} parent=43 // loop_footer
                %s3295 = sadd.s32 1, %s3291
              $region50: #{tpu_custom_call.1} parent=43 // loop_footer_branch
                %3290 = sbr.rel target = $region46
              $region51: #{tpu_custom_call.1} parent=43 // loop_exit
                _
            $region44: #{tpu_custom_call.1} parent=35 // pred_fallthru
              _
          $region36: #{tpu_custom_call.1} parent=31 // pred_fallthru
            _
          %4526 = vnop
        $region32: #{tpu_custom_call.1} parent=27 // pred_fallthru
          _
      $region28: #{tpu_custom_call.1} parent=5 // pred_fallthru
        _
      %p4527 = scmp.le.s32.totalorder 2, %s8
      // Predicated region
      $region67: #{tpu_custom_call.1} parent=5 // pred_check
        %p4528 = pneg %p4527
      $region68: #{tpu_custom_call.1} parent=5 // pred_check_branch
        %4530 = sbr.rel (%p4528) target = $region70
      $region69: #{tpu_custom_call.1} parent=5 // pred_region
        %s4531 = ssub.s32 %s8, 2
        // Predicated region
        $region71: #{tpu_custom_call.1} parent=69 // pred_check
          %p4532 = pneg %p100
        $region72: #{tpu_custom_call.1} parent=69 // pred_check_branch
          %4534 = sbr.rel (%p4532) target = $region74
        $region73: #{tpu_custom_call.1} parent=69 // pred_region
          %s4535 = sand.u32 %s85, 1
          %s4536 = sand.u32 %s85, 1
          %s4537 = smul.addr %s4536, 2432
          %s4538 = scalar_lea.vmem [#allocation2], %s4537
        $region74: #{tpu_custom_call.1} parent=69 // pred_fallthru
          _
      $region70: #{tpu_custom_call.1} parent=5 // pred_fallthru
        _
    $region6: #{tpu_custom_call.1} parent=1 // loop_footer
      %s12 = sadd.s32 1, %s8
    $region7: #{tpu_custom_call.1} parent=1 // loop_footer_branch
      %7 = sbr.rel target = $region3
    $region8: #{tpu_custom_call.1} parent=1 // loop_exit
      _

</llo_original>
